<compile_context>
chip_gen: v6e
topology: v6e:2x2x1
jax: 0.10.0
libtpu: 0.0.40
codegen_flags: <defaults>
</compile_context>

<pallas_src>
import math

import jax
import jax.numpy as jnp
from jax.experimental import pallas as pl
from jax.experimental.pallas import tpu as pltpu

LANE = 128
SUBLANE = 8


def _round_up(x, m):
    return (x + m - 1) // m * m


def sine_layer_kernel(x_ref, w_ref, b_ref, o_ref):
    # x_ref: (tm, K), w_ref: (K, Np), b_ref: (1, Np); omega_0 is pre-folded.
    z = jnp.dot(x_ref[...], w_ref[...], preferred_element_type=jnp.float32)
    o_ref[...] = jnp.sin(z + b_ref[...]).astype(o_ref.dtype)


def prepare_sine_layer_params(weight, bias, omega_0, *, param_dtype=None):
    """One-time parameter prep (do this at init, not per call).

    - folds omega_0 into W and b
    - transposes W to (K, N) so the kernel matmul needs no transpose
    - pads N (output lane axis) up to a multiple of 128 for lane-dense stores
    param_dtype: optionally cast the weight (e.g. jnp.bfloat16 on v6e/v7x).
    """
    n_out, _ = weight.shape
    n_pad = _round_up(n_out, LANE)
    w_t = omega_0 * weight.T                       # (K, N)
    b = omega_0 * bias
    if n_pad != n_out:
        w_t = jnp.pad(w_t, ((0, 0), (0, n_pad - n_out)))
        b = jnp.pad(b, (0, n_pad - n_out))
    if param_dtype is not None:
        w_t = w_t.astype(param_dtype)
    b2 = b.reshape(1, n_pad).astype(jnp.float32)   # added to the f32 accumulator
    return w_t, b2, n_out


def sine_layer_apply(x, w_scaled_t, b_scaled, n_out, *, tm=None):
    """x: (M, K);  (w_scaled_t, b_scaled, n_out) from prepare_sine_layer_params."""
    m, k = x.shape
    kw, n_pad = w_scaled_t.shape
    assert kw == k, "in_features mismatch"

    out_dtype = x.dtype
    x_it = jnp.dtype(x.dtype).itemsize
    w_it = jnp.dtype(w_scaled_t.dtype).itemsize
    o_it = jnp.dtype(out_dtype).itemsize

    # Resident weight + bias (counted double-buffered to be conservative).
    fixed = 2 * (k * n_pad * w_it + n_pad * 4)

    if tm is None:
        # Largest row tile that keeps the double-buffered working set within a
        # budget that is safe on every generation (v7x VMEM is only 64 MiB).
        budget = 24 * 1024 * 1024
        per_row = 2 * (k * x_it + n_pad * o_it)
        tm = max(SUBLANE, min(max(budget - fixed, per_row) // per_row, 1024))
        tm = (tm // SUBLANE) * SUBLANE
    if tm >= m:
        tm = m                                      # single full-row block
    grid_m = pl.cdiv(m, tm)                         # ragged last tile is masked

    needed = fixed + 2 * tm * (k * x_it + n_pad * o_it) + (4 << 20)
    vmem_limit = int(min(max(needed, 32 << 20), 48 << 20))

    cost = pl.CostEstimate(
        flops=2 * m * k * n_pad,
        transcendentals=m * n_pad,
        bytes_accessed=m * k * x_it + k * n_pad * w_it + m * n_pad * o_it)

    out = pl.pallas_call(
        sine_layer_kernel,
        out_shape=jax.ShapeDtypeStruct((m, n_pad), out_dtype),
        grid_spec=pltpu.PrefetchScalarGridSpec(
            num_scalar_prefetch=0,
            grid=(grid_m,),
            in_specs=[
                pl.BlockSpec((tm, k), lambda i: (i, 0)),      # x row tile
                pl.BlockSpec((k, n_pad), lambda i: (0, 0)),   # resident weight
                pl.BlockSpec((1, n_pad), lambda i: (0, 0)),   # resident bias
            ],
            out_specs=pl.BlockSpec((tm, n_pad), lambda i: (i, 0)),
        ),
        compiler_params=pltpu.CompilerParams(
            dimension_semantics=("parallel",),
            vmem_limit_bytes=vmem_limit),
        cost_estimate=cost,
    )(x, w_scaled_t, b_scaled)

    if n_pad != n_out:
        out = out[:, :n_out]
    return out


def sine_layer(x, weight, bias, omega_0, *, tm=None):
    """Convenience one-shot wrapper matching SineLayer.forward.

    Handles arbitrary leading dims like nn.Linear (acts on the last axis).
    For repeated calls, prefer prepare_sine_layer_params + sine_layer_apply.
    """
    lead = x.shape[:-1]
    k = x.shape[-1]
    x2 = x.reshape(-1, k)
    w_t, b2, n_out = prepare_sine_layer_params(weight, bias, omega_0)
    y = sine_layer_apply(x2, w_t, b2, n_out, tm=tm)
    return y.reshape(*lead, n_out)


def init_sine_layer_params(key, in_features, out_features, is_first, omega_0):
    """Deterministic SIREN init (matches SineLayer.init_weights semantics)."""
    kw, kb = jax.random.split(key)
    if is_first:
        lim = 1.0 / in_features
    else:
        lim = math.sqrt(6.0 / in_features) / omega_0
    weight = jax.random.uniform(
        kw, (out_features, in_features), jnp.float32, minval=-lim, maxval=lim)
    # nn.Linear default bias init: U(-1/sqrt(in), 1/sqrt(in))
    blim = 1.0 / math.sqrt(in_features)
    bias = jax.random.uniform(
        kb, (out_features,), jnp.float32, minval=-blim, maxval=blim)
    return weight, bias


if __name__ == "__main__":
    key = jax.random.PRNGKey(0)
    k_x, k_p, k_x2, k_p2 = jax.random.split(key, 4)

    # Case 1: lane-aligned SIREN-like sizes (no padding / slicing needed).
    batch, in_features, out_features = 256, 64, 128
    omega_0 = 30.0
    x = jax.random.normal(k_x, (batch, in_features), jnp.float32)
    weight, bias = init_sine_layer_params(k_p, in_features, out_features,
                                          is_first=True, omega_0=omega_0)
    w_t, b2, n_out = prepare_sine_layer_params(weight, bias, omega_0)
    out = sine_layer_apply(x, w_t, b2, n_out)
    out = jax.block_until_ready(out)
    ref = jnp.sin(omega_0 * (x @ weight.T + bias))
    assert out.shape == (batch, out_features)
    assert jnp.allclose(out, ref, atol=1e-4, rtol=1e-4), \
        f"max err {jnp.max(jnp.abs(out - ref))}"

    # Case 2: non-aligned out_features + ragged row tiling (padding + mask path).
    batch2, in2, nout2 = 200, 32, 40
    x2 = jax.random.normal(k_x2, (batch2, in2), jnp.float32)
    w2, bsd2 = init_sine_layer_params(k_p2, in2, nout2,
                                      is_first=False, omega_0=omega_0)
    out2 = sine_layer(x2, w2, bsd2, omega_0, tm=128)   # cdiv grid, masked tail
    out2 = jax.block_until_ready(out2)
    ref2 = jnp.sin(omega_0 * (x2 @ w2.T + bsd2))
    assert out2.shape == (batch2, nout2)
    assert jnp.allclose(out2, ref2, atol=1e-4, rtol=1e-4), \
        f"max err {jnp.max(jnp.abs(out2 - ref2))}"

    print("KERNEL_OK")
</pallas_src>

<mosaic_0001>
module attributes {stable_mosaic.version = 11 : i64} {
  func.func @sine_layer_kernel(%arg0: i32, %arg1: memref<256x64xf32, #tpu.memory_space<vmem>>, %arg2: memref<64x128xf32, #tpu.memory_space<vmem>>, %arg3: memref<1x128xf32, #tpu.memory_space<vmem>>, %arg4: memref<256x128xf32, #tpu.memory_space<vmem>>) attributes {dimension_semantics = [#tpu.dimension_semantics<parallel>], iteration_bounds = array<i64: 1>, scalar_prefetch = 0 : i64, scratch_operands = 0 : i64, tpu.core_type = #tpu.core_type<tc>, window_params = [{transform_indices = @transform_0, window_bounds = array<i64: 256, 64>}, {pipeline_mode = #tpu.pipeline_mode<synchronous>, transform_indices = @transform_1, window_bounds = array<i64: 64, 128>}, {pipeline_mode = #tpu.pipeline_mode<synchronous>, transform_indices = @transform_2, window_bounds = array<i64: 1, 128>}, {transform_indices = @transform_3, window_bounds = array<i64: 256, 128>}]} {
    %c0 = arith.constant 0 : index
    %c0_0 = arith.constant 0 : index
    %0 = vector.load %arg1[%c0, %c0_0] : memref<256x64xf32, #tpu.memory_space<vmem>>, vector<256x64xf32>
    %c0_1 = arith.constant 0 : index
    %c0_2 = arith.constant 0 : index
    %1 = vector.load %arg2[%c0_1, %c0_2] : memref<64x128xf32, #tpu.memory_space<vmem>>, vector<64x128xf32>
    %cst = arith.constant dense<0.000000e+00> : vector<256x128xf32>
    %2 = tpu.matmul %0, %1, %cst {dimension_numbers = #tpu.dot_dimension_numbers<[1], [0], [0], [1], [0, 0, 1, 1], [], []>} : vector<256x64xf32>, vector<64x128xf32>, vector<256x128xf32> -> vector<256x128xf32>
    %c0_3 = arith.constant 0 : index
    %c0_4 = arith.constant 0 : index
    %3 = vector.load %arg3[%c0_3, %c0_4] : memref<1x128xf32, #tpu.memory_space<vmem>>, vector<1x128xf32>
    %4 = vector.broadcast %3 : vector<1x128xf32> to vector<256x128xf32>
    %5 = arith.addf %2, %4 : vector<256x128xf32>
    %6 = math.sin %5 : vector<256x128xf32>
    %c0_5 = arith.constant 0 : index
    %c0_6 = arith.constant 0 : index
    %7 = vector.load %arg4[%c0_5, %c0_6] : memref<256x128xf32, #tpu.memory_space<vmem>>, vector<256x128xf32>
    tpu.vector_store %arg4[%c0_5, %c0_6], %6 {strides = array<i32>} : memref<256x128xf32, #tpu.memory_space<vmem>>, vector<256x128xf32>,
    return
  }
  func.func @transform_0(%arg0: i32) -> (i32, i32) {
    %c0_i32 = arith.constant 0 : i32
    %c0_i32_0 = arith.constant 0 : i32
    return %arg0, %c0_i32 : i32, i32
  }
  func.func @transform_1(%arg0: i32) -> (i32, i32) {
    %c0_i32 = arith.constant 0 : i32
    %c0_i32_0 = arith.constant 0 : i32
    %c0_i32_1 = arith.constant 0 : i32
    return %c0_i32, %c0_i32_0 : i32, i32
  }
  func.func @transform_2(%arg0: i32) -> (i32, i32) {
    %c0_i32 = arith.constant 0 : i32
    %c0_i32_0 = arith.constant 0 : i32
    %c0_i32_1 = arith.constant 0 : i32
    return %c0_i32, %c0_i32_0 : i32, i32
  }
  func.func @transform_3(%arg0: i32) -> (i32, i32) {
    %c0_i32 = arith.constant 0 : i32
    %c0_i32_0 = arith.constant 0 : i32
    return %arg0, %c0_i32 : i32, i32
  }
}

</mosaic_0001>

<llo_original>
// kernel: tpu_custom_call.1
$region0: #{tpu_custom_call.1}
  #allocation0 [shape = 'u32[]', space=smem, size = 0x4, offset = 0x4, fixed_abs, tag = 'smem constant byte address 0x4 - core index']
  #allocation1 [shape = 'u32[144,128]{1,0:T(1,128)}', space=vmem, size = 0x12000, scoped, tag = 'internal scratch']
  %s0 = inlined_call_operand.vmem [shape: f32[256,64], index: 0, kind: input, shape index: {}]
  %s1 = inlined_call_operand.vmem [shape: f32[64,128], index: 1, kind: input, shape index: {}]
  %s2 = inlined_call_operand.vmem [shape: f32[1,128], index: 2, kind: input, shape index: {}]
  %s3 = inlined_call_operand.hbm [shape: f32[256,128], index: 3, kind: output, shape index: {}]
  %s4 = sld [smem:[#allocation0]]
  $region22: #{tpu_custom_call.1} parent=0
    _
  %s6 = ssub.s32 1, %s4
  %s7 = scalar_select 0, %s6, %s4
  $region1: #{tpu_custom_call.1} parent=0
    #allocation2 [shape = 'u8[131072]{0}', space=vmem, size = 0x20000, scoped, tag = 'output window, operand 0, single buffered']
    #allocation3 [shape = 's32[1]{0}', space=sflag, size = 0x4, scoped, tag = 'scoped memory for tpu_custom_call.1']
    %8 = vsyncpa [#allocation3], 0
    // Predicated region
    $region2: #{tpu_custom_call.1} parent=1 // pred_check
      _
    $region3: #{tpu_custom_call.1} parent=1 // pred_check_branch
      %10 = sbr.rel (0) target = $region5
    $region4: #{tpu_custom_call.1} parent=1 // pred_region
      _
    $region5: #{tpu_custom_call.1} parent=1 // pred_fallthru
      _
    // Predicated region
    $region6: #{tpu_custom_call.1} parent=1 // pred_check
      _
    $region7: #{tpu_custom_call.1} parent=1 // pred_check_branch
      %12 = sbr.rel (0) target = $region9
    $region8: #{tpu_custom_call.1} parent=1 // pred_region
      _
    $region9: #{tpu_custom_call.1} parent=1 // pred_fallthru
      _
    // Predicated region
    $region10: #{tpu_custom_call.1} parent=1 // pred_check
      _
    $region11: #{tpu_custom_call.1} parent=1 // pred_check_branch
      %14 = sbr.rel (0) target = $region13
    $region12: #{tpu_custom_call.1} parent=1 // pred_region
      _
    $region13: #{tpu_custom_call.1} parent=1 // pred_fallthru
      _
    %v15 = vld [vmem:[%s0] sm:$0xff]
    %v16 = vld [vmem:[%s0 + $0x8] sm:$0xff]
    %v17 = vld [vmem:[%s0 + $0x10] sm:$0xff]
    %v18 = vld [vmem:[%s0 + $0x18] sm:$0xff]
    %v19 = vld [vmem:[%s0 + $0x20] sm:$0xff]
    %v20 = vld [vmem:[%s0 + $0x28] sm:$0xff]
    %v21 = vld [vmem:[%s0 + $0x30] sm:$0xff]
    %v22 = vld [vmem:[%s0 + $0x38] sm:$0xff]
    %v23 = vld [vmem:[%s0 + $0x40] sm:$0xff]
    %v24 = vld [vmem:[%s0 + $0x48] sm:$0xff]
    %v25 = vld [vmem:[%s0 + $0x50] sm:$0xff]
    %v26 = vld [vmem:[%s0 + $0x58] sm:$0xff]
    %v27 = vld [vmem:[%s0 + $0x60] sm:$0xff]
    %v28 = vld [vmem:[%s0 + $0x68] sm:$0xff]
    %v29 = vld [vmem:[%s0 + $0x70] sm:$0xff]
    %v30 = vld [vmem:[%s0 + $0x78] sm:$0xff]
    %v31 = vld [vmem:[%s0 + $0x80] sm:$0xff]
    %v32 = vld [vmem:[%s0 + $0x88] sm:$0xff]
    %v33 = vld [vmem:[%s0 + $0x90] sm:$0xff]
    %v34 = vld [vmem:[%s0 + $0x98] sm:$0xff]
    %v35 = vld [vmem:[%s0 + $0xa0] sm:$0xff]
    %v36 = vld [vmem:[%s0 + $0xa8] sm:$0xff]
    %v37 = vld [vmem:[%s0 + $0xb0] sm:$0xff]
    %v38 = vld [vmem:[%s0 + $0xb8] sm:$0xff]
    %v39 = vld [vmem:[%s0 + $0xc0] sm:$0xff]
    %v40 = vld [vmem:[%s0 + $0xc8] sm:$0xff]
    %v41 = vld [vmem:[%s0 + $0xd0] sm:$0xff]
    %v42 = vld [vmem:[%s0 + $0xd8] sm:$0xff]
    %v43 = vld [vmem:[%s0 + $0xe0] sm:$0xff]
    %v44 = vld [vmem:[%s0 + $0xe8] sm:$0xff]
    %v45 = vld [vmem:[%s0 + $0xf0] sm:$0xff]
    %v46 = vld [vmem:[%s0 + $0xf8] sm:$0xff]
    %v47 = vld [vmem:[%s1] sm:$0xff]
    %v48 = vld [vmem:[%s1 + $0x8] sm:$0xff]
    %v49 = vld [vmem:[%s1 + $0x10] sm:$0xff]
    %v50 = vld [vmem:[%s1 + $0x18] sm:$0xff]
    %v51 = vld [vmem:[%s1 + $0x20] sm:$0xff]
    %v52 = vld [vmem:[%s1 + $0x28] sm:$0xff]
    %v53 = vld [vmem:[%s1 + $0x30] sm:$0xff]
    %v54 = vld [vmem:[%s1 + $0x38] sm:$0xff]
    %v55 = vld [vmem:[%s2] sm:$0x1]
    %v57 = vlaneseq
    %v58 = vshrl.u32 %v57, 7
    %v59 = vsub.s32 0, %v58
    %v60 = vrot.slane %v55, %v59
    %vm62 = vcmask 523264
    %v64 = vsel %vm62, %v15, 0
    %v67 = vsel %vm62, %v16, 0
    %v70 = vsel %vm62, %v17, 0
    %v73 = vsel %vm62, %v18, 0
    %v76 = vsel %vm62, %v19, 0
    %v79 = vsel %vm62, %v20, 0
    %v82 = vsel %vm62, %v21, 0
    %v85 = vsel %vm62, %v22, 0
    %v88 = vsel %vm62, %v23, 0
    %v91 = vsel %vm62, %v24, 0
    %v94 = vsel %vm62, %v25, 0
    %v97 = vsel %vm62, %v26, 0
    %v100 = vsel %vm62, %v27, 0
    %v103 = vsel %vm62, %v28, 0
    %v106 = vsel %vm62, %v29, 0
    %v109 = vsel %vm62, %v30, 0
    %v112 = vsel %vm62, %v31, 0
    %v115 = vsel %vm62, %v32, 0
    %v118 = vsel %vm62, %v33, 0
    %v121 = vsel %vm62, %v34, 0
    %v124 = vsel %vm62, %v35, 0
    %v127 = vsel %vm62, %v36, 0
    %v130 = vsel %vm62, %v37, 0
    %v133 = vsel %vm62, %v38, 0
    %v136 = vsel %vm62, %v39, 0
    %v139 = vsel %vm62, %v40, 0
    %v142 = vsel %vm62, %v41, 0
    %v145 = vsel %vm62, %v42, 0
    %v148 = vsel %vm62, %v43, 0
    %v151 = vsel %vm62, %v44, 0
    %v154 = vsel %vm62, %v45, 0
    %v157 = vsel %vm62, %v46, 0
    %159 = vmatprep.subr.mxu0 0.0
    %160 = vmatpush1.msra.mxu0 0.0
    %161 = vmatprep.subr.mxu0 0.0
    %162 = vmatpush1.msra.mxu0 0.0
    %163 = vmatprep.subr.mxu0 0.0
    %164 = vmatpush1.msra.mxu0 0.0
    %165 = vmatprep.subr.mxu0 0.0
    %166 = vmatpush1.msra.mxu0 0.0
    %167 = vmatprep.subr.mxu0 0.0
    %168 = vmatpush1.msra.mxu0 0.0
    %169 = vmatprep.subr.mxu0 0.0
    %170 = vmatpush1.msra.mxu0 0.0
    %171 = vmatprep.subr.mxu0 0.0
    %172 = vmatpush1.msra.mxu0 0.0
    %173 = vmatprep.subr.mxu0 0.0
    %174 = vmatpush1.msra.mxu0 0.0
    %175 = vmatprep.subr.mxu0 0.0
    %176 = vmatpush1.msra.mxu0 %v54
    %177 = vmatprep.subr.mxu0 0.0
    %178 = vmatpush1.msra.mxu0 %v53
    %179 = vmatprep.subr.mxu0 0.0
    %180 = vmatpush1.msra.mxu0 %v52
    %181 = vmatprep.subr.mxu0 0.0
    %182 = vmatpush1.msra.mxu0 %v51
    %183 = vmatprep.subr.mxu0 0.0
    %184 = vmatpush1.msra.mxu0 %v50
    %185 = vmatprep.subr.mxu0 0.0
    %186 = vmatpush1.msra.mxu0 %v49
    %187 = vmatprep.subr.mxu0 0.0
    %188 = vmatpush1.msra.mxu0 %v48
    %189 = vmatprep.subr.mxu0 0.0
    %190 = vmatpush1.msra.mxu0 %v47
    %191 = vmatprep.subr.mxu0 0.0
    %192 = vmatpush2.msra.mxu0 0.0
    %193 = vmatprep.subr.mxu0 0.0
    %194 = vmatpush2.msra.mxu0 0.0
    %195 = vmatprep.subr.mxu0 0.0
    %196 = vmatpush2.msra.mxu0 0.0
    %197 = vmatprep.subr.mxu0 0.0
    %198 = vmatpush2.msra.mxu0 0.0
    %199 = vmatprep.subr.mxu0 0.0
    %200 = vmatpush2.msra.mxu0 0.0
    %201 = vmatprep.subr.mxu0 0.0
    %202 = vmatpush2.msra.mxu0 0.0
    %203 = vmatprep.subr.mxu0 0.0
    %204 = vmatpush2.msra.mxu0 0.0
    %205 = vmatprep.subr.mxu0 0.0
    %206 = vmatpush2.msra.mxu0 0.0
    %207 = vmatprep.subr.mxu0 0.0
    %208 = vmatpush2.msra.mxu0 0.0
    %209 = vmatprep.subr.mxu0 0.0
    %210 = vmatpush2.msra.mxu0 0.0
    %211 = vmatprep.subr.mxu0 0.0
    %212 = vmatpush2.msra.mxu0 0.0
    %213 = vmatprep.subr.mxu0 0.0
    %214 = vmatpush2.msra.mxu0 0.0
    %215 = vmatprep.subr.mxu0 0.0
    %216 = vmatpush2.msra.mxu0 0.0
    %217 = vmatprep.subr.mxu0 0.0
    %218 = vmatpush2.msra.mxu0 0.0
    %219 = vmatprep.subr.mxu0 0.0
    %220 = vmatpush2.msra.mxu0 0.0
    %221 = vmatprep.subr.mxu0 0.0
    %222 = vmatpush2.msra.mxu0 0.0
    %223 = vmatprep.mubr.f32.mxu0 0.0
    %224 = vmatmul.mubr.f32.gmra.mxu0 %v64
    %v225 = vpop.f32.mrf.mxu0
    %v226 = vadd.f32 %v60, %v225
    %v227 = vpop.f32.mrf.mxu0
    %228 = vmatprep.mubr.f32.mxu0 0.0
    %229 = vmatmul.mubr.f32.gmra.mxu0 %v67
    %v230 = vpop.f32.mrf.mxu0
    %v231 = vadd.f32 %v60, %v230
    %v232 = vpop.f32.mrf.mxu0
    %233 = vmatprep.mubr.f32.mxu0 0.0
    %234 = vmatmul.mubr.f32.gmra.mxu0 %v70
    %v235 = vpop.f32.mrf.mxu0
    %v236 = vadd.f32 %v60, %v235
    %v237 = vpop.f32.mrf.mxu0
    %238 = vmatprep.mubr.f32.mxu0 0.0
    %239 = vmatmul.mubr.f32.gmra.mxu0 %v73
    %v240 = vpop.f32.mrf.mxu0
    %v241 = vadd.f32 %v60, %v240
    %v242 = vpop.f32.mrf.mxu0
    %243 = vmatprep.mubr.f32.mxu0 0.0
    %244 = vmatmul.mubr.f32.gmra.mxu0 %v76
    %v245 = vpop.f32.mrf.mxu0
    %v246 = vadd.f32 %v60, %v245
    %v247 = vpop.f32.mrf.mxu0
    %248 = vmatprep.mubr.f32.mxu0 0.0
    %249 = vmatmul.mubr.f32.gmra.mxu0 %v79
    %v250 = vpop.f32.mrf.mxu0
    %v251 = vadd.f32 %v60, %v250
    %v252 = vpop.f32.mrf.mxu0
    %253 = vmatprep.mubr.f32.mxu0 0.0
    %254 = vmatmul.mubr.f32.gmra.mxu0 %v82
    %v255 = vpop.f32.mrf.mxu0
    %v256 = vadd.f32 %v60, %v255
    %v257 = vpop.f32.mrf.mxu0
    %258 = vmatprep.mubr.f32.mxu0 0.0
    %259 = vmatmul.mubr.f32.gmra.mxu0 %v85
    %v260 = vpop.f32.mrf.mxu0
    %v261 = vadd.f32 %v60, %v260
    %v262 = vpop.f32.mrf.mxu0
    %263 = vmatprep.mubr.f32.mxu0 0.0
    %264 = vmatmul.mubr.f32.gmra.mxu0 %v88
    %v265 = vpop.f32.mrf.mxu0
    %v266 = vadd.f32 %v60, %v265
    %v267 = vpop.f32.mrf.mxu0
    %268 = vmatprep.mubr.f32.mxu0 0.0
    %269 = vmatmul.mubr.f32.gmra.mxu0 %v91
    %v270 = vpop.f32.mrf.mxu0
    %v271 = vadd.f32 %v60, %v270
    %v272 = vpop.f32.mrf.mxu0
    %273 = vmatprep.mubr.f32.mxu0 0.0
    %274 = vmatmul.mubr.f32.gmra.mxu0 %v94
    %v275 = vpop.f32.mrf.mxu0
    %v276 = vadd.f32 %v60, %v275
    %v277 = vpop.f32.mrf.mxu0
    %278 = vmatprep.mubr.f32.mxu0 0.0
    %279 = vmatmul.mubr.f32.gmra.mxu0 %v97
    %v280 = vpop.f32.mrf.mxu0
    %v281 = vadd.f32 %v60, %v280
    %v282 = vpop.f32.mrf.mxu0
    %283 = vmatprep.mubr.f32.mxu0 0.0
    %284 = vmatmul.mubr.f32.gmra.mxu0 %v100
    %v285 = vpop.f32.mrf.mxu0
    %v286 = vadd.f32 %v60, %v285
    %v287 = vpop.f32.mrf.mxu0
    %288 = vmatprep.mubr.f32.mxu0 0.0
    %289 = vmatmul.mubr.f32.gmra.mxu0 %v103
    %v290 = vpop.f32.mrf.mxu0
    %v291 = vadd.f32 %v60, %v290
    %v292 = vpop.f32.mrf.mxu0
    %293 = vmatprep.mubr.f32.mxu0 0.0
    %294 = vmatmul.mubr.f32.gmra.mxu0 %v106
    %v295 = vpop.f32.mrf.mxu0
    %v296 = vadd.f32 %v60, %v295
    %v297 = vpop.f32.mrf.mxu0
    %298 = vmatprep.mubr.f32.mxu0 0.0
    %299 = vmatmul.mubr.f32.gmra.mxu0 %v109
    %v300 = vpop.f32.mrf.mxu0
    %v301 = vadd.f32 %v60, %v300
    %v302 = vpop.f32.mrf.mxu0
    %303 = vmatprep.mubr.f32.mxu0 0.0
    %304 = vmatmul.mubr.f32.gmra.mxu0 %v112
    %v305 = vpop.f32.mrf.mxu0
    %v306 = vadd.f32 %v60, %v305
    %v307 = vpop.f32.mrf.mxu0
    %308 = vmatprep.mubr.f32.mxu0 0.0
    %309 = vmatmul.mubr.f32.gmra.mxu0 %v115
    %v310 = vpop.f32.mrf.mxu0
    %v311 = vadd.f32 %v60, %v310
    %v312 = vpop.f32.mrf.mxu0
    %313 = vmatprep.mubr.f32.mxu0 0.0
    %314 = vmatmul.mubr.f32.gmra.mxu0 %v118
    %v315 = vpop.f32.mrf.mxu0
    %v316 = vadd.f32 %v60, %v315
    %v317 = vpop.f32.mrf.mxu0
    %318 = vmatprep.mubr.f32.mxu0 0.0
    %319 = vmatmul.mubr.f32.gmra.mxu0 %v121
    %v320 = vpop.f32.mrf.mxu0
    %v321 = vadd.f32 %v60, %v320
    %v322 = vpop.f32.mrf.mxu0
    %323 = vmatprep.mubr.f32.mxu0 0.0
    %324 = vmatmul.mubr.f32.gmra.mxu0 %v124
    %v325 = vpop.f32.mrf.mxu0
    %v326 = vadd.f32 %v60, %v325
    %v327 = vpop.f32.mrf.mxu0
    %328 = vmatprep.mubr.f32.mxu0 0.0
    %329 = vmatmul.mubr.f32.gmra.mxu0 %v127
    %v330 = vpop.f32.mrf.mxu0
    %v331 = vadd.f32 %v60, %v330
    %v332 = vpop.f32.mrf.mxu0
    %333 = vmatprep.mubr.f32.mxu0 0.0
    %334 = vmatmul.mubr.f32.gmra.mxu0 %v130
    %v335 = vpop.f32.mrf.mxu0
    %v336 = vadd.f32 %v60, %v335
    %v337 = vpop.f32.mrf.mxu0
    %338 = vmatprep.mubr.f32.mxu0 0.0
    %339 = vmatmul.mubr.f32.gmra.mxu0 %v133
    %v340 = vpop.f32.mrf.mxu0
    %v341 = vadd.f32 %v60, %v340
    %v342 = vpop.f32.mrf.mxu0
    %343 = vmatprep.mubr.f32.mxu0 0.0
    %344 = vmatmul.mubr.f32.gmra.mxu0 %v136
    %v345 = vpop.f32.mrf.mxu0
    %v346 = vadd.f32 %v60, %v345
    %v347 = vpop.f32.mrf.mxu0
    %348 = vmatprep.mubr.f32.mxu0 0.0
    %349 = vmatmul.mubr.f32.gmra.mxu0 %v139
    %v350 = vpop.f32.mrf.mxu0
    %v351 = vadd.f32 %v60, %v350
    %v352 = vpop.f32.mrf.mxu0
    %353 = vmatprep.mubr.f32.mxu0 0.0
    %354 = vmatmul.mubr.f32.gmra.mxu0 %v142
    %v355 = vpop.f32.mrf.mxu0
    %v356 = vadd.f32 %v60, %v355
    %v357 = vpop.f32.mrf.mxu0
    %358 = vmatprep.mubr.f32.mxu0 0.0
    %359 = vmatmul.mubr.f32.gmra.mxu0 %v145
    %v360 = vpop.f32.mrf.mxu0
    %v361 = vadd.f32 %v60, %v360
    %v362 = vpop.f32.mrf.mxu0
    %363 = vmatprep.mubr.f32.mxu0 0.0
    %364 = vmatmul.mubr.f32.gmra.mxu0 %v148
    %v365 = vpop.f32.mrf.mxu0
    %v366 = vadd.f32 %v60, %v365
    %v367 = vpop.f32.mrf.mxu0
    %368 = vmatprep.mubr.f32.mxu0 0.0
    %369 = vmatmul.mubr.f32.gmra.mxu0 %v151
    %v370 = vpop.f32.mrf.mxu0
    %v371 = vadd.f32 %v60, %v370
    %v372 = vpop.f32.mrf.mxu0
    %373 = vmatprep.mubr.f32.mxu0 0.0
    %374 = vmatmul.mubr.f32.gmra.mxu0 %v154
    %v375 = vpop.f32.mrf.mxu0
    %v376 = vadd.f32 %v60, %v375
    %v377 = vpop.f32.mrf.mxu0
    %378 = vmatprep.mubr.f32.mxu0 0.0
    %379 = vmatmul.mubr.f32.gmra.mxu0 %v157
    %v380 = vpop.f32.mrf.mxu0
    %v381 = vadd.f32 %v60, %v380
    %v382 = vpop.f32.mrf.mxu0
    %383 = vdwg.mxu0
    %v384 = vand.u32 2147483647, %v226
    %vm385 = vcmp.le.f32.partialorder %v384, 0.7853982
    %vm386 = vcmp.lt.s32.totalorder %v226, 0
    %v387 = vand.u32 %v226, 2139095040
    %v388 = vshrl.u32 %v387, 23
    %v389 = vsub.s32 %v388, 127
    %v390 = vand.u32 2147483647, %v226
    %v391 = vand.u32 %v390, 8388607
    %v392 = vor.u32 %v391, 8388608
    %v393 = vsub.s32 0, %v392
    %v394 = vadd.s32 %v389, 1
    %vm395 = vcmp.gt.s32.totalorder %v394, 0
    %v396 = vsel %vm395, %v394, 0
    %v397 = vshrl.u32 %v396, 5
    %v398 = vand.u32 %v396, 31
    %v399 = vsub.s32 32, %v398
    %v400 = vshrl.u32 683565275, %v399
    %v401 = vshll.u32 683565275, %v398
    %v402 = vshrl.u32 2475754826, %v399
    %v403 = vor.u32 %v401, %v402
    %v404 = vshll.u32 2475754826, %v398
    %v405 = vshrl.u32 2131351028, %v399
    %v406 = vor.u32 %v404, %v405
    %v407 = vshll.u32 2131351028, %v398
    %v408 = vshrl.u32 2102212464, %v399
    %v409 = vor.u32 %v407, %v408
    %v410 = vshll.u32 2102212464, %v398
    %v411 = vshrl.u32 920167782, %v399
    %v412 = vor.u32 %v410, %v411
    %v413 = vshll.u32 920167782, %v398
    %v414 = vshrl.u32 1326507024, %v399
    %v415 = vor.u32 %v413, %v414
    %vm416 = vcmp.lt.s32.totalorder %v397, 1
    %vm417 = vcmp.lt.s32.totalorder %v397, 2
    %vm418 = vcmp.lt.s32.totalorder %v397, 3
    %vm419 = vcmp.lt.s32.totalorder %v397, 4
    %v420 = vsel %vm416, %v400, %v403
    %v421 = vsel %vm419, %v409, 2102212464
    %v422 = vsel %vm418, %v406, %v421
    %v423 = vsel %vm417, %v420, %v422
    %v424 = vsel %vm416, %v403, %v406
    %v425 = vsel %vm419, %v412, 920167782
    %v426 = vsel %vm418, %v409, %v425
    %v427 = vsel %vm417, %v424, %v426
    %v428 = vsel %vm416, %v406, %v409
    %v429 = vsel %vm419, %v415, 1326507024
    %v430 = vsel %vm418, %v412, %v429
    %v431 = vsel %vm417, %v428, %v430
    %v432 = vshll.u32 %v392, 8
    %v433 = vmul.u32.u64.compose %v432, %v431
    %v434 = vextract.low.u32 %v433
    %v435 = vextract.high.u32 %v433
    %v436 = vmul.u32.u64.compose %v432, %v427
    %v437 = vextract.low.u32 %v436
    %v438 = vextract.high.u32 %v436
    %v439 = vmul.u32 %v432, %v423
    %v440 = vadd.s32 %v435, %v437
    %vm441 = vc.u32 %v435, %v437
    %v442 = vadd.s32 %v438, 1
    %v443 = vsel %vm441, %v442, %v438
    %v444 = vadd.s32 %v439, %v443
    %v445 = vadd.s32 %v444, 536870912
    %v446 = vshrl.u32 %v445, 30
    %v447 = vshll.u32 %v446, 30
    %v448 = vsub.s32 %v444, %v447
    %vm449 = vcmp.lt.s32.totalorder %v448, 0
    %v450 = vsub.s32 0, %v448
    %v451 = vsel %vm449, %v450, %v448
    %v452 = vclz %v451
    %v453 = vsub.s32 %v452, 2
    %vm454 = vcmp.gt.s32.totalorder 0, %v453
    %v455 = vsel %vm454, 0, %v453
    %v456 = vsub.s32 32, %v455
    %v457 = vshll.u32 %v448, %v455
    %v458 = vshrl.u32 %v440, %v456
    %v459 = vor.u32 %v457, %v458
    %v460 = vsub.s32 4294967266, %v455
    %v461 = vadd.s32 %v460, 127
    %v462 = vshll.u32 %v461, 23
    %v463 = vor.u32 4788187, %v462
    %v464 = vand.u32 2147483647, %v463
    %v466 = vcvt.s32.f32 %v459
    %v467 = vmul.f32 %v466, %v464
    %v468 = vxor.u32 %v467, 2147483648
    %v469 = vsel %vm386, %v468, %v467
    %v470 = vsub.s32 4, %v446
    %v471 = vsel %vm386, %v470, %v446
    %v472 = vsel %vm385, %v226, %v469
    %v473 = vsel %vm385, 0, %v471
    %v474 = vcosq.f32.pop %v472
    %v475 = vsinq.f32.pop %v472
    %vm476 = vweird.f32 %v226
    %v477 = vadd.s32 %v473, 3
    %v478 = vand.u32 %v477, 3
    %vm479 = vcmp.lt.s32.totalorder %v478, 2
    %vm480 = vcmp.eq.s32.totalorder %v478, 0
    %v481 = vxor.u32 %v475, 2147483648
    %v482 = vsel %vm480, %v474, %v481
    %vm483 = vcmp.eq.s32.totalorder %v478, 2
    %v484 = vxor.u32 %v474, 2147483648
    %v485 = vsel %vm483, %v484, %v475
    %v486 = vsel %vm479, %v482, %v485
    %v487 = vsel %vm476, nan, %v486
    %v488 = vand.u32 2147483647, %v231
    %vm489 = vcmp.le.f32.partialorder %v488, 0.7853982
    %vm490 = vcmp.lt.s32.totalorder %v231, 0
    %v491 = vand.u32 %v231, 2139095040
    %v492 = vshrl.u32 %v491, 23
    %v493 = vsub.s32 %v492, 127
    %v494 = vand.u32 2147483647, %v231
    %v495 = vand.u32 %v494, 8388607
    %v496 = vor.u32 %v495, 8388608
    %v497 = vsub.s32 0, %v496
    %v498 = vadd.s32 %v493, 1
    %vm499 = vcmp.gt.s32.totalorder %v498, 0
    %v500 = vsel %vm499, %v498, 0
    %v501 = vshrl.u32 %v500, 5
    %v502 = vand.u32 %v500, 31
    %v503 = vsub.s32 32, %v502
    %v504 = vshrl.u32 683565275, %v503
    %v505 = vshll.u32 683565275, %v502
    %v506 = vshrl.u32 2475754826, %v503
    %v507 = vor.u32 %v505, %v506
    %v508 = vshll.u32 2475754826, %v502
    %v509 = vshrl.u32 2131351028, %v503
    %v510 = vor.u32 %v508, %v509
    %v511 = vshll.u32 2131351028, %v502
    %v512 = vshrl.u32 2102212464, %v503
    %v513 = vor.u32 %v511, %v512
    %v514 = vshll.u32 2102212464, %v502
    %v515 = vshrl.u32 920167782, %v503
    %v516 = vor.u32 %v514, %v515
    %v517 = vshll.u32 920167782, %v502
    %v518 = vshrl.u32 1326507024, %v503
    %v519 = vor.u32 %v517, %v518
    %vm520 = vcmp.lt.s32.totalorder %v501, 1
    %vm521 = vcmp.lt.s32.totalorder %v501, 2
    %vm522 = vcmp.lt.s32.totalorder %v501, 3
    %vm523 = vcmp.lt.s32.totalorder %v501, 4
    %v524 = vsel %vm520, %v504, %v507
    %v525 = vsel %vm523, %v513, 2102212464
    %v526 = vsel %vm522, %v510, %v525
    %v527 = vsel %vm521, %v524, %v526
    %v528 = vsel %vm520, %v507, %v510
    %v529 = vsel %vm523, %v516, 920167782
    %v530 = vsel %vm522, %v513, %v529
    %v531 = vsel %vm521, %v528, %v530
    %v532 = vsel %vm520, %v510, %v513
    %v533 = vsel %vm523, %v519, 1326507024
    %v534 = vsel %vm522, %v516, %v533
    %v535 = vsel %vm521, %v532, %v534
    %v536 = vshll.u32 %v496, 8
    %v537 = vmul.u32.u64.compose %v536, %v535
    %v538 = vextract.low.u32 %v537
    %v539 = vextract.high.u32 %v537
    %v540 = vmul.u32.u64.compose %v536, %v531
    %v541 = vextract.low.u32 %v540
    %v542 = vextract.high.u32 %v540
    %v543 = vmul.u32 %v536, %v527
    %v544 = vadd.s32 %v539, %v541
    %vm545 = vc.u32 %v539, %v541
    %v546 = vadd.s32 %v542, 1
    %v547 = vsel %vm545, %v546, %v542
    %v548 = vadd.s32 %v543, %v547
    %v549 = vadd.s32 %v548, 536870912
    %v550 = vshrl.u32 %v549, 30
    %v551 = vshll.u32 %v550, 30
    %v552 = vsub.s32 %v548, %v551
    %vm553 = vcmp.lt.s32.totalorder %v552, 0
    %v554 = vsub.s32 0, %v552
    %v555 = vsel %vm553, %v554, %v552
    %v556 = vclz %v555
    %v557 = vsub.s32 %v556, 2
    %vm558 = vcmp.gt.s32.totalorder 0, %v557
    %v559 = vsel %vm558, 0, %v557
    %v560 = vsub.s32 32, %v559
    %v561 = vshll.u32 %v552, %v559
    %v562 = vshrl.u32 %v544, %v560
    %v563 = vor.u32 %v561, %v562
    %v564 = vsub.s32 4294967266, %v559
    %v565 = vadd.s32 %v564, 127
    %v566 = vshll.u32 %v565, 23
    %v567 = vor.u32 4788187, %v566
    %v568 = vand.u32 2147483647, %v567
    %v570 = vcvt.s32.f32 %v563
    %v571 = vmul.f32 %v570, %v568
    %v572 = vxor.u32 %v571, 2147483648
    %v573 = vsel %vm490, %v572, %v571
    %v574 = vsub.s32 4, %v550
    %v575 = vsel %vm490, %v574, %v550
    %v576 = vsel %vm489, %v231, %v573
    %v577 = vsel %vm489, 0, %v575
    %v578 = vcosq.f32.pop %v576
    %v579 = vsinq.f32.pop %v576
    %vm580 = vweird.f32 %v231
    %v581 = vadd.s32 %v577, 3
    %v582 = vand.u32 %v581, 3
    %vm583 = vcmp.lt.s32.totalorder %v582, 2
    %vm584 = vcmp.eq.s32.totalorder %v582, 0
    %v585 = vxor.u32 %v579, 2147483648
    %v586 = vsel %vm584, %v578, %v585
    %vm587 = vcmp.eq.s32.totalorder %v582, 2
    %v588 = vxor.u32 %v578, 2147483648
    %v589 = vsel %vm587, %v588, %v579
    %v590 = vsel %vm583, %v586, %v589
    %v591 = vsel %vm580, nan, %v590
    %v592 = vand.u32 2147483647, %v236
    %vm593 = vcmp.le.f32.partialorder %v592, 0.7853982
    %vm594 = vcmp.lt.s32.totalorder %v236, 0
    %v595 = vand.u32 %v236, 2139095040
    %v596 = vshrl.u32 %v595, 23
    %v597 = vsub.s32 %v596, 127
    %v598 = vand.u32 2147483647, %v236
    %v599 = vand.u32 %v598, 8388607
    %v600 = vor.u32 %v599, 8388608
    %v601 = vsub.s32 0, %v600
    %v602 = vadd.s32 %v597, 1
    %vm603 = vcmp.gt.s32.totalorder %v602, 0
    %v604 = vsel %vm603, %v602, 0
    %v605 = vshrl.u32 %v604, 5
    %v606 = vand.u32 %v604, 31
    %v607 = vsub.s32 32, %v606
    %v608 = vshrl.u32 683565275, %v607
    %v609 = vshll.u32 683565275, %v606
    %v610 = vshrl.u32 2475754826, %v607
    %v611 = vor.u32 %v609, %v610
    %v612 = vshll.u32 2475754826, %v606
    %v613 = vshrl.u32 2131351028, %v607
    %v614 = vor.u32 %v612, %v613
    %v615 = vshll.u32 2131351028, %v606
    %v616 = vshrl.u32 2102212464, %v607
    %v617 = vor.u32 %v615, %v616
    %v618 = vshll.u32 2102212464, %v606
    %v619 = vshrl.u32 920167782, %v607
    %v620 = vor.u32 %v618, %v619
    %v621 = vshll.u32 920167782, %v606
    %v622 = vshrl.u32 1326507024, %v607
    %v623 = vor.u32 %v621, %v622
    %vm624 = vcmp.lt.s32.totalorder %v605, 1
    %vm625 = vcmp.lt.s32.totalorder %v605, 2
    %vm626 = vcmp.lt.s32.totalorder %v605, 3
    %vm627 = vcmp.lt.s32.totalorder %v605, 4
    %v628 = vsel %vm624, %v608, %v611
    %v629 = vsel %vm627, %v617, 2102212464
    %v630 = vsel %vm626, %v614, %v629
    %v631 = vsel %vm625, %v628, %v630
    %v632 = vsel %vm624, %v611, %v614
    %v633 = vsel %vm627, %v620, 920167782
    %v634 = vsel %vm626, %v617, %v633
    %v635 = vsel %vm625, %v632, %v634
    %v636 = vsel %vm624, %v614, %v617
    %v637 = vsel %vm627, %v623, 1326507024
    %v638 = vsel %vm626, %v620, %v637
    %v639 = vsel %vm625, %v636, %v638
    %v640 = vshll.u32 %v600, 8
    %v641 = vmul.u32.u64.compose %v640, %v639
    %v642 = vextract.low.u32 %v641
    %v643 = vextract.high.u32 %v641
    %v644 = vmul.u32.u64.compose %v640, %v635
    %v645 = vextract.low.u32 %v644
    %v646 = vextract.high.u32 %v644
    %v647 = vmul.u32 %v640, %v631
    %v648 = vadd.s32 %v643, %v645
    %vm649 = vc.u32 %v643, %v645
    %v650 = vadd.s32 %v646, 1
    %v651 = vsel %vm649, %v650, %v646
    %v652 = vadd.s32 %v647, %v651
    %v653 = vadd.s32 %v652, 536870912
    %v654 = vshrl.u32 %v653, 30
    %v655 = vshll.u32 %v654, 30
    %v656 = vsub.s32 %v652, %v655
    %vm657 = vcmp.lt.s32.totalorder %v656, 0
    %v658 = vsub.s32 0, %v656
    %v659 = vsel %vm657, %v658, %v656
    %v660 = vclz %v659
    %v661 = vsub.s32 %v660, 2
    %vm662 = vcmp.gt.s32.totalorder 0, %v661
    %v663 = vsel %vm662, 0, %v661
    %v664 = vsub.s32 32, %v663
    %v665 = vshll.u32 %v656, %v663
    %v666 = vshrl.u32 %v648, %v664
    %v667 = vor.u32 %v665, %v666
    %v668 = vsub.s32 4294967266, %v663
    %v669 = vadd.s32 %v668, 127
    %v670 = vshll.u32 %v669, 23
    %v671 = vor.u32 4788187, %v670
    %v672 = vand.u32 2147483647, %v671
    %v674 = vcvt.s32.f32 %v667
    %v675 = vmul.f32 %v674, %v672
    %v676 = vxor.u32 %v675, 2147483648
    %v677 = vsel %vm594, %v676, %v675
    %v678 = vsub.s32 4, %v654
    %v679 = vsel %vm594, %v678, %v654
    %v680 = vsel %vm593, %v236, %v677
    %v681 = vsel %vm593, 0, %v679
    %v682 = vcosq.f32.pop %v680
    %v683 = vsinq.f32.pop %v680
    %vm684 = vweird.f32 %v236
    %v685 = vadd.s32 %v681, 3
    %v686 = vand.u32 %v685, 3
    %vm687 = vcmp.lt.s32.totalorder %v686, 2
    %vm688 = vcmp.eq.s32.totalorder %v686, 0
    %v689 = vxor.u32 %v683, 2147483648
    %v690 = vsel %vm688, %v682, %v689
    %vm691 = vcmp.eq.s32.totalorder %v686, 2
    %v692 = vxor.u32 %v682, 2147483648
    %v693 = vsel %vm691, %v692, %v683
    %v694 = vsel %vm687, %v690, %v693
    %v695 = vsel %vm684, nan, %v694
    %v696 = vand.u32 2147483647, %v241
    %vm697 = vcmp.le.f32.partialorder %v696, 0.7853982
    %vm698 = vcmp.lt.s32.totalorder %v241, 0
    %v699 = vand.u32 %v241, 2139095040
    %v700 = vshrl.u32 %v699, 23
    %v701 = vsub.s32 %v700, 127
    %v702 = vand.u32 2147483647, %v241
    %v703 = vand.u32 %v702, 8388607
    %v704 = vor.u32 %v703, 8388608
    %v705 = vsub.s32 0, %v704
    %v706 = vadd.s32 %v701, 1
    %vm707 = vcmp.gt.s32.totalorder %v706, 0
    %v708 = vsel %vm707, %v706, 0
    %v709 = vshrl.u32 %v708, 5
    %v710 = vand.u32 %v708, 31
    %v711 = vsub.s32 32, %v710
    %v712 = vshrl.u32 683565275, %v711
    %v713 = vshll.u32 683565275, %v710
    %v714 = vshrl.u32 2475754826, %v711
    %v715 = vor.u32 %v713, %v714
    %v716 = vshll.u32 2475754826, %v710
    %v717 = vshrl.u32 2131351028, %v711
    %v718 = vor.u32 %v716, %v717
    %v719 = vshll.u32 2131351028, %v710
    %v720 = vshrl.u32 2102212464, %v711
    %v721 = vor.u32 %v719, %v720
    %v722 = vshll.u32 2102212464, %v710
    %v723 = vshrl.u32 920167782, %v711
    %v724 = vor.u32 %v722, %v723
    %v725 = vshll.u32 920167782, %v710
    %v726 = vshrl.u32 1326507024, %v711
    %v727 = vor.u32 %v725, %v726
    %vm728 = vcmp.lt.s32.totalorder %v709, 1
    %vm729 = vcmp.lt.s32.totalorder %v709, 2
    %vm730 = vcmp.lt.s32.totalorder %v709, 3
    %vm731 = vcmp.lt.s32.totalorder %v709, 4
    %v732 = vsel %vm728, %v712, %v715
    %v733 = vsel %vm731, %v721, 2102212464
    %v734 = vsel %vm730, %v718, %v733
    %v735 = vsel %vm729, %v732, %v734
    %v736 = vsel %vm728, %v715, %v718
    %v737 = vsel %vm731, %v724, 920167782
    %v738 = vsel %vm730, %v721, %v737
    %v739 = vsel %vm729, %v736, %v738
    %v740 = vsel %vm728, %v718, %v721
    %v741 = vsel %vm731, %v727, 1326507024
    %v742 = vsel %vm730, %v724, %v741
    %v743 = vsel %vm729, %v740, %v742
    %v744 = vshll.u32 %v704, 8
    %v745 = vmul.u32.u64.compose %v744, %v743
    %v746 = vextract.low.u32 %v745
    %v747 = vextract.high.u32 %v745
    %v748 = vmul.u32.u64.compose %v744, %v739
    %v749 = vextract.low.u32 %v748
    %v750 = vextract.high.u32 %v748
    %v751 = vmul.u32 %v744, %v735
    %v752 = vadd.s32 %v747, %v749
    %vm753 = vc.u32 %v747, %v749
    %v754 = vadd.s32 %v750, 1
    %v755 = vsel %vm753, %v754, %v750
    %v756 = vadd.s32 %v751, %v755
    %v757 = vadd.s32 %v756, 536870912
    %v758 = vshrl.u32 %v757, 30
    %v759 = vshll.u32 %v758, 30
    %v760 = vsub.s32 %v756, %v759
    %vm761 = vcmp.lt.s32.totalorder %v760, 0
    %v762 = vsub.s32 0, %v760
    %v763 = vsel %vm761, %v762, %v760
    %v764 = vclz %v763
    %v765 = vsub.s32 %v764, 2
    %vm766 = vcmp.gt.s32.totalorder 0, %v765
    %v767 = vsel %vm766, 0, %v765
    %v768 = vsub.s32 32, %v767
    %v769 = vshll.u32 %v760, %v767
    %v770 = vshrl.u32 %v752, %v768
    %v771 = vor.u32 %v769, %v770
    %v772 = vsub.s32 4294967266, %v767
    %v773 = vadd.s32 %v772, 127
    %v774 = vshll.u32 %v773, 23
    %v775 = vor.u32 4788187, %v774
    %v776 = vand.u32 2147483647, %v775
    %v778 = vcvt.s32.f32 %v771
    %v779 = vmul.f32 %v778, %v776
    %v780 = vxor.u32 %v779, 2147483648
    %v781 = vsel %vm698, %v780, %v779
    %v782 = vsub.s32 4, %v758
    %v783 = vsel %vm698, %v782, %v758
    %v784 = vsel %vm697, %v241, %v781
    %v785 = vsel %vm697, 0, %v783
    %v786 = vcosq.f32.pop %v784
    %v787 = vsinq.f32.pop %v784
    %vm788 = vweird.f32 %v241
    %v789 = vadd.s32 %v785, 3
    %v790 = vand.u32 %v789, 3
    %vm791 = vcmp.lt.s32.totalorder %v790, 2
    %vm792 = vcmp.eq.s32.totalorder %v790, 0
    %v793 = vxor.u32 %v787, 2147483648
    %v794 = vsel %vm792, %v786, %v793
    %vm795 = vcmp.eq.s32.totalorder %v790, 2
    %v796 = vxor.u32 %v786, 2147483648
    %v797 = vsel %vm795, %v796, %v787
    %v798 = vsel %vm791, %v794, %v797
    %v799 = vsel %vm788, nan, %v798
    %v800 = vand.u32 2147483647, %v246
    %vm801 = vcmp.le.f32.partialorder %v800, 0.7853982
    %vm802 = vcmp.lt.s32.totalorder %v246, 0
    %v803 = vand.u32 %v246, 2139095040
    %v804 = vshrl.u32 %v803, 23
    %v805 = vsub.s32 %v804, 127
    %v806 = vand.u32 2147483647, %v246
    %v807 = vand.u32 %v806, 8388607
    %v808 = vor.u32 %v807, 8388608
    %v809 = vsub.s32 0, %v808
    %v810 = vadd.s32 %v805, 1
    %vm811 = vcmp.gt.s32.totalorder %v810, 0
    %v812 = vsel %vm811, %v810, 0
    %v813 = vshrl.u32 %v812, 5
    %v814 = vand.u32 %v812, 31
    %v815 = vsub.s32 32, %v814
    %v816 = vshrl.u32 683565275, %v815
    %v817 = vshll.u32 683565275, %v814
    %v818 = vshrl.u32 2475754826, %v815
    %v819 = vor.u32 %v817, %v818
    %v820 = vshll.u32 2475754826, %v814
    %v821 = vshrl.u32 2131351028, %v815
    %v822 = vor.u32 %v820, %v821
    %v823 = vshll.u32 2131351028, %v814
    %v824 = vshrl.u32 2102212464, %v815
    %v825 = vor.u32 %v823, %v824
    %v826 = vshll.u32 2102212464, %v814
    %v827 = vshrl.u32 920167782, %v815
    %v828 = vor.u32 %v826, %v827
    %v829 = vshll.u32 920167782, %v814
    %v830 = vshrl.u32 1326507024, %v815
    %v831 = vor.u32 %v829, %v830
    %vm832 = vcmp.lt.s32.totalorder %v813, 1
    %vm833 = vcmp.lt.s32.totalorder %v813, 2
    %vm834 = vcmp.lt.s32.totalorder %v813, 3
    %vm835 = vcmp.lt.s32.totalorder %v813, 4
    %v836 = vsel %vm832, %v816, %v819
    %v837 = vsel %vm835, %v825, 2102212464
    %v838 = vsel %vm834, %v822, %v837
    %v839 = vsel %vm833, %v836, %v838
    %v840 = vsel %vm832, %v819, %v822
    %v841 = vsel %vm835, %v828, 920167782
    %v842 = vsel %vm834, %v825, %v841
    %v843 = vsel %vm833, %v840, %v842
    %v844 = vsel %vm832, %v822, %v825
    %v845 = vsel %vm835, %v831, 1326507024
    %v846 = vsel %vm834, %v828, %v845
    %v847 = vsel %vm833, %v844, %v846
    %v848 = vshll.u32 %v808, 8
    %v849 = vmul.u32.u64.compose %v848, %v847
    %v850 = vextract.low.u32 %v849
    %v851 = vextract.high.u32 %v849
    %v852 = vmul.u32.u64.compose %v848, %v843
    %v853 = vextract.low.u32 %v852
    %v854 = vextract.high.u32 %v852
    %v855 = vmul.u32 %v848, %v839
    %v856 = vadd.s32 %v851, %v853
    %vm857 = vc.u32 %v851, %v853
    %v858 = vadd.s32 %v854, 1
    %v859 = vsel %vm857, %v858, %v854
    %v860 = vadd.s32 %v855, %v859
    %v861 = vadd.s32 %v860, 536870912
    %v862 = vshrl.u32 %v861, 30
    %v863 = vshll.u32 %v862, 30
    %v864 = vsub.s32 %v860, %v863
    %vm865 = vcmp.lt.s32.totalorder %v864, 0
    %v866 = vsub.s32 0, %v864
    %v867 = vsel %vm865, %v866, %v864
    %v868 = vclz %v867
    %v869 = vsub.s32 %v868, 2
    %vm870 = vcmp.gt.s32.totalorder 0, %v869
    %v871 = vsel %vm870, 0, %v869
    %v872 = vsub.s32 32, %v871
    %v873 = vshll.u32 %v864, %v871
    %v874 = vshrl.u32 %v856, %v872
    %v875 = vor.u32 %v873, %v874
    %v876 = vsub.s32 4294967266, %v871
    %v877 = vadd.s32 %v876, 127
    %v878 = vshll.u32 %v877, 23
    %v879 = vor.u32 4788187, %v878
    %v880 = vand.u32 2147483647, %v879
    %v882 = vcvt.s32.f32 %v875
    %v883 = vmul.f32 %v882, %v880
    %v884 = vxor.u32 %v883, 2147483648
    %v885 = vsel %vm802, %v884, %v883
    %v886 = vsub.s32 4, %v862
    %v887 = vsel %vm802, %v886, %v862
    %v888 = vsel %vm801, %v246, %v885
    %v889 = vsel %vm801, 0, %v887
    %v890 = vcosq.f32.pop %v888
    %v891 = vsinq.f32.pop %v888
    %vm892 = vweird.f32 %v246
    %v893 = vadd.s32 %v889, 3
    %v894 = vand.u32 %v893, 3
    %vm895 = vcmp.lt.s32.totalorder %v894, 2
    %vm896 = vcmp.eq.s32.totalorder %v894, 0
    %v897 = vxor.u32 %v891, 2147483648
    %v898 = vsel %vm896, %v890, %v897
    %vm899 = vcmp.eq.s32.totalorder %v894, 2
    %v900 = vxor.u32 %v890, 2147483648
    %v901 = vsel %vm899, %v900, %v891
    %v902 = vsel %vm895, %v898, %v901
    %v903 = vsel %vm892, nan, %v902
    %v904 = vand.u32 2147483647, %v251
    %vm905 = vcmp.le.f32.partialorder %v904, 0.7853982
    %vm906 = vcmp.lt.s32.totalorder %v251, 0
    %v907 = vand.u32 %v251, 2139095040
    %v908 = vshrl.u32 %v907, 23
    %v909 = vsub.s32 %v908, 127
    %v910 = vand.u32 2147483647, %v251
    %v911 = vand.u32 %v910, 8388607
    %v912 = vor.u32 %v911, 8388608
    %v913 = vsub.s32 0, %v912
    %v914 = vadd.s32 %v909, 1
    %vm915 = vcmp.gt.s32.totalorder %v914, 0
    %v916 = vsel %vm915, %v914, 0
    %v917 = vshrl.u32 %v916, 5
    %v918 = vand.u32 %v916, 31
    %v919 = vsub.s32 32, %v918
    %v920 = vshrl.u32 683565275, %v919
    %v921 = vshll.u32 683565275, %v918
    %v922 = vshrl.u32 2475754826, %v919
    %v923 = vor.u32 %v921, %v922
    %v924 = vshll.u32 2475754826, %v918
    %v925 = vshrl.u32 2131351028, %v919
    %v926 = vor.u32 %v924, %v925
    %v927 = vshll.u32 2131351028, %v918
    %v928 = vshrl.u32 2102212464, %v919
    %v929 = vor.u32 %v927, %v928
    %v930 = vshll.u32 2102212464, %v918
    %v931 = vshrl.u32 920167782, %v919
    %v932 = vor.u32 %v930, %v931
    %v933 = vshll.u32 920167782, %v918
    %v934 = vshrl.u32 1326507024, %v919
    %v935 = vor.u32 %v933, %v934
    %vm936 = vcmp.lt.s32.totalorder %v917, 1
    %vm937 = vcmp.lt.s32.totalorder %v917, 2
    %vm938 = vcmp.lt.s32.totalorder %v917, 3
    %vm939 = vcmp.lt.s32.totalorder %v917, 4
    %v940 = vsel %vm936, %v920, %v923
    %v941 = vsel %vm939, %v929, 2102212464
    %v942 = vsel %vm938, %v926, %v941
    %v943 = vsel %vm937, %v940, %v942
    %v944 = vsel %vm936, %v923, %v926
    %v945 = vsel %vm939, %v932, 920167782
    %v946 = vsel %vm938, %v929, %v945
    %v947 = vsel %vm937, %v944, %v946
    %v948 = vsel %vm936, %v926, %v929
    %v949 = vsel %vm939, %v935, 1326507024
    %v950 = vsel %vm938, %v932, %v949
    %v951 = vsel %vm937, %v948, %v950
    %v952 = vshll.u32 %v912, 8
    %v953 = vmul.u32.u64.compose %v952, %v951
    %v954 = vextract.low.u32 %v953
    %v955 = vextract.high.u32 %v953
    %v956 = vmul.u32.u64.compose %v952, %v947
    %v957 = vextract.low.u32 %v956
    %v958 = vextract.high.u32 %v956
    %v959 = vmul.u32 %v952, %v943
    %v960 = vadd.s32 %v955, %v957
    %vm961 = vc.u32 %v955, %v957
    %v962 = vadd.s32 %v958, 1
    %v963 = vsel %vm961, %v962, %v958
    %v964 = vadd.s32 %v959, %v963
    %v965 = vadd.s32 %v964, 536870912
    %v966 = vshrl.u32 %v965, 30
    %v967 = vshll.u32 %v966, 30
    %v968 = vsub.s32 %v964, %v967
    %vm969 = vcmp.lt.s32.totalorder %v968, 0
    %v970 = vsub.s32 0, %v968
    %v971 = vsel %vm969, %v970, %v968
    %v972 = vclz %v971
    %v973 = vsub.s32 %v972, 2
    %vm974 = vcmp.gt.s32.totalorder 0, %v973
    %v975 = vsel %vm974, 0, %v973
    %v976 = vsub.s32 32, %v975
    %v977 = vshll.u32 %v968, %v975
    %v978 = vshrl.u32 %v960, %v976
    %v979 = vor.u32 %v977, %v978
    %v980 = vsub.s32 4294967266, %v975
    %v981 = vadd.s32 %v980, 127
    %v982 = vshll.u32 %v981, 23
    %v983 = vor.u32 4788187, %v982
    %v984 = vand.u32 2147483647, %v983
    %v986 = vcvt.s32.f32 %v979
    %v987 = vmul.f32 %v986, %v984
    %v988 = vxor.u32 %v987, 2147483648
    %v989 = vsel %vm906, %v988, %v987
    %v990 = vsub.s32 4, %v966
    %v991 = vsel %vm906, %v990, %v966
    %v992 = vsel %vm905, %v251, %v989
    %v993 = vsel %vm905, 0, %v991
    %v994 = vcosq.f32.pop %v992
    %v995 = vsinq.f32.pop %v992
    %vm996 = vweird.f32 %v251
    %v997 = vadd.s32 %v993, 3
    %v998 = vand.u32 %v997, 3
    %vm999 = vcmp.lt.s32.totalorder %v998, 2
    %vm1000 = vcmp.eq.s32.totalorder %v998, 0
    %v1001 = vxor.u32 %v995, 2147483648
    %v1002 = vsel %vm1000, %v994, %v1001
    %vm1003 = vcmp.eq.s32.totalorder %v998, 2
    %v1004 = vxor.u32 %v994, 2147483648
    %v1005 = vsel %vm1003, %v1004, %v995
    %v1006 = vsel %vm999, %v1002, %v1005
    %v1007 = vsel %vm996, nan, %v1006
    %v1008 = vand.u32 2147483647, %v256
    %vm1009 = vcmp.le.f32.partialorder %v1008, 0.7853982
    %vm1010 = vcmp.lt.s32.totalorder %v256, 0
    %v1011 = vand.u32 %v256, 2139095040
    %v1012 = vshrl.u32 %v1011, 23
    %v1013 = vsub.s32 %v1012, 127
    %v1014 = vand.u32 2147483647, %v256
    %v1015 = vand.u32 %v1014, 8388607
    %v1016 = vor.u32 %v1015, 8388608
    %v1017 = vsub.s32 0, %v1016
    %v1018 = vadd.s32 %v1013, 1
    %vm1019 = vcmp.gt.s32.totalorder %v1018, 0
    %v1020 = vsel %vm1019, %v1018, 0
    %v1021 = vshrl.u32 %v1020, 5
    %v1022 = vand.u32 %v1020, 31
    %v1023 = vsub.s32 32, %v1022
    %v1024 = vshrl.u32 683565275, %v1023
    %v1025 = vshll.u32 683565275, %v1022
    %v1026 = vshrl.u32 2475754826, %v1023
    %v1027 = vor.u32 %v1025, %v1026
    %v1028 = vshll.u32 2475754826, %v1022
    %v1029 = vshrl.u32 2131351028, %v1023
    %v1030 = vor.u32 %v1028, %v1029
    %v1031 = vshll.u32 2131351028, %v1022
    %v1032 = vshrl.u32 2102212464, %v1023
    %v1033 = vor.u32 %v1031, %v1032
    %v1034 = vshll.u32 2102212464, %v1022
    %v1035 = vshrl.u32 920167782, %v1023
    %v1036 = vor.u32 %v1034, %v1035
    %v1037 = vshll.u32 920167782, %v1022
    %v1038 = vshrl.u32 1326507024, %v1023
    %v1039 = vor.u32 %v1037, %v1038
    %vm1040 = vcmp.lt.s32.totalorder %v1021, 1
    %vm1041 = vcmp.lt.s32.totalorder %v1021, 2
    %vm1042 = vcmp.lt.s32.totalorder %v1021, 3
    %vm1043 = vcmp.lt.s32.totalorder %v1021, 4
    %v1044 = vsel %vm1040, %v1024, %v1027
    %v1045 = vsel %vm1043, %v1033, 2102212464
    %v1046 = vsel %vm1042, %v1030, %v1045
    %v1047 = vsel %vm1041, %v1044, %v1046
    %v1048 = vsel %vm1040, %v1027, %v1030
    %v1049 = vsel %vm1043, %v1036, 920167782
    %v1050 = vsel %vm1042, %v1033, %v1049
    %v1051 = vsel %vm1041, %v1048, %v1050
    %v1052 = vsel %vm1040, %v1030, %v1033
    %v1053 = vsel %vm1043, %v1039, 1326507024
    %v1054 = vsel %vm1042, %v1036, %v1053
    %v1055 = vsel %vm1041, %v1052, %v1054
    %v1056 = vshll.u32 %v1016, 8
    %v1057 = vmul.u32.u64.compose %v1056, %v1055
    %v1058 = vextract.low.u32 %v1057
    %v1059 = vextract.high.u32 %v1057
    %v1060 = vmul.u32.u64.compose %v1056, %v1051
    %v1061 = vextract.low.u32 %v1060
    %v1062 = vextract.high.u32 %v1060
    %v1063 = vmul.u32 %v1056, %v1047
    %v1064 = vadd.s32 %v1059, %v1061
    %vm1065 = vc.u32 %v1059, %v1061
    %v1066 = vadd.s32 %v1062, 1
    %v1067 = vsel %vm1065, %v1066, %v1062
    %v1068 = vadd.s32 %v1063, %v1067
    %v1069 = vadd.s32 %v1068, 536870912
    %v1070 = vshrl.u32 %v1069, 30
    %v1071 = vshll.u32 %v1070, 30
    %v1072 = vsub.s32 %v1068, %v1071
    %vm1073 = vcmp.lt.s32.totalorder %v1072, 0
    %v1074 = vsub.s32 0, %v1072
    %v1075 = vsel %vm1073, %v1074, %v1072
    %v1076 = vclz %v1075
    %v1077 = vsub.s32 %v1076, 2
    %vm1078 = vcmp.gt.s32.totalorder 0, %v1077
    %v1079 = vsel %vm1078, 0, %v1077
    %v1080 = vsub.s32 32, %v1079
    %v1081 = vshll.u32 %v1072, %v1079
    %v1082 = vshrl.u32 %v1064, %v1080
    %v1083 = vor.u32 %v1081, %v1082
    %v1084 = vsub.s32 4294967266, %v1079
    %v1085 = vadd.s32 %v1084, 127
    %v1086 = vshll.u32 %v1085, 23
    %v1087 = vor.u32 4788187, %v1086
    %v1088 = vand.u32 2147483647, %v1087
    %v1090 = vcvt.s32.f32 %v1083
    %v1091 = vmul.f32 %v1090, %v1088
    %v1092 = vxor.u32 %v1091, 2147483648
    %v1093 = vsel %vm1010, %v1092, %v1091
    %v1094 = vsub.s32 4, %v1070
    %v1095 = vsel %vm1010, %v1094, %v1070
    %v1096 = vsel %vm1009, %v256, %v1093
    %v1097 = vsel %vm1009, 0, %v1095
    %v1098 = vcosq.f32.pop %v1096
    %v1099 = vsinq.f32.pop %v1096
    %vm1100 = vweird.f32 %v256
    %v1101 = vadd.s32 %v1097, 3
    %v1102 = vand.u32 %v1101, 3
    %vm1103 = vcmp.lt.s32.totalorder %v1102, 2
    %vm1104 = vcmp.eq.s32.totalorder %v1102, 0
    %v1105 = vxor.u32 %v1099, 2147483648
    %v1106 = vsel %vm1104, %v1098, %v1105
    %vm1107 = vcmp.eq.s32.totalorder %v1102, 2
    %v1108 = vxor.u32 %v1098, 2147483648
    %v1109 = vsel %vm1107, %v1108, %v1099
    %v1110 = vsel %vm1103, %v1106, %v1109
    %v1111 = vsel %vm1100, nan, %v1110
    %v1112 = vand.u32 2147483647, %v261
    %vm1113 = vcmp.le.f32.partialorder %v1112, 0.7853982
    %vm1114 = vcmp.lt.s32.totalorder %v261, 0
    %v1115 = vand.u32 %v261, 2139095040
    %v1116 = vshrl.u32 %v1115, 23
    %v1117 = vsub.s32 %v1116, 127
    %v1118 = vand.u32 2147483647, %v261
    %v1119 = vand.u32 %v1118, 8388607
    %v1120 = vor.u32 %v1119, 8388608
    %v1121 = vsub.s32 0, %v1120
    %v1122 = vadd.s32 %v1117, 1
    %vm1123 = vcmp.gt.s32.totalorder %v1122, 0
    %v1124 = vsel %vm1123, %v1122, 0
    %v1125 = vshrl.u32 %v1124, 5
    %v1126 = vand.u32 %v1124, 31
    %v1127 = vsub.s32 32, %v1126
    %v1128 = vshrl.u32 683565275, %v1127
    %v1129 = vshll.u32 683565275, %v1126
    %v1130 = vshrl.u32 2475754826, %v1127
    %v1131 = vor.u32 %v1129, %v1130
    %v1132 = vshll.u32 2475754826, %v1126
    %v1133 = vshrl.u32 2131351028, %v1127
    %v1134 = vor.u32 %v1132, %v1133
    %v1135 = vshll.u32 2131351028, %v1126
    %v1136 = vshrl.u32 2102212464, %v1127
    %v1137 = vor.u32 %v1135, %v1136
    %v1138 = vshll.u32 2102212464, %v1126
    %v1139 = vshrl.u32 920167782, %v1127
    %v1140 = vor.u32 %v1138, %v1139
    %v1141 = vshll.u32 920167782, %v1126
    %v1142 = vshrl.u32 1326507024, %v1127
    %v1143 = vor.u32 %v1141, %v1142
    %vm1144 = vcmp.lt.s32.totalorder %v1125, 1
    %vm1145 = vcmp.lt.s32.totalorder %v1125, 2
    %vm1146 = vcmp.lt.s32.totalorder %v1125, 3
    %vm1147 = vcmp.lt.s32.totalorder %v1125, 4
    %v1148 = vsel %vm1144, %v1128, %v1131
    %v1149 = vsel %vm1147, %v1137, 2102212464
    %v1150 = vsel %vm1146, %v1134, %v1149
    %v1151 = vsel %vm1145, %v1148, %v1150
    %v1152 = vsel %vm1144, %v1131, %v1134
    %v1153 = vsel %vm1147, %v1140, 920167782
    %v1154 = vsel %vm1146, %v1137, %v1153
    %v1155 = vsel %vm1145, %v1152, %v1154
    %v1156 = vsel %vm1144, %v1134, %v1137
    %v1157 = vsel %vm1147, %v1143, 1326507024
    %v1158 = vsel %vm1146, %v1140, %v1157
    %v1159 = vsel %vm1145, %v1156, %v1158
    %v1160 = vshll.u32 %v1120, 8
    %v1161 = vmul.u32.u64.compose %v1160, %v1159
    %v1162 = vextract.low.u32 %v1161
    %v1163 = vextract.high.u32 %v1161
    %v1164 = vmul.u32.u64.compose %v1160, %v1155
    %v1165 = vextract.low.u32 %v1164
    %v1166 = vextract.high.u32 %v1164
    %v1167 = vmul.u32 %v1160, %v1151
    %v1168 = vadd.s32 %v1163, %v1165
    %vm1169 = vc.u32 %v1163, %v1165
    %v1170 = vadd.s32 %v1166, 1
    %v1171 = vsel %vm1169, %v1170, %v1166
    %v1172 = vadd.s32 %v1167, %v1171
    %v1173 = vadd.s32 %v1172, 536870912
    %v1174 = vshrl.u32 %v1173, 30
    %v1175 = vshll.u32 %v1174, 30
    %v1176 = vsub.s32 %v1172, %v1175
    %vm1177 = vcmp.lt.s32.totalorder %v1176, 0
    %v1178 = vsub.s32 0, %v1176
    %v1179 = vsel %vm1177, %v1178, %v1176
    %v1180 = vclz %v1179
    %v1181 = vsub.s32 %v1180, 2
    %vm1182 = vcmp.gt.s32.totalorder 0, %v1181
    %v1183 = vsel %vm1182, 0, %v1181
    %v1184 = vsub.s32 32, %v1183
    %v1185 = vshll.u32 %v1176, %v1183
    %v1186 = vshrl.u32 %v1168, %v1184
    %v1187 = vor.u32 %v1185, %v1186
    %v1188 = vsub.s32 4294967266, %v1183
    %v1189 = vadd.s32 %v1188, 127
    %v1190 = vshll.u32 %v1189, 23
    %v1191 = vor.u32 4788187, %v1190
    %v1192 = vand.u32 2147483647, %v1191
    %v1194 = vcvt.s32.f32 %v1187
    %v1195 = vmul.f32 %v1194, %v1192
    %v1196 = vxor.u32 %v1195, 2147483648
    %v1197 = vsel %vm1114, %v1196, %v1195
    %v1198 = vsub.s32 4, %v1174
    %v1199 = vsel %vm1114, %v1198, %v1174
    %v1200 = vsel %vm1113, %v261, %v1197
    %v1201 = vsel %vm1113, 0, %v1199
    %v1202 = vcosq.f32.pop %v1200
    %v1203 = vsinq.f32.pop %v1200
    %vm1204 = vweird.f32 %v261
    %v1205 = vadd.s32 %v1201, 3
    %v1206 = vand.u32 %v1205, 3
    %vm1207 = vcmp.lt.s32.totalorder %v1206, 2
    %vm1208 = vcmp.eq.s32.totalorder %v1206, 0
    %v1209 = vxor.u32 %v1203, 2147483648
    %v1210 = vsel %vm1208, %v1202, %v1209
    %vm1211 = vcmp.eq.s32.totalorder %v1206, 2
    %v1212 = vxor.u32 %v1202, 2147483648
    %v1213 = vsel %vm1211, %v1212, %v1203
    %v1214 = vsel %vm1207, %v1210, %v1213
    %v1215 = vsel %vm1204, nan, %v1214
    %v1216 = vand.u32 2147483647, %v266
    %vm1217 = vcmp.le.f32.partialorder %v1216, 0.7853982
    %vm1218 = vcmp.lt.s32.totalorder %v266, 0
    %v1219 = vand.u32 %v266, 2139095040
    %v1220 = vshrl.u32 %v1219, 23
    %v1221 = vsub.s32 %v1220, 127
    %v1222 = vand.u32 2147483647, %v266
    %v1223 = vand.u32 %v1222, 8388607
    %v1224 = vor.u32 %v1223, 8388608
    %v1225 = vsub.s32 0, %v1224
    %v1226 = vadd.s32 %v1221, 1
    %vm1227 = vcmp.gt.s32.totalorder %v1226, 0
    %v1228 = vsel %vm1227, %v1226, 0
    %v1229 = vshrl.u32 %v1228, 5
    %v1230 = vand.u32 %v1228, 31
    %v1231 = vsub.s32 32, %v1230
    %v1232 = vshrl.u32 683565275, %v1231
    %v1233 = vshll.u32 683565275, %v1230
    %v1234 = vshrl.u32 2475754826, %v1231
    %v1235 = vor.u32 %v1233, %v1234
    %v1236 = vshll.u32 2475754826, %v1230
    %v1237 = vshrl.u32 2131351028, %v1231
    %v1238 = vor.u32 %v1236, %v1237
    %v1239 = vshll.u32 2131351028, %v1230
    %v1240 = vshrl.u32 2102212464, %v1231
    %v1241 = vor.u32 %v1239, %v1240
    %v1242 = vshll.u32 2102212464, %v1230
    %v1243 = vshrl.u32 920167782, %v1231
    %v1244 = vor.u32 %v1242, %v1243
    %v1245 = vshll.u32 920167782, %v1230
    %v1246 = vshrl.u32 1326507024, %v1231
    %v1247 = vor.u32 %v1245, %v1246
    %vm1248 = vcmp.lt.s32.totalorder %v1229, 1
    %vm1249 = vcmp.lt.s32.totalorder %v1229, 2
    %vm1250 = vcmp.lt.s32.totalorder %v1229, 3
    %vm1251 = vcmp.lt.s32.totalorder %v1229, 4
    %v1252 = vsel %vm1248, %v1232, %v1235
    %v1253 = vsel %vm1251, %v1241, 2102212464
    %v1254 = vsel %vm1250, %v1238, %v1253
    %v1255 = vsel %vm1249, %v1252, %v1254
    %v1256 = vsel %vm1248, %v1235, %v1238
    %v1257 = vsel %vm1251, %v1244, 920167782
    %v1258 = vsel %vm1250, %v1241, %v1257
    %v1259 = vsel %vm1249, %v1256, %v1258
    %v1260 = vsel %vm1248, %v1238, %v1241
    %v1261 = vsel %vm1251, %v1247, 1326507024
    %v1262 = vsel %vm1250, %v1244, %v1261
    %v1263 = vsel %vm1249, %v1260, %v1262
    %v1264 = vshll.u32 %v1224, 8
    %v1265 = vmul.u32.u64.compose %v1264, %v1263
    %v1266 = vextract.low.u32 %v1265
    %v1267 = vextract.high.u32 %v1265
    %v1268 = vmul.u32.u64.compose %v1264, %v1259
    %v1269 = vextract.low.u32 %v1268
    %v1270 = vextract.high.u32 %v1268
    %v1271 = vmul.u32 %v1264, %v1255
    %v1272 = vadd.s32 %v1267, %v1269
    %vm1273 = vc.u32 %v1267, %v1269
    %v1274 = vadd.s32 %v1270, 1
    %v1275 = vsel %vm1273, %v1274, %v1270
    %v1276 = vadd.s32 %v1271, %v1275
    %v1277 = vadd.s32 %v1276, 536870912
    %v1278 = vshrl.u32 %v1277, 30
    %v1279 = vshll.u32 %v1278, 30
    %v1280 = vsub.s32 %v1276, %v1279
    %vm1281 = vcmp.lt.s32.totalorder %v1280, 0
    %v1282 = vsub.s32 0, %v1280
    %v1283 = vsel %vm1281, %v1282, %v1280
    %v1284 = vclz %v1283
    %v1285 = vsub.s32 %v1284, 2
    %vm1286 = vcmp.gt.s32.totalorder 0, %v1285
    %v1287 = vsel %vm1286, 0, %v1285
    %v1288 = vsub.s32 32, %v1287
    %v1289 = vshll.u32 %v1280, %v1287
    %v1290 = vshrl.u32 %v1272, %v1288
    %v1291 = vor.u32 %v1289, %v1290
    %v1292 = vsub.s32 4294967266, %v1287
    %v1293 = vadd.s32 %v1292, 127
    %v1294 = vshll.u32 %v1293, 23
    %v1295 = vor.u32 4788187, %v1294
    %v1296 = vand.u32 2147483647, %v1295
    %v1298 = vcvt.s32.f32 %v1291
    %v1299 = vmul.f32 %v1298, %v1296
    %v1300 = vxor.u32 %v1299, 2147483648
    %v1301 = vsel %vm1218, %v1300, %v1299
    %v1302 = vsub.s32 4, %v1278
    %v1303 = vsel %vm1218, %v1302, %v1278
    %v1304 = vsel %vm1217, %v266, %v1301
    %v1305 = vsel %vm1217, 0, %v1303
    %v1306 = vcosq.f32.pop %v1304
    %v1307 = vsinq.f32.pop %v1304
    %vm1308 = vweird.f32 %v266
    %v1309 = vadd.s32 %v1305, 3
    %v1310 = vand.u32 %v1309, 3
    %vm1311 = vcmp.lt.s32.totalorder %v1310, 2
    %vm1312 = vcmp.eq.s32.totalorder %v1310, 0
    %v1313 = vxor.u32 %v1307, 2147483648
    %v1314 = vsel %vm1312, %v1306, %v1313
    %vm1315 = vcmp.eq.s32.totalorder %v1310, 2
    %v1316 = vxor.u32 %v1306, 2147483648
    %v1317 = vsel %vm1315, %v1316, %v1307
    %v1318 = vsel %vm1311, %v1314, %v1317
    %v1319 = vsel %vm1308, nan, %v1318
    %v1320 = vand.u32 2147483647, %v271
    %vm1321 = vcmp.le.f32.partialorder %v1320, 0.7853982
    %vm1322 = vcmp.lt.s32.totalorder %v271, 0
    %v1323 = vand.u32 %v271, 2139095040
    %v1324 = vshrl.u32 %v1323, 23
    %v1325 = vsub.s32 %v1324, 127
    %v1326 = vand.u32 2147483647, %v271
    %v1327 = vand.u32 %v1326, 8388607
    %v1328 = vor.u32 %v1327, 8388608
    %v1329 = vsub.s32 0, %v1328
    %v1330 = vadd.s32 %v1325, 1
    %vm1331 = vcmp.gt.s32.totalorder %v1330, 0
    %v1332 = vsel %vm1331, %v1330, 0
    %v1333 = vshrl.u32 %v1332, 5
    %v1334 = vand.u32 %v1332, 31
    %v1335 = vsub.s32 32, %v1334
    %v1336 = vshrl.u32 683565275, %v1335
    %v1337 = vshll.u32 683565275, %v1334
    %v1338 = vshrl.u32 2475754826, %v1335
    %v1339 = vor.u32 %v1337, %v1338
    %v1340 = vshll.u32 2475754826, %v1334
    %v1341 = vshrl.u32 2131351028, %v1335
    %v1342 = vor.u32 %v1340, %v1341
    %v1343 = vshll.u32 2131351028, %v1334
    %v1344 = vshrl.u32 2102212464, %v1335
    %v1345 = vor.u32 %v1343, %v1344
    %v1346 = vshll.u32 2102212464, %v1334
    %v1347 = vshrl.u32 920167782, %v1335
    %v1348 = vor.u32 %v1346, %v1347
    %v1349 = vshll.u32 920167782, %v1334
    %v1350 = vshrl.u32 1326507024, %v1335
    %v1351 = vor.u32 %v1349, %v1350
    %vm1352 = vcmp.lt.s32.totalorder %v1333, 1
    %vm1353 = vcmp.lt.s32.totalorder %v1333, 2
    %vm1354 = vcmp.lt.s32.totalorder %v1333, 3
    %vm1355 = vcmp.lt.s32.totalorder %v1333, 4
    %v1356 = vsel %vm1352, %v1336, %v1339
    %v1357 = vsel %vm1355, %v1345, 2102212464
    %v1358 = vsel %vm1354, %v1342, %v1357
    %v1359 = vsel %vm1353, %v1356, %v1358
    %v1360 = vsel %vm1352, %v1339, %v1342
    %v1361 = vsel %vm1355, %v1348, 920167782
    %v1362 = vsel %vm1354, %v1345, %v1361
    %v1363 = vsel %vm1353, %v1360, %v1362
    %v1364 = vsel %vm1352, %v1342, %v1345
    %v1365 = vsel %vm1355, %v1351, 1326507024
    %v1366 = vsel %vm1354, %v1348, %v1365
    %v1367 = vsel %vm1353, %v1364, %v1366
    %v1368 = vshll.u32 %v1328, 8
    %v1369 = vmul.u32.u64.compose %v1368, %v1367
    %v1370 = vextract.low.u32 %v1369
    %v1371 = vextract.high.u32 %v1369
    %v1372 = vmul.u32.u64.compose %v1368, %v1363
    %v1373 = vextract.low.u32 %v1372
    %v1374 = vextract.high.u32 %v1372
    %v1375 = vmul.u32 %v1368, %v1359
    %v1376 = vadd.s32 %v1371, %v1373
    %vm1377 = vc.u32 %v1371, %v1373
    %v1378 = vadd.s32 %v1374, 1
    %v1379 = vsel %vm1377, %v1378, %v1374
    %v1380 = vadd.s32 %v1375, %v1379
    %v1381 = vadd.s32 %v1380, 536870912
    %v1382 = vshrl.u32 %v1381, 30
    %v1383 = vshll.u32 %v1382, 30
    %v1384 = vsub.s32 %v1380, %v1383
    %vm1385 = vcmp.lt.s32.totalorder %v1384, 0
    %v1386 = vsub.s32 0, %v1384
    %v1387 = vsel %vm1385, %v1386, %v1384
    %v1388 = vclz %v1387
    %v1389 = vsub.s32 %v1388, 2
    %vm1390 = vcmp.gt.s32.totalorder 0, %v1389
    %v1391 = vsel %vm1390, 0, %v1389
    %v1392 = vsub.s32 32, %v1391
    %v1393 = vshll.u32 %v1384, %v1391
    %v1394 = vshrl.u32 %v1376, %v1392
    %v1395 = vor.u32 %v1393, %v1394
    %v1396 = vsub.s32 4294967266, %v1391
    %v1397 = vadd.s32 %v1396, 127
    %v1398 = vshll.u32 %v1397, 23
    %v1399 = vor.u32 4788187, %v1398
    %v1400 = vand.u32 2147483647, %v1399
    %v1402 = vcvt.s32.f32 %v1395
    %v1403 = vmul.f32 %v1402, %v1400
    %v1404 = vxor.u32 %v1403, 2147483648
    %v1405 = vsel %vm1322, %v1404, %v1403
    %v1406 = vsub.s32 4, %v1382
    %v1407 = vsel %vm1322, %v1406, %v1382
    %v1408 = vsel %vm1321, %v271, %v1405
    %v1409 = vsel %vm1321, 0, %v1407
    %v1410 = vcosq.f32.pop %v1408
    %v1411 = vsinq.f32.pop %v1408
    %vm1412 = vweird.f32 %v271
    %v1413 = vadd.s32 %v1409, 3
    %v1414 = vand.u32 %v1413, 3
    %vm1415 = vcmp.lt.s32.totalorder %v1414, 2
    %vm1416 = vcmp.eq.s32.totalorder %v1414, 0
    %v1417 = vxor.u32 %v1411, 2147483648
    %v1418 = vsel %vm1416, %v1410, %v1417
    %vm1419 = vcmp.eq.s32.totalorder %v1414, 2
    %v1420 = vxor.u32 %v1410, 2147483648
    %v1421 = vsel %vm1419, %v1420, %v1411
    %v1422 = vsel %vm1415, %v1418, %v1421
    %v1423 = vsel %vm1412, nan, %v1422
    %v1424 = vand.u32 2147483647, %v276
    %vm1425 = vcmp.le.f32.partialorder %v1424, 0.7853982
    %vm1426 = vcmp.lt.s32.totalorder %v276, 0
    %v1427 = vand.u32 %v276, 2139095040
    %v1428 = vshrl.u32 %v1427, 23
    %v1429 = vsub.s32 %v1428, 127
    %v1430 = vand.u32 2147483647, %v276
    %v1431 = vand.u32 %v1430, 8388607
    %v1432 = vor.u32 %v1431, 8388608
    %v1433 = vsub.s32 0, %v1432
    %v1434 = vadd.s32 %v1429, 1
    %vm1435 = vcmp.gt.s32.totalorder %v1434, 0
    %v1436 = vsel %vm1435, %v1434, 0
    %v1437 = vshrl.u32 %v1436, 5
    %v1438 = vand.u32 %v1436, 31
    %v1439 = vsub.s32 32, %v1438
    %v1440 = vshrl.u32 683565275, %v1439
    %v1441 = vshll.u32 683565275, %v1438
    %v1442 = vshrl.u32 2475754826, %v1439
    %v1443 = vor.u32 %v1441, %v1442
    %v1444 = vshll.u32 2475754826, %v1438
    %v1445 = vshrl.u32 2131351028, %v1439
    %v1446 = vor.u32 %v1444, %v1445
    %v1447 = vshll.u32 2131351028, %v1438
    %v1448 = vshrl.u32 2102212464, %v1439
    %v1449 = vor.u32 %v1447, %v1448
    %v1450 = vshll.u32 2102212464, %v1438
    %v1451 = vshrl.u32 920167782, %v1439
    %v1452 = vor.u32 %v1450, %v1451
    %v1453 = vshll.u32 920167782, %v1438
    %v1454 = vshrl.u32 1326507024, %v1439
    %v1455 = vor.u32 %v1453, %v1454
    %vm1456 = vcmp.lt.s32.totalorder %v1437, 1
    %vm1457 = vcmp.lt.s32.totalorder %v1437, 2
    %vm1458 = vcmp.lt.s32.totalorder %v1437, 3
    %vm1459 = vcmp.lt.s32.totalorder %v1437, 4
    %v1460 = vsel %vm1456, %v1440, %v1443
    %v1461 = vsel %vm1459, %v1449, 2102212464
    %v1462 = vsel %vm1458, %v1446, %v1461
    %v1463 = vsel %vm1457, %v1460, %v1462
    %v1464 = vsel %vm1456, %v1443, %v1446
    %v1465 = vsel %vm1459, %v1452, 920167782
    %v1466 = vsel %vm1458, %v1449, %v1465
    %v1467 = vsel %vm1457, %v1464, %v1466
    %v1468 = vsel %vm1456, %v1446, %v1449
    %v1469 = vsel %vm1459, %v1455, 1326507024
    %v1470 = vsel %vm1458, %v1452, %v1469
    %v1471 = vsel %vm1457, %v1468, %v1470
    %v1472 = vshll.u32 %v1432, 8
    %v1473 = vmul.u32.u64.compose %v1472, %v1471
    %v1474 = vextract.low.u32 %v1473
    %v1475 = vextract.high.u32 %v1473
    %v1476 = vmul.u32.u64.compose %v1472, %v1467
    %v1477 = vextract.low.u32 %v1476
    %v1478 = vextract.high.u32 %v1476
    %v1479 = vmul.u32 %v1472, %v1463
    %v1480 = vadd.s32 %v1475, %v1477
    %vm1481 = vc.u32 %v1475, %v1477
    %v1482 = vadd.s32 %v1478, 1
    %v1483 = vsel %vm1481, %v1482, %v1478
    %v1484 = vadd.s32 %v1479, %v1483
    %v1485 = vadd.s32 %v1484, 536870912
    %v1486 = vshrl.u32 %v1485, 30
    %v1487 = vshll.u32 %v1486, 30
    %v1488 = vsub.s32 %v1484, %v1487
    %vm1489 = vcmp.lt.s32.totalorder %v1488, 0
    %v1490 = vsub.s32 0, %v1488
    %v1491 = vsel %vm1489, %v1490, %v1488
    %v1492 = vclz %v1491
    %v1493 = vsub.s32 %v1492, 2
    %vm1494 = vcmp.gt.s32.totalorder 0, %v1493
    %v1495 = vsel %vm1494, 0, %v1493
    %v1496 = vsub.s32 32, %v1495
    %v1497 = vshll.u32 %v1488, %v1495
    %v1498 = vshrl.u32 %v1480, %v1496
    %v1499 = vor.u32 %v1497, %v1498
    %v1500 = vsub.s32 4294967266, %v1495
    %v1501 = vadd.s32 %v1500, 127
    %v1502 = vshll.u32 %v1501, 23
    %v1503 = vor.u32 4788187, %v1502
    %v1504 = vand.u32 2147483647, %v1503
    %v1506 = vcvt.s32.f32 %v1499
    %v1507 = vmul.f32 %v1506, %v1504
    %v1508 = vxor.u32 %v1507, 2147483648
    %v1509 = vsel %vm1426, %v1508, %v1507
    %v1510 = vsub.s32 4, %v1486
    %v1511 = vsel %vm1426, %v1510, %v1486
    %v1512 = vsel %vm1425, %v276, %v1509
    %v1513 = vsel %vm1425, 0, %v1511
    %v1514 = vcosq.f32.pop %v1512
    %v1515 = vsinq.f32.pop %v1512
    %vm1516 = vweird.f32 %v276
    %v1517 = vadd.s32 %v1513, 3
    %v1518 = vand.u32 %v1517, 3
    %vm1519 = vcmp.lt.s32.totalorder %v1518, 2
    %vm1520 = vcmp.eq.s32.totalorder %v1518, 0
    %v1521 = vxor.u32 %v1515, 2147483648
    %v1522 = vsel %vm1520, %v1514, %v1521
    %vm1523 = vcmp.eq.s32.totalorder %v1518, 2
    %v1524 = vxor.u32 %v1514, 2147483648
    %v1525 = vsel %vm1523, %v1524, %v1515
    %v1526 = vsel %vm1519, %v1522, %v1525
    %v1527 = vsel %vm1516, nan, %v1526
    %v1528 = vand.u32 2147483647, %v281
    %vm1529 = vcmp.le.f32.partialorder %v1528, 0.7853982
    %vm1530 = vcmp.lt.s32.totalorder %v281, 0
    %v1531 = vand.u32 %v281, 2139095040
    %v1532 = vshrl.u32 %v1531, 23
    %v1533 = vsub.s32 %v1532, 127
    %v1534 = vand.u32 2147483647, %v281
    %v1535 = vand.u32 %v1534, 8388607
    %v1536 = vor.u32 %v1535, 8388608
    %v1537 = vsub.s32 0, %v1536
    %v1538 = vadd.s32 %v1533, 1
    %vm1539 = vcmp.gt.s32.totalorder %v1538, 0
    %v1540 = vsel %vm1539, %v1538, 0
    %v1541 = vshrl.u32 %v1540, 5
    %v1542 = vand.u32 %v1540, 31
    %v1543 = vsub.s32 32, %v1542
    %v1544 = vshrl.u32 683565275, %v1543
    %v1545 = vshll.u32 683565275, %v1542
    %v1546 = vshrl.u32 2475754826, %v1543
    %v1547 = vor.u32 %v1545, %v1546
    %v1548 = vshll.u32 2475754826, %v1542
    %v1549 = vshrl.u32 2131351028, %v1543
    %v1550 = vor.u32 %v1548, %v1549
    %v1551 = vshll.u32 2131351028, %v1542
    %v1552 = vshrl.u32 2102212464, %v1543
    %v1553 = vor.u32 %v1551, %v1552
    %v1554 = vshll.u32 2102212464, %v1542
    %v1555 = vshrl.u32 920167782, %v1543
    %v1556 = vor.u32 %v1554, %v1555
    %v1557 = vshll.u32 920167782, %v1542
    %v1558 = vshrl.u32 1326507024, %v1543
    %v1559 = vor.u32 %v1557, %v1558
    %vm1560 = vcmp.lt.s32.totalorder %v1541, 1
    %vm1561 = vcmp.lt.s32.totalorder %v1541, 2
    %vm1562 = vcmp.lt.s32.totalorder %v1541, 3
    %vm1563 = vcmp.lt.s32.totalorder %v1541, 4
    %v1564 = vsel %vm1560, %v1544, %v1547
    %v1565 = vsel %vm1563, %v1553, 2102212464
    %v1566 = vsel %vm1562, %v1550, %v1565
    %v1567 = vsel %vm1561, %v1564, %v1566
    %v1568 = vsel %vm1560, %v1547, %v1550
    %v1569 = vsel %vm1563, %v1556, 920167782
    %v1570 = vsel %vm1562, %v1553, %v1569
    %v1571 = vsel %vm1561, %v1568, %v1570
    %v1572 = vsel %vm1560, %v1550, %v1553
    %v1573 = vsel %vm1563, %v1559, 1326507024
    %v1574 = vsel %vm1562, %v1556, %v1573
    %v1575 = vsel %vm1561, %v1572, %v1574
    %v1576 = vshll.u32 %v1536, 8
    %v1577 = vmul.u32.u64.compose %v1576, %v1575
    %v1578 = vextract.low.u32 %v1577
    %v1579 = vextract.high.u32 %v1577
    %v1580 = vmul.u32.u64.compose %v1576, %v1571
    %v1581 = vextract.low.u32 %v1580
    %v1582 = vextract.high.u32 %v1580
    %v1583 = vmul.u32 %v1576, %v1567
    %v1584 = vadd.s32 %v1579, %v1581
    %vm1585 = vc.u32 %v1579, %v1581
    %v1586 = vadd.s32 %v1582, 1
    %v1587 = vsel %vm1585, %v1586, %v1582
    %v1588 = vadd.s32 %v1583, %v1587
    %v1589 = vadd.s32 %v1588, 536870912
    %v1590 = vshrl.u32 %v1589, 30
    %v1591 = vshll.u32 %v1590, 30
    %v1592 = vsub.s32 %v1588, %v1591
    %vm1593 = vcmp.lt.s32.totalorder %v1592, 0
    %v1594 = vsub.s32 0, %v1592
    %v1595 = vsel %vm1593, %v1594, %v1592
    %v1596 = vclz %v1595
    %v1597 = vsub.s32 %v1596, 2
    %vm1598 = vcmp.gt.s32.totalorder 0, %v1597
    %v1599 = vsel %vm1598, 0, %v1597
    %v1600 = vsub.s32 32, %v1599
    %v1601 = vshll.u32 %v1592, %v1599
    %v1602 = vshrl.u32 %v1584, %v1600
    %v1603 = vor.u32 %v1601, %v1602
    %v1604 = vsub.s32 4294967266, %v1599
    %v1605 = vadd.s32 %v1604, 127
    %v1606 = vshll.u32 %v1605, 23
    %v1607 = vor.u32 4788187, %v1606
    %v1608 = vand.u32 2147483647, %v1607
    %v1610 = vcvt.s32.f32 %v1603
    %v1611 = vmul.f32 %v1610, %v1608
    %v1612 = vxor.u32 %v1611, 2147483648
    %v1613 = vsel %vm1530, %v1612, %v1611
    %v1614 = vsub.s32 4, %v1590
    %v1615 = vsel %vm1530, %v1614, %v1590
    %v1616 = vsel %vm1529, %v281, %v1613
    %v1617 = vsel %vm1529, 0, %v1615
    %v1618 = vcosq.f32.pop %v1616
    %v1619 = vsinq.f32.pop %v1616
    %vm1620 = vweird.f32 %v281
    %v1621 = vadd.s32 %v1617, 3
    %v1622 = vand.u32 %v1621, 3
    %vm1623 = vcmp.lt.s32.totalorder %v1622, 2
    %vm1624 = vcmp.eq.s32.totalorder %v1622, 0
    %v1625 = vxor.u32 %v1619, 2147483648
    %v1626 = vsel %vm1624, %v1618, %v1625
    %vm1627 = vcmp.eq.s32.totalorder %v1622, 2
    %v1628 = vxor.u32 %v1618, 2147483648
    %v1629 = vsel %vm1627, %v1628, %v1619
    %v1630 = vsel %vm1623, %v1626, %v1629
    %v1631 = vsel %vm1620, nan, %v1630
    %v1632 = vand.u32 2147483647, %v286
    %vm1633 = vcmp.le.f32.partialorder %v1632, 0.7853982
    %vm1634 = vcmp.lt.s32.totalorder %v286, 0
    %v1635 = vand.u32 %v286, 2139095040
    %v1636 = vshrl.u32 %v1635, 23
    %v1637 = vsub.s32 %v1636, 127
    %v1638 = vand.u32 2147483647, %v286
    %v1639 = vand.u32 %v1638, 8388607
    %v1640 = vor.u32 %v1639, 8388608
    %v1641 = vsub.s32 0, %v1640
    %v1642 = vadd.s32 %v1637, 1
    %vm1643 = vcmp.gt.s32.totalorder %v1642, 0
    %v1644 = vsel %vm1643, %v1642, 0
    %v1645 = vshrl.u32 %v1644, 5
    %v1646 = vand.u32 %v1644, 31
    %v1647 = vsub.s32 32, %v1646
    %v1648 = vshrl.u32 683565275, %v1647
    %v1649 = vshll.u32 683565275, %v1646
    %v1650 = vshrl.u32 2475754826, %v1647
    %v1651 = vor.u32 %v1649, %v1650
    %v1652 = vshll.u32 2475754826, %v1646
    %v1653 = vshrl.u32 2131351028, %v1647
    %v1654 = vor.u32 %v1652, %v1653
    %v1655 = vshll.u32 2131351028, %v1646
    %v1656 = vshrl.u32 2102212464, %v1647
    %v1657 = vor.u32 %v1655, %v1656
    %v1658 = vshll.u32 2102212464, %v1646
    %v1659 = vshrl.u32 920167782, %v1647
    %v1660 = vor.u32 %v1658, %v1659
    %v1661 = vshll.u32 920167782, %v1646
    %v1662 = vshrl.u32 1326507024, %v1647
    %v1663 = vor.u32 %v1661, %v1662
    %vm1664 = vcmp.lt.s32.totalorder %v1645, 1
    %vm1665 = vcmp.lt.s32.totalorder %v1645, 2
    %vm1666 = vcmp.lt.s32.totalorder %v1645, 3
    %vm1667 = vcmp.lt.s32.totalorder %v1645, 4
    %v1668 = vsel %vm1664, %v1648, %v1651
    %v1669 = vsel %vm1667, %v1657, 2102212464
    %v1670 = vsel %vm1666, %v1654, %v1669
    %v1671 = vsel %vm1665, %v1668, %v1670
    %v1672 = vsel %vm1664, %v1651, %v1654
    %v1673 = vsel %vm1667, %v1660, 920167782
    %v1674 = vsel %vm1666, %v1657, %v1673
    %v1675 = vsel %vm1665, %v1672, %v1674
    %v1676 = vsel %vm1664, %v1654, %v1657
    %v1677 = vsel %vm1667, %v1663, 1326507024
    %v1678 = vsel %vm1666, %v1660, %v1677
    %v1679 = vsel %vm1665, %v1676, %v1678
    %v1680 = vshll.u32 %v1640, 8
    %v1681 = vmul.u32.u64.compose %v1680, %v1679
    %v1682 = vextract.low.u32 %v1681
    %v1683 = vextract.high.u32 %v1681
    %v1684 = vmul.u32.u64.compose %v1680, %v1675
    %v1685 = vextract.low.u32 %v1684
    %v1686 = vextract.high.u32 %v1684
    %v1687 = vmul.u32 %v1680, %v1671
    %v1688 = vadd.s32 %v1683, %v1685
    %vm1689 = vc.u32 %v1683, %v1685
    %v1690 = vadd.s32 %v1686, 1
    %v1691 = vsel %vm1689, %v1690, %v1686
    %v1692 = vadd.s32 %v1687, %v1691
    %v1693 = vadd.s32 %v1692, 536870912
    %v1694 = vshrl.u32 %v1693, 30
    %v1695 = vshll.u32 %v1694, 30
    %v1696 = vsub.s32 %v1692, %v1695
    %vm1697 = vcmp.lt.s32.totalorder %v1696, 0
    %v1698 = vsub.s32 0, %v1696
    %v1699 = vsel %vm1697, %v1698, %v1696
    %v1700 = vclz %v1699
    %v1701 = vsub.s32 %v1700, 2
    %vm1702 = vcmp.gt.s32.totalorder 0, %v1701
    %v1703 = vsel %vm1702, 0, %v1701
    %v1704 = vsub.s32 32, %v1703
    %v1705 = vshll.u32 %v1696, %v1703
    %v1706 = vshrl.u32 %v1688, %v1704
    %v1707 = vor.u32 %v1705, %v1706
    %v1708 = vsub.s32 4294967266, %v1703
    %v1709 = vadd.s32 %v1708, 127
    %v1710 = vshll.u32 %v1709, 23
    %v1711 = vor.u32 4788187, %v1710
    %v1712 = vand.u32 2147483647, %v1711
    %v1714 = vcvt.s32.f32 %v1707
    %v1715 = vmul.f32 %v1714, %v1712
    %v1716 = vxor.u32 %v1715, 2147483648
    %v1717 = vsel %vm1634, %v1716, %v1715
    %v1718 = vsub.s32 4, %v1694
    %v1719 = vsel %vm1634, %v1718, %v1694
    %v1720 = vsel %vm1633, %v286, %v1717
    %v1721 = vsel %vm1633, 0, %v1719
    %v1722 = vcosq.f32.pop %v1720
    %v1723 = vsinq.f32.pop %v1720
    %vm1724 = vweird.f32 %v286
    %v1725 = vadd.s32 %v1721, 3
    %v1726 = vand.u32 %v1725, 3
    %vm1727 = vcmp.lt.s32.totalorder %v1726, 2
    %vm1728 = vcmp.eq.s32.totalorder %v1726, 0
    %v1729 = vxor.u32 %v1723, 2147483648
    %v1730 = vsel %vm1728, %v1722, %v1729
    %vm1731 = vcmp.eq.s32.totalorder %v1726, 2
    %v1732 = vxor.u32 %v1722, 2147483648
    %v1733 = vsel %vm1731, %v1732, %v1723
    %v1734 = vsel %vm1727, %v1730, %v1733
    %v1735 = vsel %vm1724, nan, %v1734
    %v1736 = vand.u32 2147483647, %v291
    %vm1737 = vcmp.le.f32.partialorder %v1736, 0.7853982
    %vm1738 = vcmp.lt.s32.totalorder %v291, 0
    %v1739 = vand.u32 %v291, 2139095040
    %v1740 = vshrl.u32 %v1739, 23
    %v1741 = vsub.s32 %v1740, 127
    %v1742 = vand.u32 2147483647, %v291
    %v1743 = vand.u32 %v1742, 8388607
    %v1744 = vor.u32 %v1743, 8388608
    %v1745 = vsub.s32 0, %v1744
    %v1746 = vadd.s32 %v1741, 1
    %vm1747 = vcmp.gt.s32.totalorder %v1746, 0
    %v1748 = vsel %vm1747, %v1746, 0
    %v1749 = vshrl.u32 %v1748, 5
    %v1750 = vand.u32 %v1748, 31
    %v1751 = vsub.s32 32, %v1750
    %v1752 = vshrl.u32 683565275, %v1751
    %v1753 = vshll.u32 683565275, %v1750
    %v1754 = vshrl.u32 2475754826, %v1751
    %v1755 = vor.u32 %v1753, %v1754
    %v1756 = vshll.u32 2475754826, %v1750
    %v1757 = vshrl.u32 2131351028, %v1751
    %v1758 = vor.u32 %v1756, %v1757
    %v1759 = vshll.u32 2131351028, %v1750
    %v1760 = vshrl.u32 2102212464, %v1751
    %v1761 = vor.u32 %v1759, %v1760
    %v1762 = vshll.u32 2102212464, %v1750
    %v1763 = vshrl.u32 920167782, %v1751
    %v1764 = vor.u32 %v1762, %v1763
    %v1765 = vshll.u32 920167782, %v1750
    %v1766 = vshrl.u32 1326507024, %v1751
    %v1767 = vor.u32 %v1765, %v1766
    %vm1768 = vcmp.lt.s32.totalorder %v1749, 1
    %vm1769 = vcmp.lt.s32.totalorder %v1749, 2
    %vm1770 = vcmp.lt.s32.totalorder %v1749, 3
    %vm1771 = vcmp.lt.s32.totalorder %v1749, 4
    %v1772 = vsel %vm1768, %v1752, %v1755
    %v1773 = vsel %vm1771, %v1761, 2102212464
    %v1774 = vsel %vm1770, %v1758, %v1773
    %v1775 = vsel %vm1769, %v1772, %v1774
    %v1776 = vsel %vm1768, %v1755, %v1758
    %v1777 = vsel %vm1771, %v1764, 920167782
    %v1778 = vsel %vm1770, %v1761, %v1777
    %v1779 = vsel %vm1769, %v1776, %v1778
    %v1780 = vsel %vm1768, %v1758, %v1761
    %v1781 = vsel %vm1771, %v1767, 1326507024
    %v1782 = vsel %vm1770, %v1764, %v1781
    %v1783 = vsel %vm1769, %v1780, %v1782
    %v1784 = vshll.u32 %v1744, 8
    %v1785 = vmul.u32.u64.compose %v1784, %v1783
    %v1786 = vextract.low.u32 %v1785
    %v1787 = vextract.high.u32 %v1785
    %v1788 = vmul.u32.u64.compose %v1784, %v1779
    %v1789 = vextract.low.u32 %v1788
    %v1790 = vextract.high.u32 %v1788
    %v1791 = vmul.u32 %v1784, %v1775
    %v1792 = vadd.s32 %v1787, %v1789
    %vm1793 = vc.u32 %v1787, %v1789
    %v1794 = vadd.s32 %v1790, 1
    %v1795 = vsel %vm1793, %v1794, %v1790
    %v1796 = vadd.s32 %v1791, %v1795
    %v1797 = vadd.s32 %v1796, 536870912
    %v1798 = vshrl.u32 %v1797, 30
    %v1799 = vshll.u32 %v1798, 30
    %v1800 = vsub.s32 %v1796, %v1799
    %vm1801 = vcmp.lt.s32.totalorder %v1800, 0
    %v1802 = vsub.s32 0, %v1800
    %v1803 = vsel %vm1801, %v1802, %v1800
    %v1804 = vclz %v1803
    %v1805 = vsub.s32 %v1804, 2
    %vm1806 = vcmp.gt.s32.totalorder 0, %v1805
    %v1807 = vsel %vm1806, 0, %v1805
    %v1808 = vsub.s32 32, %v1807
    %v1809 = vshll.u32 %v1800, %v1807
    %v1810 = vshrl.u32 %v1792, %v1808
    %v1811 = vor.u32 %v1809, %v1810
    %v1812 = vsub.s32 4294967266, %v1807
    %v1813 = vadd.s32 %v1812, 127
    %v1814 = vshll.u32 %v1813, 23
    %v1815 = vor.u32 4788187, %v1814
    %v1816 = vand.u32 2147483647, %v1815
    %v1818 = vcvt.s32.f32 %v1811
    %v1819 = vmul.f32 %v1818, %v1816
    %v1820 = vxor.u32 %v1819, 2147483648
    %v1821 = vsel %vm1738, %v1820, %v1819
    %v1822 = vsub.s32 4, %v1798
    %v1823 = vsel %vm1738, %v1822, %v1798
    %v1824 = vsel %vm1737, %v291, %v1821
    %v1825 = vsel %vm1737, 0, %v1823
    %v1826 = vcosq.f32.pop %v1824
    %v1827 = vsinq.f32.pop %v1824
    %vm1828 = vweird.f32 %v291
    %v1829 = vadd.s32 %v1825, 3
    %v1830 = vand.u32 %v1829, 3
    %vm1831 = vcmp.lt.s32.totalorder %v1830, 2
    %vm1832 = vcmp.eq.s32.totalorder %v1830, 0
    %v1833 = vxor.u32 %v1827, 2147483648
    %v1834 = vsel %vm1832, %v1826, %v1833
    %vm1835 = vcmp.eq.s32.totalorder %v1830, 2
    %v1836 = vxor.u32 %v1826, 2147483648
    %v1837 = vsel %vm1835, %v1836, %v1827
    %v1838 = vsel %vm1831, %v1834, %v1837
    %v1839 = vsel %vm1828, nan, %v1838
    %v1840 = vand.u32 2147483647, %v296
    %vm1841 = vcmp.le.f32.partialorder %v1840, 0.7853982
    %vm1842 = vcmp.lt.s32.totalorder %v296, 0
    %v1843 = vand.u32 %v296, 2139095040
    %v1844 = vshrl.u32 %v1843, 23
    %v1845 = vsub.s32 %v1844, 127
    %v1846 = vand.u32 2147483647, %v296
    %v1847 = vand.u32 %v1846, 8388607
    %v1848 = vor.u32 %v1847, 8388608
    %v1849 = vsub.s32 0, %v1848
    %v1850 = vadd.s32 %v1845, 1
    %vm1851 = vcmp.gt.s32.totalorder %v1850, 0
    %v1852 = vsel %vm1851, %v1850, 0
    %v1853 = vshrl.u32 %v1852, 5
    %v1854 = vand.u32 %v1852, 31
    %v1855 = vsub.s32 32, %v1854
    %v1856 = vshrl.u32 683565275, %v1855
    %v1857 = vshll.u32 683565275, %v1854
    %v1858 = vshrl.u32 2475754826, %v1855
    %v1859 = vor.u32 %v1857, %v1858
    %v1860 = vshll.u32 2475754826, %v1854
    %v1861 = vshrl.u32 2131351028, %v1855
    %v1862 = vor.u32 %v1860, %v1861
    %v1863 = vshll.u32 2131351028, %v1854
    %v1864 = vshrl.u32 2102212464, %v1855
    %v1865 = vor.u32 %v1863, %v1864
    %v1866 = vshll.u32 2102212464, %v1854
    %v1867 = vshrl.u32 920167782, %v1855
    %v1868 = vor.u32 %v1866, %v1867
    %v1869 = vshll.u32 920167782, %v1854
    %v1870 = vshrl.u32 1326507024, %v1855
    %v1871 = vor.u32 %v1869, %v1870
    %vm1872 = vcmp.lt.s32.totalorder %v1853, 1
    %vm1873 = vcmp.lt.s32.totalorder %v1853, 2
    %vm1874 = vcmp.lt.s32.totalorder %v1853, 3
    %vm1875 = vcmp.lt.s32.totalorder %v1853, 4
    %v1876 = vsel %vm1872, %v1856, %v1859
    %v1877 = vsel %vm1875, %v1865, 2102212464
    %v1878 = vsel %vm1874, %v1862, %v1877
    %v1879 = vsel %vm1873, %v1876, %v1878
    %v1880 = vsel %vm1872, %v1859, %v1862
    %v1881 = vsel %vm1875, %v1868, 920167782
    %v1882 = vsel %vm1874, %v1865, %v1881
    %v1883 = vsel %vm1873, %v1880, %v1882
    %v1884 = vsel %vm1872, %v1862, %v1865
    %v1885 = vsel %vm1875, %v1871, 1326507024
    %v1886 = vsel %vm1874, %v1868, %v1885
    %v1887 = vsel %vm1873, %v1884, %v1886
    %v1888 = vshll.u32 %v1848, 8
    %v1889 = vmul.u32.u64.compose %v1888, %v1887
    %v1890 = vextract.low.u32 %v1889
    %v1891 = vextract.high.u32 %v1889
    %v1892 = vmul.u32.u64.compose %v1888, %v1883
    %v1893 = vextract.low.u32 %v1892
    %v1894 = vextract.high.u32 %v1892
    %v1895 = vmul.u32 %v1888, %v1879
    %v1896 = vadd.s32 %v1891, %v1893
    %vm1897 = vc.u32 %v1891, %v1893
    %v1898 = vadd.s32 %v1894, 1
    %v1899 = vsel %vm1897, %v1898, %v1894
    %v1900 = vadd.s32 %v1895, %v1899
    %v1901 = vadd.s32 %v1900, 536870912
    %v1902 = vshrl.u32 %v1901, 30
    %v1903 = vshll.u32 %v1902, 30
    %v1904 = vsub.s32 %v1900, %v1903
    %vm1905 = vcmp.lt.s32.totalorder %v1904, 0
    %v1906 = vsub.s32 0, %v1904
    %v1907 = vsel %vm1905, %v1906, %v1904
    %v1908 = vclz %v1907
    %v1909 = vsub.s32 %v1908, 2
    %vm1910 = vcmp.gt.s32.totalorder 0, %v1909
    %v1911 = vsel %vm1910, 0, %v1909
    %v1912 = vsub.s32 32, %v1911
    %v1913 = vshll.u32 %v1904, %v1911
    %v1914 = vshrl.u32 %v1896, %v1912
    %v1915 = vor.u32 %v1913, %v1914
    %v1916 = vsub.s32 4294967266, %v1911
    %v1917 = vadd.s32 %v1916, 127
    %v1918 = vshll.u32 %v1917, 23
    %v1919 = vor.u32 4788187, %v1918
    %v1920 = vand.u32 2147483647, %v1919
    %v1922 = vcvt.s32.f32 %v1915
    %v1923 = vmul.f32 %v1922, %v1920
    %v1924 = vxor.u32 %v1923, 2147483648
    %v1925 = vsel %vm1842, %v1924, %v1923
    %v1926 = vsub.s32 4, %v1902
    %v1927 = vsel %vm1842, %v1926, %v1902
    %v1928 = vsel %vm1841, %v296, %v1925
    %v1929 = vsel %vm1841, 0, %v1927
    %v1930 = vcosq.f32.pop %v1928
    %v1931 = vsinq.f32.pop %v1928
    %vm1932 = vweird.f32 %v296
    %v1933 = vadd.s32 %v1929, 3
    %v1934 = vand.u32 %v1933, 3
    %vm1935 = vcmp.lt.s32.totalorder %v1934, 2
    %vm1936 = vcmp.eq.s32.totalorder %v1934, 0
    %v1937 = vxor.u32 %v1931, 2147483648
    %v1938 = vsel %vm1936, %v1930, %v1937
    %vm1939 = vcmp.eq.s32.totalorder %v1934, 2
    %v1940 = vxor.u32 %v1930, 2147483648
    %v1941 = vsel %vm1939, %v1940, %v1931
    %v1942 = vsel %vm1935, %v1938, %v1941
    %v1943 = vsel %vm1932, nan, %v1942
    %v1944 = vand.u32 2147483647, %v301
    %vm1945 = vcmp.le.f32.partialorder %v1944, 0.7853982
    %vm1946 = vcmp.lt.s32.totalorder %v301, 0
    %v1947 = vand.u32 %v301, 2139095040
    %v1948 = vshrl.u32 %v1947, 23
    %v1949 = vsub.s32 %v1948, 127
    %v1950 = vand.u32 2147483647, %v301
    %v1951 = vand.u32 %v1950, 8388607
    %v1952 = vor.u32 %v1951, 8388608
    %v1953 = vsub.s32 0, %v1952
    %v1954 = vadd.s32 %v1949, 1
    %vm1955 = vcmp.gt.s32.totalorder %v1954, 0
    %v1956 = vsel %vm1955, %v1954, 0
    %v1957 = vshrl.u32 %v1956, 5
    %v1958 = vand.u32 %v1956, 31
    %v1959 = vsub.s32 32, %v1958
    %v1960 = vshrl.u32 683565275, %v1959
    %v1961 = vshll.u32 683565275, %v1958
    %v1962 = vshrl.u32 2475754826, %v1959
    %v1963 = vor.u32 %v1961, %v1962
    %v1964 = vshll.u32 2475754826, %v1958
    %v1965 = vshrl.u32 2131351028, %v1959
    %v1966 = vor.u32 %v1964, %v1965
    %v1967 = vshll.u32 2131351028, %v1958
    %v1968 = vshrl.u32 2102212464, %v1959
    %v1969 = vor.u32 %v1967, %v1968
    %v1970 = vshll.u32 2102212464, %v1958
    %v1971 = vshrl.u32 920167782, %v1959
    %v1972 = vor.u32 %v1970, %v1971
    %v1973 = vshll.u32 920167782, %v1958
    %v1974 = vshrl.u32 1326507024, %v1959
    %v1975 = vor.u32 %v1973, %v1974
    %vm1976 = vcmp.lt.s32.totalorder %v1957, 1
    %vm1977 = vcmp.lt.s32.totalorder %v1957, 2
    %vm1978 = vcmp.lt.s32.totalorder %v1957, 3
    %vm1979 = vcmp.lt.s32.totalorder %v1957, 4
    %v1980 = vsel %vm1976, %v1960, %v1963
    %v1981 = vsel %vm1979, %v1969, 2102212464
    %v1982 = vsel %vm1978, %v1966, %v1981
    %v1983 = vsel %vm1977, %v1980, %v1982
    %v1984 = vsel %vm1976, %v1963, %v1966
    %v1985 = vsel %vm1979, %v1972, 920167782
    %v1986 = vsel %vm1978, %v1969, %v1985
    %v1987 = vsel %vm1977, %v1984, %v1986
    %v1988 = vsel %vm1976, %v1966, %v1969
    %v1989 = vsel %vm1979, %v1975, 1326507024
    %v1990 = vsel %vm1978, %v1972, %v1989
    %v1991 = vsel %vm1977, %v1988, %v1990
    %v1992 = vshll.u32 %v1952, 8
    %v1993 = vmul.u32.u64.compose %v1992, %v1991
    %v1994 = vextract.low.u32 %v1993
    %v1995 = vextract.high.u32 %v1993
    %v1996 = vmul.u32.u64.compose %v1992, %v1987
    %v1997 = vextract.low.u32 %v1996
    %v1998 = vextract.high.u32 %v1996
    %v1999 = vmul.u32 %v1992, %v1983
    %v2000 = vadd.s32 %v1995, %v1997
    %vm2001 = vc.u32 %v1995, %v1997
    %v2002 = vadd.s32 %v1998, 1
    %v2003 = vsel %vm2001, %v2002, %v1998
    %v2004 = vadd.s32 %v1999, %v2003
    %v2005 = vadd.s32 %v2004, 536870912
    %v2006 = vshrl.u32 %v2005, 30
    %v2007 = vshll.u32 %v2006, 30
    %v2008 = vsub.s32 %v2004, %v2007
    %vm2009 = vcmp.lt.s32.totalorder %v2008, 0
    %v2010 = vsub.s32 0, %v2008
    %v2011 = vsel %vm2009, %v2010, %v2008
    %v2012 = vclz %v2011
    %v2013 = vsub.s32 %v2012, 2
    %vm2014 = vcmp.gt.s32.totalorder 0, %v2013
    %v2015 = vsel %vm2014, 0, %v2013
    %v2016 = vsub.s32 32, %v2015
    %v2017 = vshll.u32 %v2008, %v2015
    %v2018 = vshrl.u32 %v2000, %v2016
    %v2019 = vor.u32 %v2017, %v2018
    %v2020 = vsub.s32 4294967266, %v2015
    %v2021 = vadd.s32 %v2020, 127
    %v2022 = vshll.u32 %v2021, 23
    %v2023 = vor.u32 4788187, %v2022
    %v2024 = vand.u32 2147483647, %v2023
    %v2026 = vcvt.s32.f32 %v2019
    %v2027 = vmul.f32 %v2026, %v2024
    %v2028 = vxor.u32 %v2027, 2147483648
    %v2029 = vsel %vm1946, %v2028, %v2027
    %v2030 = vsub.s32 4, %v2006
    %v2031 = vsel %vm1946, %v2030, %v2006
    %v2032 = vsel %vm1945, %v301, %v2029
    %v2033 = vsel %vm1945, 0, %v2031
    %v2034 = vcosq.f32.pop %v2032
    %v2035 = vsinq.f32.pop %v2032
    %vm2036 = vweird.f32 %v301
    %v2037 = vadd.s32 %v2033, 3
    %v2038 = vand.u32 %v2037, 3
    %vm2039 = vcmp.lt.s32.totalorder %v2038, 2
    %vm2040 = vcmp.eq.s32.totalorder %v2038, 0
    %v2041 = vxor.u32 %v2035, 2147483648
    %v2042 = vsel %vm2040, %v2034, %v2041
    %vm2043 = vcmp.eq.s32.totalorder %v2038, 2
    %v2044 = vxor.u32 %v2034, 2147483648
    %v2045 = vsel %vm2043, %v2044, %v2035
    %v2046 = vsel %vm2039, %v2042, %v2045
    %v2047 = vsel %vm2036, nan, %v2046
    %v2048 = vand.u32 2147483647, %v306
    %vm2049 = vcmp.le.f32.partialorder %v2048, 0.7853982
    %vm2050 = vcmp.lt.s32.totalorder %v306, 0
    %v2051 = vand.u32 %v306, 2139095040
    %v2052 = vshrl.u32 %v2051, 23
    %v2053 = vsub.s32 %v2052, 127
    %v2054 = vand.u32 2147483647, %v306
    %v2055 = vand.u32 %v2054, 8388607
    %v2056 = vor.u32 %v2055, 8388608
    %v2057 = vsub.s32 0, %v2056
    %v2058 = vadd.s32 %v2053, 1
    %vm2059 = vcmp.gt.s32.totalorder %v2058, 0
    %v2060 = vsel %vm2059, %v2058, 0
    %v2061 = vshrl.u32 %v2060, 5
    %v2062 = vand.u32 %v2060, 31
    %v2063 = vsub.s32 32, %v2062
    %v2064 = vshrl.u32 683565275, %v2063
    %v2065 = vshll.u32 683565275, %v2062
    %v2066 = vshrl.u32 2475754826, %v2063
    %v2067 = vor.u32 %v2065, %v2066
    %v2068 = vshll.u32 2475754826, %v2062
    %v2069 = vshrl.u32 2131351028, %v2063
    %v2070 = vor.u32 %v2068, %v2069
    %v2071 = vshll.u32 2131351028, %v2062
    %v2072 = vshrl.u32 2102212464, %v2063
    %v2073 = vor.u32 %v2071, %v2072
    %v2074 = vshll.u32 2102212464, %v2062
    %v2075 = vshrl.u32 920167782, %v2063
    %v2076 = vor.u32 %v2074, %v2075
    %v2077 = vshll.u32 920167782, %v2062
    %v2078 = vshrl.u32 1326507024, %v2063
    %v2079 = vor.u32 %v2077, %v2078
    %vm2080 = vcmp.lt.s32.totalorder %v2061, 1
    %vm2081 = vcmp.lt.s32.totalorder %v2061, 2
    %vm2082 = vcmp.lt.s32.totalorder %v2061, 3
    %vm2083 = vcmp.lt.s32.totalorder %v2061, 4
    %v2084 = vsel %vm2080, %v2064, %v2067
    %v2085 = vsel %vm2083, %v2073, 2102212464
    %v2086 = vsel %vm2082, %v2070, %v2085
    %v2087 = vsel %vm2081, %v2084, %v2086
    %v2088 = vsel %vm2080, %v2067, %v2070
    %v2089 = vsel %vm2083, %v2076, 920167782
    %v2090 = vsel %vm2082, %v2073, %v2089
    %v2091 = vsel %vm2081, %v2088, %v2090
    %v2092 = vsel %vm2080, %v2070, %v2073
    %v2093 = vsel %vm2083, %v2079, 1326507024
    %v2094 = vsel %vm2082, %v2076, %v2093
    %v2095 = vsel %vm2081, %v2092, %v2094
    %v2096 = vshll.u32 %v2056, 8
    %v2097 = vmul.u32.u64.compose %v2096, %v2095
    %v2098 = vextract.low.u32 %v2097
    %v2099 = vextract.high.u32 %v2097
    %v2100 = vmul.u32.u64.compose %v2096, %v2091
    %v2101 = vextract.low.u32 %v2100
    %v2102 = vextract.high.u32 %v2100
    %v2103 = vmul.u32 %v2096, %v2087
    %v2104 = vadd.s32 %v2099, %v2101
    %vm2105 = vc.u32 %v2099, %v2101
    %v2106 = vadd.s32 %v2102, 1
    %v2107 = vsel %vm2105, %v2106, %v2102
    %v2108 = vadd.s32 %v2103, %v2107
    %v2109 = vadd.s32 %v2108, 536870912
    %v2110 = vshrl.u32 %v2109, 30
    %v2111 = vshll.u32 %v2110, 30
    %v2112 = vsub.s32 %v2108, %v2111
    %vm2113 = vcmp.lt.s32.totalorder %v2112, 0
    %v2114 = vsub.s32 0, %v2112
    %v2115 = vsel %vm2113, %v2114, %v2112
    %v2116 = vclz %v2115
    %v2117 = vsub.s32 %v2116, 2
    %vm2118 = vcmp.gt.s32.totalorder 0, %v2117
    %v2119 = vsel %vm2118, 0, %v2117
    %v2120 = vsub.s32 32, %v2119
    %v2121 = vshll.u32 %v2112, %v2119
    %v2122 = vshrl.u32 %v2104, %v2120
    %v2123 = vor.u32 %v2121, %v2122
    %v2124 = vsub.s32 4294967266, %v2119
    %v2125 = vadd.s32 %v2124, 127
    %v2126 = vshll.u32 %v2125, 23
    %v2127 = vor.u32 4788187, %v2126
    %v2128 = vand.u32 2147483647, %v2127
    %v2130 = vcvt.s32.f32 %v2123
    %v2131 = vmul.f32 %v2130, %v2128
    %v2132 = vxor.u32 %v2131, 2147483648
    %v2133 = vsel %vm2050, %v2132, %v2131
    %v2134 = vsub.s32 4, %v2110
    %v2135 = vsel %vm2050, %v2134, %v2110
    %v2136 = vsel %vm2049, %v306, %v2133
    %v2137 = vsel %vm2049, 0, %v2135
    %v2138 = vcosq.f32.pop %v2136
    %v2139 = vsinq.f32.pop %v2136
    %vm2140 = vweird.f32 %v306
    %v2141 = vadd.s32 %v2137, 3
    %v2142 = vand.u32 %v2141, 3
    %vm2143 = vcmp.lt.s32.totalorder %v2142, 2
    %vm2144 = vcmp.eq.s32.totalorder %v2142, 0
    %v2145 = vxor.u32 %v2139, 2147483648
    %v2146 = vsel %vm2144, %v2138, %v2145
    %vm2147 = vcmp.eq.s32.totalorder %v2142, 2
    %v2148 = vxor.u32 %v2138, 2147483648
    %v2149 = vsel %vm2147, %v2148, %v2139
    %v2150 = vsel %vm2143, %v2146, %v2149
    %v2151 = vsel %vm2140, nan, %v2150
    %v2152 = vand.u32 2147483647, %v311
    %vm2153 = vcmp.le.f32.partialorder %v2152, 0.7853982
    %vm2154 = vcmp.lt.s32.totalorder %v311, 0
    %v2155 = vand.u32 %v311, 2139095040
    %v2156 = vshrl.u32 %v2155, 23
    %v2157 = vsub.s32 %v2156, 127
    %v2158 = vand.u32 2147483647, %v311
    %v2159 = vand.u32 %v2158, 8388607
    %v2160 = vor.u32 %v2159, 8388608
    %v2161 = vsub.s32 0, %v2160
    %v2162 = vadd.s32 %v2157, 1
    %vm2163 = vcmp.gt.s32.totalorder %v2162, 0
    %v2164 = vsel %vm2163, %v2162, 0
    %v2165 = vshrl.u32 %v2164, 5
    %v2166 = vand.u32 %v2164, 31
    %v2167 = vsub.s32 32, %v2166
    %v2168 = vshrl.u32 683565275, %v2167
    %v2169 = vshll.u32 683565275, %v2166
    %v2170 = vshrl.u32 2475754826, %v2167
    %v2171 = vor.u32 %v2169, %v2170
    %v2172 = vshll.u32 2475754826, %v2166
    %v2173 = vshrl.u32 2131351028, %v2167
    %v2174 = vor.u32 %v2172, %v2173
    %v2175 = vshll.u32 2131351028, %v2166
    %v2176 = vshrl.u32 2102212464, %v2167
    %v2177 = vor.u32 %v2175, %v2176
    %v2178 = vshll.u32 2102212464, %v2166
    %v2179 = vshrl.u32 920167782, %v2167
    %v2180 = vor.u32 %v2178, %v2179
    %v2181 = vshll.u32 920167782, %v2166
    %v2182 = vshrl.u32 1326507024, %v2167
    %v2183 = vor.u32 %v2181, %v2182
    %vm2184 = vcmp.lt.s32.totalorder %v2165, 1
    %vm2185 = vcmp.lt.s32.totalorder %v2165, 2
    %vm2186 = vcmp.lt.s32.totalorder %v2165, 3
    %vm2187 = vcmp.lt.s32.totalorder %v2165, 4
    %v2188 = vsel %vm2184, %v2168, %v2171
    %v2189 = vsel %vm2187, %v2177, 2102212464
    %v2190 = vsel %vm2186, %v2174, %v2189
    %v2191 = vsel %vm2185, %v2188, %v2190
    %v2192 = vsel %vm2184, %v2171, %v2174
    %v2193 = vsel %vm2187, %v2180, 920167782
    %v2194 = vsel %vm2186, %v2177, %v2193
    %v2195 = vsel %vm2185, %v2192, %v2194
    %v2196 = vsel %vm2184, %v2174, %v2177
    %v2197 = vsel %vm2187, %v2183, 1326507024
    %v2198 = vsel %vm2186, %v2180, %v2197
    %v2199 = vsel %vm2185, %v2196, %v2198
    %v2200 = vshll.u32 %v2160, 8
    %v2201 = vmul.u32.u64.compose %v2200, %v2199
    %v2202 = vextract.low.u32 %v2201
    %v2203 = vextract.high.u32 %v2201
    %v2204 = vmul.u32.u64.compose %v2200, %v2195
    %v2205 = vextract.low.u32 %v2204
    %v2206 = vextract.high.u32 %v2204
    %v2207 = vmul.u32 %v2200, %v2191
    %v2208 = vadd.s32 %v2203, %v2205
    %vm2209 = vc.u32 %v2203, %v2205
    %v2210 = vadd.s32 %v2206, 1
    %v2211 = vsel %vm2209, %v2210, %v2206
    %v2212 = vadd.s32 %v2207, %v2211
    %v2213 = vadd.s32 %v2212, 536870912
    %v2214 = vshrl.u32 %v2213, 30
    %v2215 = vshll.u32 %v2214, 30
    %v2216 = vsub.s32 %v2212, %v2215
    %vm2217 = vcmp.lt.s32.totalorder %v2216, 0
    %v2218 = vsub.s32 0, %v2216
    %v2219 = vsel %vm2217, %v2218, %v2216
    %v2220 = vclz %v2219
    %v2221 = vsub.s32 %v2220, 2
    %vm2222 = vcmp.gt.s32.totalorder 0, %v2221
    %v2223 = vsel %vm2222, 0, %v2221
    %v2224 = vsub.s32 32, %v2223
    %v2225 = vshll.u32 %v2216, %v2223
    %v2226 = vshrl.u32 %v2208, %v2224
    %v2227 = vor.u32 %v2225, %v2226
    %v2228 = vsub.s32 4294967266, %v2223
    %v2229 = vadd.s32 %v2228, 127
    %v2230 = vshll.u32 %v2229, 23
    %v2231 = vor.u32 4788187, %v2230
    %v2232 = vand.u32 2147483647, %v2231
    %v2234 = vcvt.s32.f32 %v2227
    %v2235 = vmul.f32 %v2234, %v2232
    %v2236 = vxor.u32 %v2235, 2147483648
    %v2237 = vsel %vm2154, %v2236, %v2235
    %v2238 = vsub.s32 4, %v2214
    %v2239 = vsel %vm2154, %v2238, %v2214
    %v2240 = vsel %vm2153, %v311, %v2237
    %v2241 = vsel %vm2153, 0, %v2239
    %v2242 = vcosq.f32.pop %v2240
    %v2243 = vsinq.f32.pop %v2240
    %vm2244 = vweird.f32 %v311
    %v2245 = vadd.s32 %v2241, 3
    %v2246 = vand.u32 %v2245, 3
    %vm2247 = vcmp.lt.s32.totalorder %v2246, 2
    %vm2248 = vcmp.eq.s32.totalorder %v2246, 0
    %v2249 = vxor.u32 %v2243, 2147483648
    %v2250 = vsel %vm2248, %v2242, %v2249
    %vm2251 = vcmp.eq.s32.totalorder %v2246, 2
    %v2252 = vxor.u32 %v2242, 2147483648
    %v2253 = vsel %vm2251, %v2252, %v2243
    %v2254 = vsel %vm2247, %v2250, %v2253
    %v2255 = vsel %vm2244, nan, %v2254
    %v2256 = vand.u32 2147483647, %v316
    %vm2257 = vcmp.le.f32.partialorder %v2256, 0.7853982
    %vm2258 = vcmp.lt.s32.totalorder %v316, 0
    %v2259 = vand.u32 %v316, 2139095040
    %v2260 = vshrl.u32 %v2259, 23
    %v2261 = vsub.s32 %v2260, 127
    %v2262 = vand.u32 2147483647, %v316
    %v2263 = vand.u32 %v2262, 8388607
    %v2264 = vor.u32 %v2263, 8388608
    %v2265 = vsub.s32 0, %v2264
    %v2266 = vadd.s32 %v2261, 1
    %vm2267 = vcmp.gt.s32.totalorder %v2266, 0
    %v2268 = vsel %vm2267, %v2266, 0
    %v2269 = vshrl.u32 %v2268, 5
    %v2270 = vand.u32 %v2268, 31
    %v2271 = vsub.s32 32, %v2270
    %v2272 = vshrl.u32 683565275, %v2271
    %v2273 = vshll.u32 683565275, %v2270
    %v2274 = vshrl.u32 2475754826, %v2271
    %v2275 = vor.u32 %v2273, %v2274
    %v2276 = vshll.u32 2475754826, %v2270
    %v2277 = vshrl.u32 2131351028, %v2271
    %v2278 = vor.u32 %v2276, %v2277
    %v2279 = vshll.u32 2131351028, %v2270
    %v2280 = vshrl.u32 2102212464, %v2271
    %v2281 = vor.u32 %v2279, %v2280
    %v2282 = vshll.u32 2102212464, %v2270
    %v2283 = vshrl.u32 920167782, %v2271
    %v2284 = vor.u32 %v2282, %v2283
    %v2285 = vshll.u32 920167782, %v2270
    %v2286 = vshrl.u32 1326507024, %v2271
    %v2287 = vor.u32 %v2285, %v2286
    %vm2288 = vcmp.lt.s32.totalorder %v2269, 1
    %vm2289 = vcmp.lt.s32.totalorder %v2269, 2
    %vm2290 = vcmp.lt.s32.totalorder %v2269, 3
    %vm2291 = vcmp.lt.s32.totalorder %v2269, 4
    %v2292 = vsel %vm2288, %v2272, %v2275
    %v2293 = vsel %vm2291, %v2281, 2102212464
    %v2294 = vsel %vm2290, %v2278, %v2293
    %v2295 = vsel %vm2289, %v2292, %v2294
    %v2296 = vsel %vm2288, %v2275, %v2278
    %v2297 = vsel %vm2291, %v2284, 920167782
    %v2298 = vsel %vm2290, %v2281, %v2297
    %v2299 = vsel %vm2289, %v2296, %v2298
    %v2300 = vsel %vm2288, %v2278, %v2281
    %v2301 = vsel %vm2291, %v2287, 1326507024
    %v2302 = vsel %vm2290, %v2284, %v2301
    %v2303 = vsel %vm2289, %v2300, %v2302
    %v2304 = vshll.u32 %v2264, 8
    %v2305 = vmul.u32.u64.compose %v2304, %v2303
    %v2306 = vextract.low.u32 %v2305
    %v2307 = vextract.high.u32 %v2305
    %v2308 = vmul.u32.u64.compose %v2304, %v2299
    %v2309 = vextract.low.u32 %v2308
    %v2310 = vextract.high.u32 %v2308
    %v2311 = vmul.u32 %v2304, %v2295
    %v2312 = vadd.s32 %v2307, %v2309
    %vm2313 = vc.u32 %v2307, %v2309
    %v2314 = vadd.s32 %v2310, 1
    %v2315 = vsel %vm2313, %v2314, %v2310
    %v2316 = vadd.s32 %v2311, %v2315
    %v2317 = vadd.s32 %v2316, 536870912
    %v2318 = vshrl.u32 %v2317, 30
    %v2319 = vshll.u32 %v2318, 30
    %v2320 = vsub.s32 %v2316, %v2319
    %vm2321 = vcmp.lt.s32.totalorder %v2320, 0
    %v2322 = vsub.s32 0, %v2320
    %v2323 = vsel %vm2321, %v2322, %v2320
    %v2324 = vclz %v2323
    %v2325 = vsub.s32 %v2324, 2
    %vm2326 = vcmp.gt.s32.totalorder 0, %v2325
    %v2327 = vsel %vm2326, 0, %v2325
    %v2328 = vsub.s32 32, %v2327
    %v2329 = vshll.u32 %v2320, %v2327
    %v2330 = vshrl.u32 %v2312, %v2328
    %v2331 = vor.u32 %v2329, %v2330
    %v2332 = vsub.s32 4294967266, %v2327
    %v2333 = vadd.s32 %v2332, 127
    %v2334 = vshll.u32 %v2333, 23
    %v2335 = vor.u32 4788187, %v2334
    %v2336 = vand.u32 2147483647, %v2335
    %v2338 = vcvt.s32.f32 %v2331
    %v2339 = vmul.f32 %v2338, %v2336
    %v2340 = vxor.u32 %v2339, 2147483648
    %v2341 = vsel %vm2258, %v2340, %v2339
    %v2342 = vsub.s32 4, %v2318
    %v2343 = vsel %vm2258, %v2342, %v2318
    %v2344 = vsel %vm2257, %v316, %v2341
    %v2345 = vsel %vm2257, 0, %v2343
    %v2346 = vcosq.f32.pop %v2344
    %v2347 = vsinq.f32.pop %v2344
    %vm2348 = vweird.f32 %v316
    %v2349 = vadd.s32 %v2345, 3
    %v2350 = vand.u32 %v2349, 3
    %vm2351 = vcmp.lt.s32.totalorder %v2350, 2
    %vm2352 = vcmp.eq.s32.totalorder %v2350, 0
    %v2353 = vxor.u32 %v2347, 2147483648
    %v2354 = vsel %vm2352, %v2346, %v2353
    %vm2355 = vcmp.eq.s32.totalorder %v2350, 2
    %v2356 = vxor.u32 %v2346, 2147483648
    %v2357 = vsel %vm2355, %v2356, %v2347
    %v2358 = vsel %vm2351, %v2354, %v2357
    %v2359 = vsel %vm2348, nan, %v2358
    %v2360 = vand.u32 2147483647, %v321
    %vm2361 = vcmp.le.f32.partialorder %v2360, 0.7853982
    %vm2362 = vcmp.lt.s32.totalorder %v321, 0
    %v2363 = vand.u32 %v321, 2139095040
    %v2364 = vshrl.u32 %v2363, 23
    %v2365 = vsub.s32 %v2364, 127
    %v2366 = vand.u32 2147483647, %v321
    %v2367 = vand.u32 %v2366, 8388607
    %v2368 = vor.u32 %v2367, 8388608
    %v2369 = vsub.s32 0, %v2368
    %v2370 = vadd.s32 %v2365, 1
    %vm2371 = vcmp.gt.s32.totalorder %v2370, 0
    %v2372 = vsel %vm2371, %v2370, 0
    %v2373 = vshrl.u32 %v2372, 5
    %v2374 = vand.u32 %v2372, 31
    %v2375 = vsub.s32 32, %v2374
    %v2376 = vshrl.u32 683565275, %v2375
    %v2377 = vshll.u32 683565275, %v2374
    %v2378 = vshrl.u32 2475754826, %v2375
    %v2379 = vor.u32 %v2377, %v2378
    %v2380 = vshll.u32 2475754826, %v2374
    %v2381 = vshrl.u32 2131351028, %v2375
    %v2382 = vor.u32 %v2380, %v2381
    %v2383 = vshll.u32 2131351028, %v2374
    %v2384 = vshrl.u32 2102212464, %v2375
    %v2385 = vor.u32 %v2383, %v2384
    %v2386 = vshll.u32 2102212464, %v2374
    %v2387 = vshrl.u32 920167782, %v2375
    %v2388 = vor.u32 %v2386, %v2387
    %v2389 = vshll.u32 920167782, %v2374
    %v2390 = vshrl.u32 1326507024, %v2375
    %v2391 = vor.u32 %v2389, %v2390
    %vm2392 = vcmp.lt.s32.totalorder %v2373, 1
    %vm2393 = vcmp.lt.s32.totalorder %v2373, 2
    %vm2394 = vcmp.lt.s32.totalorder %v2373, 3
    %vm2395 = vcmp.lt.s32.totalorder %v2373, 4
    %v2396 = vsel %vm2392, %v2376, %v2379
    %v2397 = vsel %vm2395, %v2385, 2102212464
    %v2398 = vsel %vm2394, %v2382, %v2397
    %v2399 = vsel %vm2393, %v2396, %v2398
    %v2400 = vsel %vm2392, %v2379, %v2382
    %v2401 = vsel %vm2395, %v2388, 920167782
    %v2402 = vsel %vm2394, %v2385, %v2401
    %v2403 = vsel %vm2393, %v2400, %v2402
    %v2404 = vsel %vm2392, %v2382, %v2385
    %v2405 = vsel %vm2395, %v2391, 1326507024
    %v2406 = vsel %vm2394, %v2388, %v2405
    %v2407 = vsel %vm2393, %v2404, %v2406
    %v2408 = vshll.u32 %v2368, 8
    %v2409 = vmul.u32.u64.compose %v2408, %v2407
    %v2410 = vextract.low.u32 %v2409
    %v2411 = vextract.high.u32 %v2409
    %v2412 = vmul.u32.u64.compose %v2408, %v2403
    %v2413 = vextract.low.u32 %v2412
    %v2414 = vextract.high.u32 %v2412
    %v2415 = vmul.u32 %v2408, %v2399
    %v2416 = vadd.s32 %v2411, %v2413
    %vm2417 = vc.u32 %v2411, %v2413
    %v2418 = vadd.s32 %v2414, 1
    %v2419 = vsel %vm2417, %v2418, %v2414
    %v2420 = vadd.s32 %v2415, %v2419
    %v2421 = vadd.s32 %v2420, 536870912
    %v2422 = vshrl.u32 %v2421, 30
    %v2423 = vshll.u32 %v2422, 30
    %v2424 = vsub.s32 %v2420, %v2423
    %vm2425 = vcmp.lt.s32.totalorder %v2424, 0
    %v2426 = vsub.s32 0, %v2424
    %v2427 = vsel %vm2425, %v2426, %v2424
    %v2428 = vclz %v2427
    %v2429 = vsub.s32 %v2428, 2
    %vm2430 = vcmp.gt.s32.totalorder 0, %v2429
    %v2431 = vsel %vm2430, 0, %v2429
    %v2432 = vsub.s32 32, %v2431
    %v2433 = vshll.u32 %v2424, %v2431
    %v2434 = vshrl.u32 %v2416, %v2432
    %v2435 = vor.u32 %v2433, %v2434
    %v2436 = vsub.s32 4294967266, %v2431
    %v2437 = vadd.s32 %v2436, 127
    %v2438 = vshll.u32 %v2437, 23
    %v2439 = vor.u32 4788187, %v2438
    %v2440 = vand.u32 2147483647, %v2439
    %v2442 = vcvt.s32.f32 %v2435
    %v2443 = vmul.f32 %v2442, %v2440
    %v2444 = vxor.u32 %v2443, 2147483648
    %v2445 = vsel %vm2362, %v2444, %v2443
    %v2446 = vsub.s32 4, %v2422
    %v2447 = vsel %vm2362, %v2446, %v2422
    %v2448 = vsel %vm2361, %v321, %v2445
    %v2449 = vsel %vm2361, 0, %v2447
    %v2450 = vcosq.f32.pop %v2448
    %v2451 = vsinq.f32.pop %v2448
    %vm2452 = vweird.f32 %v321
    %v2453 = vadd.s32 %v2449, 3
    %v2454 = vand.u32 %v2453, 3
    %vm2455 = vcmp.lt.s32.totalorder %v2454, 2
    %vm2456 = vcmp.eq.s32.totalorder %v2454, 0
    %v2457 = vxor.u32 %v2451, 2147483648
    %v2458 = vsel %vm2456, %v2450, %v2457
    %vm2459 = vcmp.eq.s32.totalorder %v2454, 2
    %v2460 = vxor.u32 %v2450, 2147483648
    %v2461 = vsel %vm2459, %v2460, %v2451
    %v2462 = vsel %vm2455, %v2458, %v2461
    %v2463 = vsel %vm2452, nan, %v2462
    %v2464 = vand.u32 2147483647, %v326
    %vm2465 = vcmp.le.f32.partialorder %v2464, 0.7853982
    %vm2466 = vcmp.lt.s32.totalorder %v326, 0
    %v2467 = vand.u32 %v326, 2139095040
    %v2468 = vshrl.u32 %v2467, 23
    %v2469 = vsub.s32 %v2468, 127
    %v2470 = vand.u32 2147483647, %v326
    %v2471 = vand.u32 %v2470, 8388607
    %v2472 = vor.u32 %v2471, 8388608
    %v2473 = vsub.s32 0, %v2472
    %v2474 = vadd.s32 %v2469, 1
    %vm2475 = vcmp.gt.s32.totalorder %v2474, 0
    %v2476 = vsel %vm2475, %v2474, 0
    %v2477 = vshrl.u32 %v2476, 5
    %v2478 = vand.u32 %v2476, 31
    %v2479 = vsub.s32 32, %v2478
    %v2480 = vshrl.u32 683565275, %v2479
    %v2481 = vshll.u32 683565275, %v2478
    %v2482 = vshrl.u32 2475754826, %v2479
    %v2483 = vor.u32 %v2481, %v2482
    %v2484 = vshll.u32 2475754826, %v2478
    %v2485 = vshrl.u32 2131351028, %v2479
    %v2486 = vor.u32 %v2484, %v2485
    %v2487 = vshll.u32 2131351028, %v2478
    %v2488 = vshrl.u32 2102212464, %v2479
    %v2489 = vor.u32 %v2487, %v2488
    %v2490 = vshll.u32 2102212464, %v2478
    %v2491 = vshrl.u32 920167782, %v2479
    %v2492 = vor.u32 %v2490, %v2491
    %v2493 = vshll.u32 920167782, %v2478
    %v2494 = vshrl.u32 1326507024, %v2479
    %v2495 = vor.u32 %v2493, %v2494
    %vm2496 = vcmp.lt.s32.totalorder %v2477, 1
    %vm2497 = vcmp.lt.s32.totalorder %v2477, 2
    %vm2498 = vcmp.lt.s32.totalorder %v2477, 3
    %vm2499 = vcmp.lt.s32.totalorder %v2477, 4
    %v2500 = vsel %vm2496, %v2480, %v2483
    %v2501 = vsel %vm2499, %v2489, 2102212464
    %v2502 = vsel %vm2498, %v2486, %v2501
    %v2503 = vsel %vm2497, %v2500, %v2502
    %v2504 = vsel %vm2496, %v2483, %v2486
    %v2505 = vsel %vm2499, %v2492, 920167782
    %v2506 = vsel %vm2498, %v2489, %v2505
    %v2507 = vsel %vm2497, %v2504, %v2506
    %v2508 = vsel %vm2496, %v2486, %v2489
    %v2509 = vsel %vm2499, %v2495, 1326507024
    %v2510 = vsel %vm2498, %v2492, %v2509
    %v2511 = vsel %vm2497, %v2508, %v2510
    %v2512 = vshll.u32 %v2472, 8
    %v2513 = vmul.u32.u64.compose %v2512, %v2511
    %v2514 = vextract.low.u32 %v2513
    %v2515 = vextract.high.u32 %v2513
    %v2516 = vmul.u32.u64.compose %v2512, %v2507
    %v2517 = vextract.low.u32 %v2516
    %v2518 = vextract.high.u32 %v2516
    %v2519 = vmul.u32 %v2512, %v2503
    %v2520 = vadd.s32 %v2515, %v2517
    %vm2521 = vc.u32 %v2515, %v2517
    %v2522 = vadd.s32 %v2518, 1
    %v2523 = vsel %vm2521, %v2522, %v2518
    %v2524 = vadd.s32 %v2519, %v2523
    %v2525 = vadd.s32 %v2524, 536870912
    %v2526 = vshrl.u32 %v2525, 30
    %v2527 = vshll.u32 %v2526, 30
    %v2528 = vsub.s32 %v2524, %v2527
    %vm2529 = vcmp.lt.s32.totalorder %v2528, 0
    %v2530 = vsub.s32 0, %v2528
    %v2531 = vsel %vm2529, %v2530, %v2528
    %v2532 = vclz %v2531
    %v2533 = vsub.s32 %v2532, 2
    %vm2534 = vcmp.gt.s32.totalorder 0, %v2533
    %v2535 = vsel %vm2534, 0, %v2533
    %v2536 = vsub.s32 32, %v2535
    %v2537 = vshll.u32 %v2528, %v2535
    %v2538 = vshrl.u32 %v2520, %v2536
    %v2539 = vor.u32 %v2537, %v2538
    %v2540 = vsub.s32 4294967266, %v2535
    %v2541 = vadd.s32 %v2540, 127
    %v2542 = vshll.u32 %v2541, 23
    %v2543 = vor.u32 4788187, %v2542
    %v2544 = vand.u32 2147483647, %v2543
    %v2546 = vcvt.s32.f32 %v2539
    %v2547 = vmul.f32 %v2546, %v2544
    %v2548 = vxor.u32 %v2547, 2147483648
    %v2549 = vsel %vm2466, %v2548, %v2547
    %v2550 = vsub.s32 4, %v2526
    %v2551 = vsel %vm2466, %v2550, %v2526
    %v2552 = vsel %vm2465, %v326, %v2549
    %v2553 = vsel %vm2465, 0, %v2551
    %v2554 = vcosq.f32.pop %v2552
    %v2555 = vsinq.f32.pop %v2552
    %vm2556 = vweird.f32 %v326
    %v2557 = vadd.s32 %v2553, 3
    %v2558 = vand.u32 %v2557, 3
    %vm2559 = vcmp.lt.s32.totalorder %v2558, 2
    %vm2560 = vcmp.eq.s32.totalorder %v2558, 0
    %v2561 = vxor.u32 %v2555, 2147483648
    %v2562 = vsel %vm2560, %v2554, %v2561
    %vm2563 = vcmp.eq.s32.totalorder %v2558, 2
    %v2564 = vxor.u32 %v2554, 2147483648
    %v2565 = vsel %vm2563, %v2564, %v2555
    %v2566 = vsel %vm2559, %v2562, %v2565
    %v2567 = vsel %vm2556, nan, %v2566
    %v2568 = vand.u32 2147483647, %v331
    %vm2569 = vcmp.le.f32.partialorder %v2568, 0.7853982
    %vm2570 = vcmp.lt.s32.totalorder %v331, 0
    %v2571 = vand.u32 %v331, 2139095040
    %v2572 = vshrl.u32 %v2571, 23
    %v2573 = vsub.s32 %v2572, 127
    %v2574 = vand.u32 2147483647, %v331
    %v2575 = vand.u32 %v2574, 8388607
    %v2576 = vor.u32 %v2575, 8388608
    %v2577 = vsub.s32 0, %v2576
    %v2578 = vadd.s32 %v2573, 1
    %vm2579 = vcmp.gt.s32.totalorder %v2578, 0
    %v2580 = vsel %vm2579, %v2578, 0
    %v2581 = vshrl.u32 %v2580, 5
    %v2582 = vand.u32 %v2580, 31
    %v2583 = vsub.s32 32, %v2582
    %v2584 = vshrl.u32 683565275, %v2583
    %v2585 = vshll.u32 683565275, %v2582
    %v2586 = vshrl.u32 2475754826, %v2583
    %v2587 = vor.u32 %v2585, %v2586
    %v2588 = vshll.u32 2475754826, %v2582
    %v2589 = vshrl.u32 2131351028, %v2583
    %v2590 = vor.u32 %v2588, %v2589
    %v2591 = vshll.u32 2131351028, %v2582
    %v2592 = vshrl.u32 2102212464, %v2583
    %v2593 = vor.u32 %v2591, %v2592
    %v2594 = vshll.u32 2102212464, %v2582
    %v2595 = vshrl.u32 920167782, %v2583
    %v2596 = vor.u32 %v2594, %v2595
    %v2597 = vshll.u32 920167782, %v2582
    %v2598 = vshrl.u32 1326507024, %v2583
    %v2599 = vor.u32 %v2597, %v2598
    %vm2600 = vcmp.lt.s32.totalorder %v2581, 1
    %vm2601 = vcmp.lt.s32.totalorder %v2581, 2
    %vm2602 = vcmp.lt.s32.totalorder %v2581, 3
    %vm2603 = vcmp.lt.s32.totalorder %v2581, 4
    %v2604 = vsel %vm2600, %v2584, %v2587
    %v2605 = vsel %vm2603, %v2593, 2102212464
    %v2606 = vsel %vm2602, %v2590, %v2605
    %v2607 = vsel %vm2601, %v2604, %v2606
    %v2608 = vsel %vm2600, %v2587, %v2590
    %v2609 = vsel %vm2603, %v2596, 920167782
    %v2610 = vsel %vm2602, %v2593, %v2609
    %v2611 = vsel %vm2601, %v2608, %v2610
    %v2612 = vsel %vm2600, %v2590, %v2593
    %v2613 = vsel %vm2603, %v2599, 1326507024
    %v2614 = vsel %vm2602, %v2596, %v2613
    %v2615 = vsel %vm2601, %v2612, %v2614
    %v2616 = vshll.u32 %v2576, 8
    %v2617 = vmul.u32.u64.compose %v2616, %v2615
    %v2618 = vextract.low.u32 %v2617
    %v2619 = vextract.high.u32 %v2617
    %v2620 = vmul.u32.u64.compose %v2616, %v2611
    %v2621 = vextract.low.u32 %v2620
    %v2622 = vextract.high.u32 %v2620
    %v2623 = vmul.u32 %v2616, %v2607
    %v2624 = vadd.s32 %v2619, %v2621
    %vm2625 = vc.u32 %v2619, %v2621
    %v2626 = vadd.s32 %v2622, 1
    %v2627 = vsel %vm2625, %v2626, %v2622
    %v2628 = vadd.s32 %v2623, %v2627
    %v2629 = vadd.s32 %v2628, 536870912
    %v2630 = vshrl.u32 %v2629, 30
    %v2631 = vshll.u32 %v2630, 30
    %v2632 = vsub.s32 %v2628, %v2631
    %vm2633 = vcmp.lt.s32.totalorder %v2632, 0
    %v2634 = vsub.s32 0, %v2632
    %v2635 = vsel %vm2633, %v2634, %v2632
    %v2636 = vclz %v2635
    %v2637 = vsub.s32 %v2636, 2
    %vm2638 = vcmp.gt.s32.totalorder 0, %v2637
    %v2639 = vsel %vm2638, 0, %v2637
    %v2640 = vsub.s32 32, %v2639
    %v2641 = vshll.u32 %v2632, %v2639
    %v2642 = vshrl.u32 %v2624, %v2640
    %v2643 = vor.u32 %v2641, %v2642
    %v2644 = vsub.s32 4294967266, %v2639
    %v2645 = vadd.s32 %v2644, 127
    %v2646 = vshll.u32 %v2645, 23
    %v2647 = vor.u32 4788187, %v2646
    %v2648 = vand.u32 2147483647, %v2647
    %v2650 = vcvt.s32.f32 %v2643
    %v2651 = vmul.f32 %v2650, %v2648
    %v2652 = vxor.u32 %v2651, 2147483648
    %v2653 = vsel %vm2570, %v2652, %v2651
    %v2654 = vsub.s32 4, %v2630
    %v2655 = vsel %vm2570, %v2654, %v2630
    %v2656 = vsel %vm2569, %v331, %v2653
    %v2657 = vsel %vm2569, 0, %v2655
    %v2658 = vcosq.f32.pop %v2656
    %v2659 = vsinq.f32.pop %v2656
    %vm2660 = vweird.f32 %v331
    %v2661 = vadd.s32 %v2657, 3
    %v2662 = vand.u32 %v2661, 3
    %vm2663 = vcmp.lt.s32.totalorder %v2662, 2
    %vm2664 = vcmp.eq.s32.totalorder %v2662, 0
    %v2665 = vxor.u32 %v2659, 2147483648
    %v2666 = vsel %vm2664, %v2658, %v2665
    %vm2667 = vcmp.eq.s32.totalorder %v2662, 2
    %v2668 = vxor.u32 %v2658, 2147483648
    %v2669 = vsel %vm2667, %v2668, %v2659
    %v2670 = vsel %vm2663, %v2666, %v2669
    %v2671 = vsel %vm2660, nan, %v2670
    %v2672 = vand.u32 2147483647, %v336
    %vm2673 = vcmp.le.f32.partialorder %v2672, 0.7853982
    %vm2674 = vcmp.lt.s32.totalorder %v336, 0
    %v2675 = vand.u32 %v336, 2139095040
    %v2676 = vshrl.u32 %v2675, 23
    %v2677 = vsub.s32 %v2676, 127
    %v2678 = vand.u32 2147483647, %v336
    %v2679 = vand.u32 %v2678, 8388607
    %v2680 = vor.u32 %v2679, 8388608
    %v2681 = vsub.s32 0, %v2680
    %v2682 = vadd.s32 %v2677, 1
    %vm2683 = vcmp.gt.s32.totalorder %v2682, 0
    %v2684 = vsel %vm2683, %v2682, 0
    %v2685 = vshrl.u32 %v2684, 5
    %v2686 = vand.u32 %v2684, 31
    %v2687 = vsub.s32 32, %v2686
    %v2688 = vshrl.u32 683565275, %v2687
    %v2689 = vshll.u32 683565275, %v2686
    %v2690 = vshrl.u32 2475754826, %v2687
    %v2691 = vor.u32 %v2689, %v2690
    %v2692 = vshll.u32 2475754826, %v2686
    %v2693 = vshrl.u32 2131351028, %v2687
    %v2694 = vor.u32 %v2692, %v2693
    %v2695 = vshll.u32 2131351028, %v2686
    %v2696 = vshrl.u32 2102212464, %v2687
    %v2697 = vor.u32 %v2695, %v2696
    %v2698 = vshll.u32 2102212464, %v2686
    %v2699 = vshrl.u32 920167782, %v2687
    %v2700 = vor.u32 %v2698, %v2699
    %v2701 = vshll.u32 920167782, %v2686
    %v2702 = vshrl.u32 1326507024, %v2687
    %v2703 = vor.u32 %v2701, %v2702
    %vm2704 = vcmp.lt.s32.totalorder %v2685, 1
    %vm2705 = vcmp.lt.s32.totalorder %v2685, 2
    %vm2706 = vcmp.lt.s32.totalorder %v2685, 3
    %vm2707 = vcmp.lt.s32.totalorder %v2685, 4
    %v2708 = vsel %vm2704, %v2688, %v2691
    %v2709 = vsel %vm2707, %v2697, 2102212464
    %v2710 = vsel %vm2706, %v2694, %v2709
    %v2711 = vsel %vm2705, %v2708, %v2710
    %v2712 = vsel %vm2704, %v2691, %v2694
    %v2713 = vsel %vm2707, %v2700, 920167782
    %v2714 = vsel %vm2706, %v2697, %v2713
    %v2715 = vsel %vm2705, %v2712, %v2714
    %v2716 = vsel %vm2704, %v2694, %v2697
    %v2717 = vsel %vm2707, %v2703, 1326507024
    %v2718 = vsel %vm2706, %v2700, %v2717
    %v2719 = vsel %vm2705, %v2716, %v2718
    %v2720 = vshll.u32 %v2680, 8
    %v2721 = vmul.u32.u64.compose %v2720, %v2719
    %v2722 = vextract.low.u32 %v2721
    %v2723 = vextract.high.u32 %v2721
    %v2724 = vmul.u32.u64.compose %v2720, %v2715
    %v2725 = vextract.low.u32 %v2724
    %v2726 = vextract.high.u32 %v2724
    %v2727 = vmul.u32 %v2720, %v2711
    %v2728 = vadd.s32 %v2723, %v2725
    %vm2729 = vc.u32 %v2723, %v2725
    %v2730 = vadd.s32 %v2726, 1
    %v2731 = vsel %vm2729, %v2730, %v2726
    %v2732 = vadd.s32 %v2727, %v2731
    %v2733 = vadd.s32 %v2732, 536870912
    %v2734 = vshrl.u32 %v2733, 30
    %v2735 = vshll.u32 %v2734, 30
    %v2736 = vsub.s32 %v2732, %v2735
    %vm2737 = vcmp.lt.s32.totalorder %v2736, 0
    %v2738 = vsub.s32 0, %v2736
    %v2739 = vsel %vm2737, %v2738, %v2736
    %v2740 = vclz %v2739
    %v2741 = vsub.s32 %v2740, 2
    %vm2742 = vcmp.gt.s32.totalorder 0, %v2741
    %v2743 = vsel %vm2742, 0, %v2741
    %v2744 = vsub.s32 32, %v2743
    %v2745 = vshll.u32 %v2736, %v2743
    %v2746 = vshrl.u32 %v2728, %v2744
    %v2747 = vor.u32 %v2745, %v2746
    %v2748 = vsub.s32 4294967266, %v2743
    %v2749 = vadd.s32 %v2748, 127
    %v2750 = vshll.u32 %v2749, 23
    %v2751 = vor.u32 4788187, %v2750
    %v2752 = vand.u32 2147483647, %v2751
    %v2754 = vcvt.s32.f32 %v2747
    %v2755 = vmul.f32 %v2754, %v2752
    %v2756 = vxor.u32 %v2755, 2147483648
    %v2757 = vsel %vm2674, %v2756, %v2755
    %v2758 = vsub.s32 4, %v2734
    %v2759 = vsel %vm2674, %v2758, %v2734
    %v2760 = vsel %vm2673, %v336, %v2757
    %v2761 = vsel %vm2673, 0, %v2759
    %v2762 = vcosq.f32.pop %v2760
    %v2763 = vsinq.f32.pop %v2760
    %vm2764 = vweird.f32 %v336
    %v2765 = vadd.s32 %v2761, 3
    %v2766 = vand.u32 %v2765, 3
    %vm2767 = vcmp.lt.s32.totalorder %v2766, 2
    %vm2768 = vcmp.eq.s32.totalorder %v2766, 0
    %v2769 = vxor.u32 %v2763, 2147483648
    %v2770 = vsel %vm2768, %v2762, %v2769
    %vm2771 = vcmp.eq.s32.totalorder %v2766, 2
    %v2772 = vxor.u32 %v2762, 2147483648
    %v2773 = vsel %vm2771, %v2772, %v2763
    %v2774 = vsel %vm2767, %v2770, %v2773
    %v2775 = vsel %vm2764, nan, %v2774
    %v2776 = vand.u32 2147483647, %v341
    %vm2777 = vcmp.le.f32.partialorder %v2776, 0.7853982
    %vm2778 = vcmp.lt.s32.totalorder %v341, 0
    %v2779 = vand.u32 %v341, 2139095040
    %v2780 = vshrl.u32 %v2779, 23
    %v2781 = vsub.s32 %v2780, 127
    %v2782 = vand.u32 2147483647, %v341
    %v2783 = vand.u32 %v2782, 8388607
    %v2784 = vor.u32 %v2783, 8388608
    %v2785 = vsub.s32 0, %v2784
    %v2786 = vadd.s32 %v2781, 1
    %vm2787 = vcmp.gt.s32.totalorder %v2786, 0
    %v2788 = vsel %vm2787, %v2786, 0
    %v2789 = vshrl.u32 %v2788, 5
    %v2790 = vand.u32 %v2788, 31
    %v2791 = vsub.s32 32, %v2790
    %v2792 = vshrl.u32 683565275, %v2791
    %v2793 = vshll.u32 683565275, %v2790
    %v2794 = vshrl.u32 2475754826, %v2791
    %v2795 = vor.u32 %v2793, %v2794
    %v2796 = vshll.u32 2475754826, %v2790
    %v2797 = vshrl.u32 2131351028, %v2791
    %v2798 = vor.u32 %v2796, %v2797
    %v2799 = vshll.u32 2131351028, %v2790
    %v2800 = vshrl.u32 2102212464, %v2791
    %v2801 = vor.u32 %v2799, %v2800
    %v2802 = vshll.u32 2102212464, %v2790
    %v2803 = vshrl.u32 920167782, %v2791
    %v2804 = vor.u32 %v2802, %v2803
    %v2805 = vshll.u32 920167782, %v2790
    %v2806 = vshrl.u32 1326507024, %v2791
    %v2807 = vor.u32 %v2805, %v2806
    %vm2808 = vcmp.lt.s32.totalorder %v2789, 1
    %vm2809 = vcmp.lt.s32.totalorder %v2789, 2
    %vm2810 = vcmp.lt.s32.totalorder %v2789, 3
    %vm2811 = vcmp.lt.s32.totalorder %v2789, 4
    %v2812 = vsel %vm2808, %v2792, %v2795
    %v2813 = vsel %vm2811, %v2801, 2102212464
    %v2814 = vsel %vm2810, %v2798, %v2813
    %v2815 = vsel %vm2809, %v2812, %v2814
    %v2816 = vsel %vm2808, %v2795, %v2798
    %v2817 = vsel %vm2811, %v2804, 920167782
    %v2818 = vsel %vm2810, %v2801, %v2817
    %v2819 = vsel %vm2809, %v2816, %v2818
    %v2820 = vsel %vm2808, %v2798, %v2801
    %v2821 = vsel %vm2811, %v2807, 1326507024
    %v2822 = vsel %vm2810, %v2804, %v2821
    %v2823 = vsel %vm2809, %v2820, %v2822
    %v2824 = vshll.u32 %v2784, 8
    %v2825 = vmul.u32.u64.compose %v2824, %v2823
    %v2826 = vextract.low.u32 %v2825
    %v2827 = vextract.high.u32 %v2825
    %v2828 = vmul.u32.u64.compose %v2824, %v2819
    %v2829 = vextract.low.u32 %v2828
    %v2830 = vextract.high.u32 %v2828
    %v2831 = vmul.u32 %v2824, %v2815
    %v2832 = vadd.s32 %v2827, %v2829
    %vm2833 = vc.u32 %v2827, %v2829
    %v2834 = vadd.s32 %v2830, 1
    %v2835 = vsel %vm2833, %v2834, %v2830
    %v2836 = vadd.s32 %v2831, %v2835
    %v2837 = vadd.s32 %v2836, 536870912
    %v2838 = vshrl.u32 %v2837, 30
    %v2839 = vshll.u32 %v2838, 30
    %v2840 = vsub.s32 %v2836, %v2839
    %vm2841 = vcmp.lt.s32.totalorder %v2840, 0
    %v2842 = vsub.s32 0, %v2840
    %v2843 = vsel %vm2841, %v2842, %v2840
    %v2844 = vclz %v2843
    %v2845 = vsub.s32 %v2844, 2
    %vm2846 = vcmp.gt.s32.totalorder 0, %v2845
    %v2847 = vsel %vm2846, 0, %v2845
    %v2848 = vsub.s32 32, %v2847
    %v2849 = vshll.u32 %v2840, %v2847
    %v2850 = vshrl.u32 %v2832, %v2848
    %v2851 = vor.u32 %v2849, %v2850
    %v2852 = vsub.s32 4294967266, %v2847
    %v2853 = vadd.s32 %v2852, 127
    %v2854 = vshll.u32 %v2853, 23
    %v2855 = vor.u32 4788187, %v2854
    %v2856 = vand.u32 2147483647, %v2855
    %v2858 = vcvt.s32.f32 %v2851
    %v2859 = vmul.f32 %v2858, %v2856
    %v2860 = vxor.u32 %v2859, 2147483648
    %v2861 = vsel %vm2778, %v2860, %v2859
    %v2862 = vsub.s32 4, %v2838
    %v2863 = vsel %vm2778, %v2862, %v2838
    %v2864 = vsel %vm2777, %v341, %v2861
    %v2865 = vsel %vm2777, 0, %v2863
    %v2866 = vcosq.f32.pop %v2864
    %v2867 = vsinq.f32.pop %v2864
    %vm2868 = vweird.f32 %v341
    %v2869 = vadd.s32 %v2865, 3
    %v2870 = vand.u32 %v2869, 3
    %vm2871 = vcmp.lt.s32.totalorder %v2870, 2
    %vm2872 = vcmp.eq.s32.totalorder %v2870, 0
    %v2873 = vxor.u32 %v2867, 2147483648
    %v2874 = vsel %vm2872, %v2866, %v2873
    %vm2875 = vcmp.eq.s32.totalorder %v2870, 2
    %v2876 = vxor.u32 %v2866, 2147483648
    %v2877 = vsel %vm2875, %v2876, %v2867
    %v2878 = vsel %vm2871, %v2874, %v2877
    %v2879 = vsel %vm2868, nan, %v2878
    %v2880 = vand.u32 2147483647, %v346
    %vm2881 = vcmp.le.f32.partialorder %v2880, 0.7853982
    %vm2882 = vcmp.lt.s32.totalorder %v346, 0
    %v2883 = vand.u32 %v346, 2139095040
    %v2884 = vshrl.u32 %v2883, 23
    %v2885 = vsub.s32 %v2884, 127
    %v2886 = vand.u32 2147483647, %v346
    %v2887 = vand.u32 %v2886, 8388607
    %v2888 = vor.u32 %v2887, 8388608
    %v2889 = vsub.s32 0, %v2888
    %v2890 = vadd.s32 %v2885, 1
    %vm2891 = vcmp.gt.s32.totalorder %v2890, 0
    %v2892 = vsel %vm2891, %v2890, 0
    %v2893 = vshrl.u32 %v2892, 5
    %v2894 = vand.u32 %v2892, 31
    %v2895 = vsub.s32 32, %v2894
    %v2896 = vshrl.u32 683565275, %v2895
    %v2897 = vshll.u32 683565275, %v2894
    %v2898 = vshrl.u32 2475754826, %v2895
    %v2899 = vor.u32 %v2897, %v2898
    %v2900 = vshll.u32 2475754826, %v2894
    %v2901 = vshrl.u32 2131351028, %v2895
    %v2902 = vor.u32 %v2900, %v2901
    %v2903 = vshll.u32 2131351028, %v2894
    %v2904 = vshrl.u32 2102212464, %v2895
    %v2905 = vor.u32 %v2903, %v2904
    %v2906 = vshll.u32 2102212464, %v2894
    %v2907 = vshrl.u32 920167782, %v2895
    %v2908 = vor.u32 %v2906, %v2907
    %v2909 = vshll.u32 920167782, %v2894
    %v2910 = vshrl.u32 1326507024, %v2895
    %v2911 = vor.u32 %v2909, %v2910
    %vm2912 = vcmp.lt.s32.totalorder %v2893, 1
    %vm2913 = vcmp.lt.s32.totalorder %v2893, 2
    %vm2914 = vcmp.lt.s32.totalorder %v2893, 3
    %vm2915 = vcmp.lt.s32.totalorder %v2893, 4
    %v2916 = vsel %vm2912, %v2896, %v2899
    %v2917 = vsel %vm2915, %v2905, 2102212464
    %v2918 = vsel %vm2914, %v2902, %v2917
    %v2919 = vsel %vm2913, %v2916, %v2918
    %v2920 = vsel %vm2912, %v2899, %v2902
    %v2921 = vsel %vm2915, %v2908, 920167782
    %v2922 = vsel %vm2914, %v2905, %v2921
    %v2923 = vsel %vm2913, %v2920, %v2922
    %v2924 = vsel %vm2912, %v2902, %v2905
    %v2925 = vsel %vm2915, %v2911, 1326507024
    %v2926 = vsel %vm2914, %v2908, %v2925
    %v2927 = vsel %vm2913, %v2924, %v2926
    %v2928 = vshll.u32 %v2888, 8
    %v2929 = vmul.u32.u64.compose %v2928, %v2927
    %v2930 = vextract.low.u32 %v2929
    %v2931 = vextract.high.u32 %v2929
    %v2932 = vmul.u32.u64.compose %v2928, %v2923
    %v2933 = vextract.low.u32 %v2932
    %v2934 = vextract.high.u32 %v2932
    %v2935 = vmul.u32 %v2928, %v2919
    %v2936 = vadd.s32 %v2931, %v2933
    %vm2937 = vc.u32 %v2931, %v2933
    %v2938 = vadd.s32 %v2934, 1
    %v2939 = vsel %vm2937, %v2938, %v2934
    %v2940 = vadd.s32 %v2935, %v2939
    %v2941 = vadd.s32 %v2940, 536870912
    %v2942 = vshrl.u32 %v2941, 30
    %v2943 = vshll.u32 %v2942, 30
    %v2944 = vsub.s32 %v2940, %v2943
    %vm2945 = vcmp.lt.s32.totalorder %v2944, 0
    %v2946 = vsub.s32 0, %v2944
    %v2947 = vsel %vm2945, %v2946, %v2944
    %v2948 = vclz %v2947
    %v2949 = vsub.s32 %v2948, 2
    %vm2950 = vcmp.gt.s32.totalorder 0, %v2949
    %v2951 = vsel %vm2950, 0, %v2949
    %v2952 = vsub.s32 32, %v2951
    %v2953 = vshll.u32 %v2944, %v2951
    %v2954 = vshrl.u32 %v2936, %v2952
    %v2955 = vor.u32 %v2953, %v2954
    %v2956 = vsub.s32 4294967266, %v2951
    %v2957 = vadd.s32 %v2956, 127
    %v2958 = vshll.u32 %v2957, 23
    %v2959 = vor.u32 4788187, %v2958
    %v2960 = vand.u32 2147483647, %v2959
    %v2962 = vcvt.s32.f32 %v2955
    %v2963 = vmul.f32 %v2962, %v2960
    %v2964 = vxor.u32 %v2963, 2147483648
    %v2965 = vsel %vm2882, %v2964, %v2963
    %v2966 = vsub.s32 4, %v2942
    %v2967 = vsel %vm2882, %v2966, %v2942
    %v2968 = vsel %vm2881, %v346, %v2965
    %v2969 = vsel %vm2881, 0, %v2967
    %v2970 = vcosq.f32.pop %v2968
    %v2971 = vsinq.f32.pop %v2968
    %vm2972 = vweird.f32 %v346
    %v2973 = vadd.s32 %v2969, 3
    %v2974 = vand.u32 %v2973, 3
    %vm2975 = vcmp.lt.s32.totalorder %v2974, 2
    %vm2976 = vcmp.eq.s32.totalorder %v2974, 0
    %v2977 = vxor.u32 %v2971, 2147483648
    %v2978 = vsel %vm2976, %v2970, %v2977
    %vm2979 = vcmp.eq.s32.totalorder %v2974, 2
    %v2980 = vxor.u32 %v2970, 2147483648
    %v2981 = vsel %vm2979, %v2980, %v2971
    %v2982 = vsel %vm2975, %v2978, %v2981
    %v2983 = vsel %vm2972, nan, %v2982
    %v2984 = vand.u32 2147483647, %v351
    %vm2985 = vcmp.le.f32.partialorder %v2984, 0.7853982
    %vm2986 = vcmp.lt.s32.totalorder %v351, 0
    %v2987 = vand.u32 %v351, 2139095040
    %v2988 = vshrl.u32 %v2987, 23
    %v2989 = vsub.s32 %v2988, 127
    %v2990 = vand.u32 2147483647, %v351
    %v2991 = vand.u32 %v2990, 8388607
    %v2992 = vor.u32 %v2991, 8388608
    %v2993 = vsub.s32 0, %v2992
    %v2994 = vadd.s32 %v2989, 1
    %vm2995 = vcmp.gt.s32.totalorder %v2994, 0
    %v2996 = vsel %vm2995, %v2994, 0
    %v2997 = vshrl.u32 %v2996, 5
    %v2998 = vand.u32 %v2996, 31
    %v2999 = vsub.s32 32, %v2998
    %v3000 = vshrl.u32 683565275, %v2999
    %v3001 = vshll.u32 683565275, %v2998
    %v3002 = vshrl.u32 2475754826, %v2999
    %v3003 = vor.u32 %v3001, %v3002
    %v3004 = vshll.u32 2475754826, %v2998
    %v3005 = vshrl.u32 2131351028, %v2999
    %v3006 = vor.u32 %v3004, %v3005
    %v3007 = vshll.u32 2131351028, %v2998
    %v3008 = vshrl.u32 2102212464, %v2999
    %v3009 = vor.u32 %v3007, %v3008
    %v3010 = vshll.u32 2102212464, %v2998
    %v3011 = vshrl.u32 920167782, %v2999
    %v3012 = vor.u32 %v3010, %v3011
    %v3013 = vshll.u32 920167782, %v2998
    %v3014 = vshrl.u32 1326507024, %v2999
    %v3015 = vor.u32 %v3013, %v3014
    %vm3016 = vcmp.lt.s32.totalorder %v2997, 1
    %vm3017 = vcmp.lt.s32.totalorder %v2997, 2
    %vm3018 = vcmp.lt.s32.totalorder %v2997, 3
    %vm3019 = vcmp.lt.s32.totalorder %v2997, 4
    %v3020 = vsel %vm3016, %v3000, %v3003
    %v3021 = vsel %vm3019, %v3009, 2102212464
    %v3022 = vsel %vm3018, %v3006, %v3021
    %v3023 = vsel %vm3017, %v3020, %v3022
    %v3024 = vsel %vm3016, %v3003, %v3006
    %v3025 = vsel %vm3019, %v3012, 920167782
    %v3026 = vsel %vm3018, %v3009, %v3025
    %v3027 = vsel %vm3017, %v3024, %v3026
    %v3028 = vsel %vm3016, %v3006, %v3009
    %v3029 = vsel %vm3019, %v3015, 1326507024
    %v3030 = vsel %vm3018, %v3012, %v3029
    %v3031 = vsel %vm3017, %v3028, %v3030
    %v3032 = vshll.u32 %v2992, 8
    %v3033 = vmul.u32.u64.compose %v3032, %v3031
    %v3034 = vextract.low.u32 %v3033
    %v3035 = vextract.high.u32 %v3033
    %v3036 = vmul.u32.u64.compose %v3032, %v3027
    %v3037 = vextract.low.u32 %v3036
    %v3038 = vextract.high.u32 %v3036
    %v3039 = vmul.u32 %v3032, %v3023
    %v3040 = vadd.s32 %v3035, %v3037
    %vm3041 = vc.u32 %v3035, %v3037
    %v3042 = vadd.s32 %v3038, 1
    %v3043 = vsel %vm3041, %v3042, %v3038
    %v3044 = vadd.s32 %v3039, %v3043
    %v3045 = vadd.s32 %v3044, 536870912
    %v3046 = vshrl.u32 %v3045, 30
    %v3047 = vshll.u32 %v3046, 30
    %v3048 = vsub.s32 %v3044, %v3047
    %vm3049 = vcmp.lt.s32.totalorder %v3048, 0
    %v3050 = vsub.s32 0, %v3048
    %v3051 = vsel %vm3049, %v3050, %v3048
    %v3052 = vclz %v3051
    %v3053 = vsub.s32 %v3052, 2
    %vm3054 = vcmp.gt.s32.totalorder 0, %v3053
    %v3055 = vsel %vm3054, 0, %v3053
    %v3056 = vsub.s32 32, %v3055
    %v3057 = vshll.u32 %v3048, %v3055
    %v3058 = vshrl.u32 %v3040, %v3056
    %v3059 = vor.u32 %v3057, %v3058
    %v3060 = vsub.s32 4294967266, %v3055
    %v3061 = vadd.s32 %v3060, 127
    %v3062 = vshll.u32 %v3061, 23
    %v3063 = vor.u32 4788187, %v3062
    %v3064 = vand.u32 2147483647, %v3063
    %v3066 = vcvt.s32.f32 %v3059
    %v3067 = vmul.f32 %v3066, %v3064
    %v3068 = vxor.u32 %v3067, 2147483648
    %v3069 = vsel %vm2986, %v3068, %v3067
    %v3070 = vsub.s32 4, %v3046
    %v3071 = vsel %vm2986, %v3070, %v3046
    %v3072 = vsel %vm2985, %v351, %v3069
    %v3073 = vsel %vm2985, 0, %v3071
    %v3074 = vcosq.f32.pop %v3072
    %v3075 = vsinq.f32.pop %v3072
    %vm3076 = vweird.f32 %v351
    %v3077 = vadd.s32 %v3073, 3
    %v3078 = vand.u32 %v3077, 3
    %vm3079 = vcmp.lt.s32.totalorder %v3078, 2
    %vm3080 = vcmp.eq.s32.totalorder %v3078, 0
    %v3081 = vxor.u32 %v3075, 2147483648
    %v3082 = vsel %vm3080, %v3074, %v3081
    %vm3083 = vcmp.eq.s32.totalorder %v3078, 2
    %v3084 = vxor.u32 %v3074, 2147483648
    %v3085 = vsel %vm3083, %v3084, %v3075
    %v3086 = vsel %vm3079, %v3082, %v3085
    %v3087 = vsel %vm3076, nan, %v3086
    %v3088 = vand.u32 2147483647, %v356
    %vm3089 = vcmp.le.f32.partialorder %v3088, 0.7853982
    %vm3090 = vcmp.lt.s32.totalorder %v356, 0
    %v3091 = vand.u32 %v356, 2139095040
    %v3092 = vshrl.u32 %v3091, 23
    %v3093 = vsub.s32 %v3092, 127
    %v3094 = vand.u32 2147483647, %v356
    %v3095 = vand.u32 %v3094, 8388607
    %v3096 = vor.u32 %v3095, 8388608
    %v3097 = vsub.s32 0, %v3096
    %v3098 = vadd.s32 %v3093, 1
    %vm3099 = vcmp.gt.s32.totalorder %v3098, 0
    %v3100 = vsel %vm3099, %v3098, 0
    %v3101 = vshrl.u32 %v3100, 5
    %v3102 = vand.u32 %v3100, 31
    %v3103 = vsub.s32 32, %v3102
    %v3104 = vshrl.u32 683565275, %v3103
    %v3105 = vshll.u32 683565275, %v3102
    %v3106 = vshrl.u32 2475754826, %v3103
    %v3107 = vor.u32 %v3105, %v3106
    %v3108 = vshll.u32 2475754826, %v3102
    %v3109 = vshrl.u32 2131351028, %v3103
    %v3110 = vor.u32 %v3108, %v3109
    %v3111 = vshll.u32 2131351028, %v3102
    %v3112 = vshrl.u32 2102212464, %v3103
    %v3113 = vor.u32 %v3111, %v3112
    %v3114 = vshll.u32 2102212464, %v3102
    %v3115 = vshrl.u32 920167782, %v3103
    %v3116 = vor.u32 %v3114, %v3115
    %v3117 = vshll.u32 920167782, %v3102
    %v3118 = vshrl.u32 1326507024, %v3103
    %v3119 = vor.u32 %v3117, %v3118
    %vm3120 = vcmp.lt.s32.totalorder %v3101, 1
    %vm3121 = vcmp.lt.s32.totalorder %v3101, 2
    %vm3122 = vcmp.lt.s32.totalorder %v3101, 3
    %vm3123 = vcmp.lt.s32.totalorder %v3101, 4
    %v3124 = vsel %vm3120, %v3104, %v3107
    %v3125 = vsel %vm3123, %v3113, 2102212464
    %v3126 = vsel %vm3122, %v3110, %v3125
    %v3127 = vsel %vm3121, %v3124, %v3126
    %v3128 = vsel %vm3120, %v3107, %v3110
    %v3129 = vsel %vm3123, %v3116, 920167782
    %v3130 = vsel %vm3122, %v3113, %v3129
    %v3131 = vsel %vm3121, %v3128, %v3130
    %v3132 = vsel %vm3120, %v3110, %v3113
    %v3133 = vsel %vm3123, %v3119, 1326507024
    %v3134 = vsel %vm3122, %v3116, %v3133
    %v3135 = vsel %vm3121, %v3132, %v3134
    %v3136 = vshll.u32 %v3096, 8
    %v3137 = vmul.u32.u64.compose %v3136, %v3135
    %v3138 = vextract.low.u32 %v3137
    %v3139 = vextract.high.u32 %v3137
    %v3140 = vmul.u32.u64.compose %v3136, %v3131
    %v3141 = vextract.low.u32 %v3140
    %v3142 = vextract.high.u32 %v3140
    %v3143 = vmul.u32 %v3136, %v3127
    %v3144 = vadd.s32 %v3139, %v3141
    %vm3145 = vc.u32 %v3139, %v3141
    %v3146 = vadd.s32 %v3142, 1
    %v3147 = vsel %vm3145, %v3146, %v3142
    %v3148 = vadd.s32 %v3143, %v3147
    %v3149 = vadd.s32 %v3148, 536870912
    %v3150 = vshrl.u32 %v3149, 30
    %v3151 = vshll.u32 %v3150, 30
    %v3152 = vsub.s32 %v3148, %v3151
    %vm3153 = vcmp.lt.s32.totalorder %v3152, 0
    %v3154 = vsub.s32 0, %v3152
    %v3155 = vsel %vm3153, %v3154, %v3152
    %v3156 = vclz %v3155
    %v3157 = vsub.s32 %v3156, 2
    %vm3158 = vcmp.gt.s32.totalorder 0, %v3157
    %v3159 = vsel %vm3158, 0, %v3157
    %v3160 = vsub.s32 32, %v3159
    %v3161 = vshll.u32 %v3152, %v3159
    %v3162 = vshrl.u32 %v3144, %v3160
    %v3163 = vor.u32 %v3161, %v3162
    %v3164 = vsub.s32 4294967266, %v3159
    %v3165 = vadd.s32 %v3164, 127
    %v3166 = vshll.u32 %v3165, 23
    %v3167 = vor.u32 4788187, %v3166
    %v3168 = vand.u32 2147483647, %v3167
    %v3170 = vcvt.s32.f32 %v3163
    %v3171 = vmul.f32 %v3170, %v3168
    %v3172 = vxor.u32 %v3171, 2147483648
    %v3173 = vsel %vm3090, %v3172, %v3171
    %v3174 = vsub.s32 4, %v3150
    %v3175 = vsel %vm3090, %v3174, %v3150
    %v3176 = vsel %vm3089, %v356, %v3173
    %v3177 = vsel %vm3089, 0, %v3175
    %v3178 = vcosq.f32.pop %v3176
    %v3179 = vsinq.f32.pop %v3176
    %vm3180 = vweird.f32 %v356
    %v3181 = vadd.s32 %v3177, 3
    %v3182 = vand.u32 %v3181, 3
    %vm3183 = vcmp.lt.s32.totalorder %v3182, 2
    %vm3184 = vcmp.eq.s32.totalorder %v3182, 0
    %v3185 = vxor.u32 %v3179, 2147483648
    %v3186 = vsel %vm3184, %v3178, %v3185
    %vm3187 = vcmp.eq.s32.totalorder %v3182, 2
    %v3188 = vxor.u32 %v3178, 2147483648
    %v3189 = vsel %vm3187, %v3188, %v3179
    %v3190 = vsel %vm3183, %v3186, %v3189
    %v3191 = vsel %vm3180, nan, %v3190
    %v3192 = vand.u32 2147483647, %v361
    %vm3193 = vcmp.le.f32.partialorder %v3192, 0.7853982
    %vm3194 = vcmp.lt.s32.totalorder %v361, 0
    %v3195 = vand.u32 %v361, 2139095040
    %v3196 = vshrl.u32 %v3195, 23
    %v3197 = vsub.s32 %v3196, 127
    %v3198 = vand.u32 2147483647, %v361
    %v3199 = vand.u32 %v3198, 8388607
    %v3200 = vor.u32 %v3199, 8388608
    %v3201 = vsub.s32 0, %v3200
    %v3202 = vadd.s32 %v3197, 1
    %vm3203 = vcmp.gt.s32.totalorder %v3202, 0
    %v3204 = vsel %vm3203, %v3202, 0
    %v3205 = vshrl.u32 %v3204, 5
    %v3206 = vand.u32 %v3204, 31
    %v3207 = vsub.s32 32, %v3206
    %v3208 = vshrl.u32 683565275, %v3207
    %v3209 = vshll.u32 683565275, %v3206
    %v3210 = vshrl.u32 2475754826, %v3207
    %v3211 = vor.u32 %v3209, %v3210
    %v3212 = vshll.u32 2475754826, %v3206
    %v3213 = vshrl.u32 2131351028, %v3207
    %v3214 = vor.u32 %v3212, %v3213
    %v3215 = vshll.u32 2131351028, %v3206
    %v3216 = vshrl.u32 2102212464, %v3207
    %v3217 = vor.u32 %v3215, %v3216
    %v3218 = vshll.u32 2102212464, %v3206
    %v3219 = vshrl.u32 920167782, %v3207
    %v3220 = vor.u32 %v3218, %v3219
    %v3221 = vshll.u32 920167782, %v3206
    %v3222 = vshrl.u32 1326507024, %v3207
    %v3223 = vor.u32 %v3221, %v3222
    %vm3224 = vcmp.lt.s32.totalorder %v3205, 1
    %vm3225 = vcmp.lt.s32.totalorder %v3205, 2
    %vm3226 = vcmp.lt.s32.totalorder %v3205, 3
    %vm3227 = vcmp.lt.s32.totalorder %v3205, 4
    %v3228 = vsel %vm3224, %v3208, %v3211
    %v3229 = vsel %vm3227, %v3217, 2102212464
    %v3230 = vsel %vm3226, %v3214, %v3229
    %v3231 = vsel %vm3225, %v3228, %v3230
    %v3232 = vsel %vm3224, %v3211, %v3214
    %v3233 = vsel %vm3227, %v3220, 920167782
    %v3234 = vsel %vm3226, %v3217, %v3233
    %v3235 = vsel %vm3225, %v3232, %v3234
    %v3236 = vsel %vm3224, %v3214, %v3217
    %v3237 = vsel %vm3227, %v3223, 1326507024
    %v3238 = vsel %vm3226, %v3220, %v3237
    %v3239 = vsel %vm3225, %v3236, %v3238
    %v3240 = vshll.u32 %v3200, 8
    %v3241 = vmul.u32.u64.compose %v3240, %v3239
    %v3242 = vextract.low.u32 %v3241
    %v3243 = vextract.high.u32 %v3241
    %v3244 = vmul.u32.u64.compose %v3240, %v3235
    %v3245 = vextract.low.u32 %v3244
    %v3246 = vextract.high.u32 %v3244
    %v3247 = vmul.u32 %v3240, %v3231
    %v3248 = vadd.s32 %v3243, %v3245
    %vm3249 = vc.u32 %v3243, %v3245
    %v3250 = vadd.s32 %v3246, 1
    %v3251 = vsel %vm3249, %v3250, %v3246
    %v3252 = vadd.s32 %v3247, %v3251
    %v3253 = vadd.s32 %v3252, 536870912
    %v3254 = vshrl.u32 %v3253, 30
    %v3255 = vshll.u32 %v3254, 30
    %v3256 = vsub.s32 %v3252, %v3255
    %vm3257 = vcmp.lt.s32.totalorder %v3256, 0
    %v3258 = vsub.s32 0, %v3256
    %v3259 = vsel %vm3257, %v3258, %v3256
    %v3260 = vclz %v3259
    %v3261 = vsub.s32 %v3260, 2
    %vm3262 = vcmp.gt.s32.totalorder 0, %v3261
    %v3263 = vsel %vm3262, 0, %v3261
    %v3264 = vsub.s32 32, %v3263
    %v3265 = vshll.u32 %v3256, %v3263
    %v3266 = vshrl.u32 %v3248, %v3264
    %v3267 = vor.u32 %v3265, %v3266
    %v3268 = vsub.s32 4294967266, %v3263
    %v3269 = vadd.s32 %v3268, 127
    %v3270 = vshll.u32 %v3269, 23
    %v3271 = vor.u32 4788187, %v3270
    %v3272 = vand.u32 2147483647, %v3271
    %v3274 = vcvt.s32.f32 %v3267
    %v3275 = vmul.f32 %v3274, %v3272
    %v3276 = vxor.u32 %v3275, 2147483648
    %v3277 = vsel %vm3194, %v3276, %v3275
    %v3278 = vsub.s32 4, %v3254
    %v3279 = vsel %vm3194, %v3278, %v3254
    %v3280 = vsel %vm3193, %v361, %v3277
    %v3281 = vsel %vm3193, 0, %v3279
    %v3282 = vcosq.f32.pop %v3280
    %v3283 = vsinq.f32.pop %v3280
    %vm3284 = vweird.f32 %v361
    %v3285 = vadd.s32 %v3281, 3
    %v3286 = vand.u32 %v3285, 3
    %vm3287 = vcmp.lt.s32.totalorder %v3286, 2
    %vm3288 = vcmp.eq.s32.totalorder %v3286, 0
    %v3289 = vxor.u32 %v3283, 2147483648
    %v3290 = vsel %vm3288, %v3282, %v3289
    %vm3291 = vcmp.eq.s32.totalorder %v3286, 2
    %v3292 = vxor.u32 %v3282, 2147483648
    %v3293 = vsel %vm3291, %v3292, %v3283
    %v3294 = vsel %vm3287, %v3290, %v3293
    %v3295 = vsel %vm3284, nan, %v3294
    %v3296 = vand.u32 2147483647, %v366
    %vm3297 = vcmp.le.f32.partialorder %v3296, 0.7853982
    %vm3298 = vcmp.lt.s32.totalorder %v366, 0
    %v3299 = vand.u32 %v366, 2139095040
    %v3300 = vshrl.u32 %v3299, 23
    %v3301 = vsub.s32 %v3300, 127
    %v3302 = vand.u32 2147483647, %v366
    %v3303 = vand.u32 %v3302, 8388607
    %v3304 = vor.u32 %v3303, 8388608
    %v3305 = vsub.s32 0, %v3304
    %v3306 = vadd.s32 %v3301, 1
    %vm3307 = vcmp.gt.s32.totalorder %v3306, 0
    %v3308 = vsel %vm3307, %v3306, 0
    %v3309 = vshrl.u32 %v3308, 5
    %v3310 = vand.u32 %v3308, 31
    %v3311 = vsub.s32 32, %v3310
    %v3312 = vshrl.u32 683565275, %v3311
    %v3313 = vshll.u32 683565275, %v3310
    %v3314 = vshrl.u32 2475754826, %v3311
    %v3315 = vor.u32 %v3313, %v3314
    %v3316 = vshll.u32 2475754826, %v3310
    %v3317 = vshrl.u32 2131351028, %v3311
    %v3318 = vor.u32 %v3316, %v3317
    %v3319 = vshll.u32 2131351028, %v3310
    %v3320 = vshrl.u32 2102212464, %v3311
    %v3321 = vor.u32 %v3319, %v3320
    %v3322 = vshll.u32 2102212464, %v3310
    %v3323 = vshrl.u32 920167782, %v3311
    %v3324 = vor.u32 %v3322, %v3323
    %v3325 = vshll.u32 920167782, %v3310
    %v3326 = vshrl.u32 1326507024, %v3311
    %v3327 = vor.u32 %v3325, %v3326
    %vm3328 = vcmp.lt.s32.totalorder %v3309, 1
    %vm3329 = vcmp.lt.s32.totalorder %v3309, 2
    %vm3330 = vcmp.lt.s32.totalorder %v3309, 3
    %vm3331 = vcmp.lt.s32.totalorder %v3309, 4
    %v3332 = vsel %vm3328, %v3312, %v3315
    %v3333 = vsel %vm3331, %v3321, 2102212464
    %v3334 = vsel %vm3330, %v3318, %v3333
    %v3335 = vsel %vm3329, %v3332, %v3334
    %v3336 = vsel %vm3328, %v3315, %v3318
    %v3337 = vsel %vm3331, %v3324, 920167782
    %v3338 = vsel %vm3330, %v3321, %v3337
    %v3339 = vsel %vm3329, %v3336, %v3338
    %v3340 = vsel %vm3328, %v3318, %v3321
    %v3341 = vsel %vm3331, %v3327, 1326507024
    %v3342 = vsel %vm3330, %v3324, %v3341
    %v3343 = vsel %vm3329, %v3340, %v3342
    %v3344 = vshll.u32 %v3304, 8
    %v3345 = vmul.u32.u64.compose %v3344, %v3343
    %v3346 = vextract.low.u32 %v3345
    %v3347 = vextract.high.u32 %v3345
    %v3348 = vmul.u32.u64.compose %v3344, %v3339
    %v3349 = vextract.low.u32 %v3348
    %v3350 = vextract.high.u32 %v3348
    %v3351 = vmul.u32 %v3344, %v3335
    %v3352 = vadd.s32 %v3347, %v3349
    %vm3353 = vc.u32 %v3347, %v3349
    %v3354 = vadd.s32 %v3350, 1
    %v3355 = vsel %vm3353, %v3354, %v3350
    %v3356 = vadd.s32 %v3351, %v3355
    %v3357 = vadd.s32 %v3356, 536870912
    %v3358 = vshrl.u32 %v3357, 30
    %v3359 = vshll.u32 %v3358, 30
    %v3360 = vsub.s32 %v3356, %v3359
    %vm3361 = vcmp.lt.s32.totalorder %v3360, 0
    %v3362 = vsub.s32 0, %v3360
    %v3363 = vsel %vm3361, %v3362, %v3360
    %v3364 = vclz %v3363
    %v3365 = vsub.s32 %v3364, 2
    %vm3366 = vcmp.gt.s32.totalorder 0, %v3365
    %v3367 = vsel %vm3366, 0, %v3365
    %v3368 = vsub.s32 32, %v3367
    %v3369 = vshll.u32 %v3360, %v3367
    %v3370 = vshrl.u32 %v3352, %v3368
    %v3371 = vor.u32 %v3369, %v3370
    %v3372 = vsub.s32 4294967266, %v3367
    %v3373 = vadd.s32 %v3372, 127
    %v3374 = vshll.u32 %v3373, 23
    %v3375 = vor.u32 4788187, %v3374
    %v3376 = vand.u32 2147483647, %v3375
    %v3378 = vcvt.s32.f32 %v3371
    %v3379 = vmul.f32 %v3378, %v3376
    %v3380 = vxor.u32 %v3379, 2147483648
    %v3381 = vsel %vm3298, %v3380, %v3379
    %v3382 = vsub.s32 4, %v3358
    %v3383 = vsel %vm3298, %v3382, %v3358
    %v3384 = vsel %vm3297, %v366, %v3381
    %v3385 = vsel %vm3297, 0, %v3383
    %v3386 = vcosq.f32.pop %v3384
    %v3387 = vsinq.f32.pop %v3384
    %vm3388 = vweird.f32 %v366
    %v3389 = vadd.s32 %v3385, 3
    %v3390 = vand.u32 %v3389, 3
    %vm3391 = vcmp.lt.s32.totalorder %v3390, 2
    %vm3392 = vcmp.eq.s32.totalorder %v3390, 0
    %v3393 = vxor.u32 %v3387, 2147483648
    %v3394 = vsel %vm3392, %v3386, %v3393
    %vm3395 = vcmp.eq.s32.totalorder %v3390, 2
    %v3396 = vxor.u32 %v3386, 2147483648
    %v3397 = vsel %vm3395, %v3396, %v3387
    %v3398 = vsel %vm3391, %v3394, %v3397
    %v3399 = vsel %vm3388, nan, %v3398
    %v3400 = vand.u32 2147483647, %v371
    %vm3401 = vcmp.le.f32.partialorder %v3400, 0.7853982
    %vm3402 = vcmp.lt.s32.totalorder %v371, 0
    %v3403 = vand.u32 %v371, 2139095040
    %v3404 = vshrl.u32 %v3403, 23
    %v3405 = vsub.s32 %v3404, 127
    %v3406 = vand.u32 2147483647, %v371
    %v3407 = vand.u32 %v3406, 8388607
    %v3408 = vor.u32 %v3407, 8388608
    %v3409 = vsub.s32 0, %v3408
    %v3410 = vadd.s32 %v3405, 1
    %vm3411 = vcmp.gt.s32.totalorder %v3410, 0
    %v3412 = vsel %vm3411, %v3410, 0
    %v3413 = vshrl.u32 %v3412, 5
    %v3414 = vand.u32 %v3412, 31
    %v3415 = vsub.s32 32, %v3414
    %v3416 = vshrl.u32 683565275, %v3415
    %v3417 = vshll.u32 683565275, %v3414
    %v3418 = vshrl.u32 2475754826, %v3415
    %v3419 = vor.u32 %v3417, %v3418
    %v3420 = vshll.u32 2475754826, %v3414
    %v3421 = vshrl.u32 2131351028, %v3415
    %v3422 = vor.u32 %v3420, %v3421
    %v3423 = vshll.u32 2131351028, %v3414
    %v3424 = vshrl.u32 2102212464, %v3415
    %v3425 = vor.u32 %v3423, %v3424
    %v3426 = vshll.u32 2102212464, %v3414
    %v3427 = vshrl.u32 920167782, %v3415
    %v3428 = vor.u32 %v3426, %v3427
    %v3429 = vshll.u32 920167782, %v3414
    %v3430 = vshrl.u32 1326507024, %v3415
    %v3431 = vor.u32 %v3429, %v3430
    %vm3432 = vcmp.lt.s32.totalorder %v3413, 1
    %vm3433 = vcmp.lt.s32.totalorder %v3413, 2
    %vm3434 = vcmp.lt.s32.totalorder %v3413, 3
    %vm3435 = vcmp.lt.s32.totalorder %v3413, 4
    %v3436 = vsel %vm3432, %v3416, %v3419
    %v3437 = vsel %vm3435, %v3425, 2102212464
    %v3438 = vsel %vm3434, %v3422, %v3437
    %v3439 = vsel %vm3433, %v3436, %v3438
    %v3440 = vsel %vm3432, %v3419, %v3422
    %v3441 = vsel %vm3435, %v3428, 920167782
    %v3442 = vsel %vm3434, %v3425, %v3441
    %v3443 = vsel %vm3433, %v3440, %v3442
    %v3444 = vsel %vm3432, %v3422, %v3425
    %v3445 = vsel %vm3435, %v3431, 1326507024
    %v3446 = vsel %vm3434, %v3428, %v3445
    %v3447 = vsel %vm3433, %v3444, %v3446
    %v3448 = vshll.u32 %v3408, 8
    %v3449 = vmul.u32.u64.compose %v3448, %v3447
    %v3450 = vextract.low.u32 %v3449
    %v3451 = vextract.high.u32 %v3449
    %v3452 = vmul.u32.u64.compose %v3448, %v3443
    %v3453 = vextract.low.u32 %v3452
    %v3454 = vextract.high.u32 %v3452
    %v3455 = vmul.u32 %v3448, %v3439
    %v3456 = vadd.s32 %v3451, %v3453
    %vm3457 = vc.u32 %v3451, %v3453
    %v3458 = vadd.s32 %v3454, 1
    %v3459 = vsel %vm3457, %v3458, %v3454
    %v3460 = vadd.s32 %v3455, %v3459
    %v3461 = vadd.s32 %v3460, 536870912
    %v3462 = vshrl.u32 %v3461, 30
    %v3463 = vshll.u32 %v3462, 30
    %v3464 = vsub.s32 %v3460, %v3463
    %vm3465 = vcmp.lt.s32.totalorder %v3464, 0
    %v3466 = vsub.s32 0, %v3464
    %v3467 = vsel %vm3465, %v3466, %v3464
    %v3468 = vclz %v3467
    %v3469 = vsub.s32 %v3468, 2
    %vm3470 = vcmp.gt.s32.totalorder 0, %v3469
    %v3471 = vsel %vm3470, 0, %v3469
    %v3472 = vsub.s32 32, %v3471
    %v3473 = vshll.u32 %v3464, %v3471
    %v3474 = vshrl.u32 %v3456, %v3472
    %v3475 = vor.u32 %v3473, %v3474
    %v3476 = vsub.s32 4294967266, %v3471
    %v3477 = vadd.s32 %v3476, 127
    %v3478 = vshll.u32 %v3477, 23
    %v3479 = vor.u32 4788187, %v3478
    %v3480 = vand.u32 2147483647, %v3479
    %v3482 = vcvt.s32.f32 %v3475
    %v3483 = vmul.f32 %v3482, %v3480
    %v3484 = vxor.u32 %v3483, 2147483648
    %v3485 = vsel %vm3402, %v3484, %v3483
    %v3486 = vsub.s32 4, %v3462
    %v3487 = vsel %vm3402, %v3486, %v3462
    %v3488 = vsel %vm3401, %v371, %v3485
    %v3489 = vsel %vm3401, 0, %v3487
    %v3490 = vcosq.f32.pop %v3488
    %v3491 = vsinq.f32.pop %v3488
    %vm3492 = vweird.f32 %v371
    %v3493 = vadd.s32 %v3489, 3
    %v3494 = vand.u32 %v3493, 3
    %vm3495 = vcmp.lt.s32.totalorder %v3494, 2
    %vm3496 = vcmp.eq.s32.totalorder %v3494, 0
    %v3497 = vxor.u32 %v3491, 2147483648
    %v3498 = vsel %vm3496, %v3490, %v3497
    %vm3499 = vcmp.eq.s32.totalorder %v3494, 2
    %v3500 = vxor.u32 %v3490, 2147483648
    %v3501 = vsel %vm3499, %v3500, %v3491
    %v3502 = vsel %vm3495, %v3498, %v3501
    %v3503 = vsel %vm3492, nan, %v3502
    %v3504 = vand.u32 2147483647, %v376
    %vm3505 = vcmp.le.f32.partialorder %v3504, 0.7853982
    %vm3506 = vcmp.lt.s32.totalorder %v376, 0
    %v3507 = vand.u32 %v376, 2139095040
    %v3508 = vshrl.u32 %v3507, 23
    %v3509 = vsub.s32 %v3508, 127
    %v3510 = vand.u32 2147483647, %v376
    %v3511 = vand.u32 %v3510, 8388607
    %v3512 = vor.u32 %v3511, 8388608
    %v3513 = vsub.s32 0, %v3512
    %v3514 = vadd.s32 %v3509, 1
    %vm3515 = vcmp.gt.s32.totalorder %v3514, 0
    %v3516 = vsel %vm3515, %v3514, 0
    %v3517 = vshrl.u32 %v3516, 5
    %v3518 = vand.u32 %v3516, 31
    %v3519 = vsub.s32 32, %v3518
    %v3520 = vshrl.u32 683565275, %v3519
    %v3521 = vshll.u32 683565275, %v3518
    %v3522 = vshrl.u32 2475754826, %v3519
    %v3523 = vor.u32 %v3521, %v3522
    %v3524 = vshll.u32 2475754826, %v3518
    %v3525 = vshrl.u32 2131351028, %v3519
    %v3526 = vor.u32 %v3524, %v3525
    %v3527 = vshll.u32 2131351028, %v3518
    %v3528 = vshrl.u32 2102212464, %v3519
    %v3529 = vor.u32 %v3527, %v3528
    %v3530 = vshll.u32 2102212464, %v3518
    %v3531 = vshrl.u32 920167782, %v3519
    %v3532 = vor.u32 %v3530, %v3531
    %v3533 = vshll.u32 920167782, %v3518
    %v3534 = vshrl.u32 1326507024, %v3519
    %v3535 = vor.u32 %v3533, %v3534
    %vm3536 = vcmp.lt.s32.totalorder %v3517, 1
    %vm3537 = vcmp.lt.s32.totalorder %v3517, 2
    %vm3538 = vcmp.lt.s32.totalorder %v3517, 3
    %vm3539 = vcmp.lt.s32.totalorder %v3517, 4
    %v3540 = vsel %vm3536, %v3520, %v3523
    %v3541 = vsel %vm3539, %v3529, 2102212464
    %v3542 = vsel %vm3538, %v3526, %v3541
    %v3543 = vsel %vm3537, %v3540, %v3542
    %v3544 = vsel %vm3536, %v3523, %v3526
    %v3545 = vsel %vm3539, %v3532, 920167782
    %v3546 = vsel %vm3538, %v3529, %v3545
    %v3547 = vsel %vm3537, %v3544, %v3546
    %v3548 = vsel %vm3536, %v3526, %v3529
    %v3549 = vsel %vm3539, %v3535, 1326507024
    %v3550 = vsel %vm3538, %v3532, %v3549
    %v3551 = vsel %vm3537, %v3548, %v3550
    %v3552 = vshll.u32 %v3512, 8
    %v3553 = vmul.u32.u64.compose %v3552, %v3551
    %v3554 = vextract.low.u32 %v3553
    %v3555 = vextract.high.u32 %v3553
    %v3556 = vmul.u32.u64.compose %v3552, %v3547
    %v3557 = vextract.low.u32 %v3556
    %v3558 = vextract.high.u32 %v3556
    %v3559 = vmul.u32 %v3552, %v3543
    %v3560 = vadd.s32 %v3555, %v3557
    %vm3561 = vc.u32 %v3555, %v3557
    %v3562 = vadd.s32 %v3558, 1
    %v3563 = vsel %vm3561, %v3562, %v3558
    %v3564 = vadd.s32 %v3559, %v3563
    %v3565 = vadd.s32 %v3564, 536870912
    %v3566 = vshrl.u32 %v3565, 30
    %v3567 = vshll.u32 %v3566, 30
    %v3568 = vsub.s32 %v3564, %v3567
    %vm3569 = vcmp.lt.s32.totalorder %v3568, 0
    %v3570 = vsub.s32 0, %v3568
    %v3571 = vsel %vm3569, %v3570, %v3568
    %v3572 = vclz %v3571
    %v3573 = vsub.s32 %v3572, 2
    %vm3574 = vcmp.gt.s32.totalorder 0, %v3573
    %v3575 = vsel %vm3574, 0, %v3573
    %v3576 = vsub.s32 32, %v3575
    %v3577 = vshll.u32 %v3568, %v3575
    %v3578 = vshrl.u32 %v3560, %v3576
    %v3579 = vor.u32 %v3577, %v3578
    %v3580 = vsub.s32 4294967266, %v3575
    %v3581 = vadd.s32 %v3580, 127
    %v3582 = vshll.u32 %v3581, 23
    %v3583 = vor.u32 4788187, %v3582
    %v3584 = vand.u32 2147483647, %v3583
    %v3586 = vcvt.s32.f32 %v3579
    %v3587 = vmul.f32 %v3586, %v3584
    %v3588 = vxor.u32 %v3587, 2147483648
    %v3589 = vsel %vm3506, %v3588, %v3587
    %v3590 = vsub.s32 4, %v3566
    %v3591 = vsel %vm3506, %v3590, %v3566
    %v3592 = vsel %vm3505, %v376, %v3589
    %v3593 = vsel %vm3505, 0, %v3591
    %v3594 = vcosq.f32.pop %v3592
    %v3595 = vsinq.f32.pop %v3592
    %vm3596 = vweird.f32 %v376
    %v3597 = vadd.s32 %v3593, 3
    %v3598 = vand.u32 %v3597, 3
    %vm3599 = vcmp.lt.s32.totalorder %v3598, 2
    %vm3600 = vcmp.eq.s32.totalorder %v3598, 0
    %v3601 = vxor.u32 %v3595, 2147483648
    %v3602 = vsel %vm3600, %v3594, %v3601
    %vm3603 = vcmp.eq.s32.totalorder %v3598, 2
    %v3604 = vxor.u32 %v3594, 2147483648
    %v3605 = vsel %vm3603, %v3604, %v3595
    %v3606 = vsel %vm3599, %v3602, %v3605
    %v3607 = vsel %vm3596, nan, %v3606
    %v3608 = vand.u32 2147483647, %v381
    %vm3609 = vcmp.le.f32.partialorder %v3608, 0.7853982
    %vm3610 = vcmp.lt.s32.totalorder %v381, 0
    %v3611 = vand.u32 %v381, 2139095040
    %v3612 = vshrl.u32 %v3611, 23
    %v3613 = vsub.s32 %v3612, 127
    %v3614 = vand.u32 2147483647, %v381
    %v3615 = vand.u32 %v3614, 8388607
    %v3616 = vor.u32 %v3615, 8388608
    %v3617 = vsub.s32 0, %v3616
    %v3618 = vadd.s32 %v3613, 1
    %vm3619 = vcmp.gt.s32.totalorder %v3618, 0
    %v3620 = vsel %vm3619, %v3618, 0
    %v3621 = vshrl.u32 %v3620, 5
    %v3622 = vand.u32 %v3620, 31
    %v3623 = vsub.s32 32, %v3622
    %v3624 = vshrl.u32 683565275, %v3623
    %v3625 = vshll.u32 683565275, %v3622
    %v3626 = vshrl.u32 2475754826, %v3623
    %v3627 = vor.u32 %v3625, %v3626
    %v3628 = vshll.u32 2475754826, %v3622
    %v3629 = vshrl.u32 2131351028, %v3623
    %v3630 = vor.u32 %v3628, %v3629
    %v3631 = vshll.u32 2131351028, %v3622
    %v3632 = vshrl.u32 2102212464, %v3623
    %v3633 = vor.u32 %v3631, %v3632
    %v3634 = vshll.u32 2102212464, %v3622
    %v3635 = vshrl.u32 920167782, %v3623
    %v3636 = vor.u32 %v3634, %v3635
    %v3637 = vshll.u32 920167782, %v3622
    %v3638 = vshrl.u32 1326507024, %v3623
    %v3639 = vor.u32 %v3637, %v3638
    %vm3640 = vcmp.lt.s32.totalorder %v3621, 1
    %vm3641 = vcmp.lt.s32.totalorder %v3621, 2
    %vm3642 = vcmp.lt.s32.totalorder %v3621, 3
    %vm3643 = vcmp.lt.s32.totalorder %v3621, 4
    %v3644 = vsel %vm3640, %v3624, %v3627
    %v3645 = vsel %vm3643, %v3633, 2102212464
    %v3646 = vsel %vm3642, %v3630, %v3645
    %v3647 = vsel %vm3641, %v3644, %v3646
    %v3648 = vsel %vm3640, %v3627, %v3630
    %v3649 = vsel %vm3643, %v3636, 920167782
    %v3650 = vsel %vm3642, %v3633, %v3649
    %v3651 = vsel %vm3641, %v3648, %v3650
    %v3652 = vsel %vm3640, %v3630, %v3633
    %v3653 = vsel %vm3643, %v3639, 1326507024
    %v3654 = vsel %vm3642, %v3636, %v3653
    %v3655 = vsel %vm3641, %v3652, %v3654
    %v3656 = vshll.u32 %v3616, 8
    %v3657 = vmul.u32.u64.compose %v3656, %v3655
    %v3658 = vextract.low.u32 %v3657
    %v3659 = vextract.high.u32 %v3657
    %v3660 = vmul.u32.u64.compose %v3656, %v3651
    %v3661 = vextract.low.u32 %v3660
    %v3662 = vextract.high.u32 %v3660
    %v3663 = vmul.u32 %v3656, %v3647
    %v3664 = vadd.s32 %v3659, %v3661
    %vm3665 = vc.u32 %v3659, %v3661
    %v3666 = vadd.s32 %v3662, 1
    %v3667 = vsel %vm3665, %v3666, %v3662
    %v3668 = vadd.s32 %v3663, %v3667
    %v3669 = vadd.s32 %v3668, 536870912
    %v3670 = vshrl.u32 %v3669, 30
    %v3671 = vshll.u32 %v3670, 30
    %v3672 = vsub.s32 %v3668, %v3671
    %vm3673 = vcmp.lt.s32.totalorder %v3672, 0
    %v3674 = vsub.s32 0, %v3672
    %v3675 = vsel %vm3673, %v3674, %v3672
    %v3676 = vclz %v3675
    %v3677 = vsub.s32 %v3676, 2
    %vm3678 = vcmp.gt.s32.totalorder 0, %v3677
    %v3679 = vsel %vm3678, 0, %v3677
    %v3680 = vsub.s32 32, %v3679
    %v3681 = vshll.u32 %v3672, %v3679
    %v3682 = vshrl.u32 %v3664, %v3680
    %v3683 = vor.u32 %v3681, %v3682
    %v3684 = vsub.s32 4294967266, %v3679
    %v3685 = vadd.s32 %v3684, 127
    %v3686 = vshll.u32 %v3685, 23
    %v3687 = vor.u32 4788187, %v3686
    %v3688 = vand.u32 2147483647, %v3687
    %v3690 = vcvt.s32.f32 %v3683
    %v3691 = vmul.f32 %v3690, %v3688
    %v3692 = vxor.u32 %v3691, 2147483648
    %v3693 = vsel %vm3610, %v3692, %v3691
    %v3694 = vsub.s32 4, %v3670
    %v3695 = vsel %vm3610, %v3694, %v3670
    %v3696 = vsel %vm3609, %v381, %v3693
    %v3697 = vsel %vm3609, 0, %v3695
    %v3698 = vcosq.f32.pop %v3696
    %v3699 = vsinq.f32.pop %v3696
    %vm3700 = vweird.f32 %v381
    %v3701 = vadd.s32 %v3697, 3
    %v3702 = vand.u32 %v3701, 3
    %vm3703 = vcmp.lt.s32.totalorder %v3702, 2
    %vm3704 = vcmp.eq.s32.totalorder %v3702, 0
    %v3705 = vxor.u32 %v3699, 2147483648
    %v3706 = vsel %vm3704, %v3698, %v3705
    %vm3707 = vcmp.eq.s32.totalorder %v3702, 2
    %v3708 = vxor.u32 %v3698, 2147483648
    %v3709 = vsel %vm3707, %v3708, %v3699
    %v3710 = vsel %vm3703, %v3706, %v3709
    %v3711 = vsel %vm3700, nan, %v3710
    %3712 = vst [vmem:[#allocation2] sm:$0xff] %v487
    %3713 = vst [vmem:[#allocation2 + $0x8] sm:$0xff] %v591
    %3714 = vst [vmem:[#allocation2 + $0x10] sm:$0xff] %v695
    %3715 = vst [vmem:[#allocation2 + $0x18] sm:$0xff] %v799
    %3716 = vst [vmem:[#allocation2 + $0x20] sm:$0xff] %v903
    %3717 = vst [vmem:[#allocation2 + $0x28] sm:$0xff] %v1007
    %3718 = vst [vmem:[#allocation2 + $0x30] sm:$0xff] %v1111
    %3719 = vst [vmem:[#allocation2 + $0x38] sm:$0xff] %v1215
    %3720 = vst [vmem:[#allocation2 + $0x40] sm:$0xff] %v1319
    %3721 = vst [vmem:[#allocation2 + $0x48] sm:$0xff] %v1423
    %3722 = vst [vmem:[#allocation2 + $0x50] sm:$0xff] %v1527
    %3723 = vst [vmem:[#allocation2 + $0x58] sm:$0xff] %v1631
    %3724 = vst [vmem:[#allocation2 + $0x60] sm:$0xff] %v1735
    %3725 = vst [vmem:[#allocation2 + $0x68] sm:$0xff] %v1839
    %3726 = vst [vmem:[#allocation2 + $0x70] sm:$0xff] %v1943
    %3727 = vst [vmem:[#allocation2 + $0x78] sm:$0xff] %v2047
    %3728 = vst [vmem:[#allocation2 + $0x80] sm:$0xff] %v2151
    %3729 = vst [vmem:[#allocation2 + $0x88] sm:$0xff] %v2255
    %3730 = vst [vmem:[#allocation2 + $0x90] sm:$0xff] %v2359
    %3731 = vst [vmem:[#allocation2 + $0x98] sm:$0xff] %v2463
    %3732 = vst [vmem:[#allocation2 + $0xa0] sm:$0xff] %v2567
    %3733 = vst [vmem:[#allocation2 + $0xa8] sm:$0xff] %v2671
    %3734 = vst [vmem:[#allocation2 + $0xb0] sm:$0xff] %v2775
    %3735 = vst [vmem:[#allocation2 + $0xb8] sm:$0xff] %v2879
    %3736 = vst [vmem:[#allocation2 + $0xc0] sm:$0xff] %v2983
    %3737 = vst [vmem:[#allocation2 + $0xc8] sm:$0xff] %v3087
    %3738 = vst [vmem:[#allocation2 + $0xd0] sm:$0xff] %v3191
    %3739 = vst [vmem:[#allocation2 + $0xd8] sm:$0xff] %v3295
    %3740 = vst [vmem:[#allocation2 + $0xe0] sm:$0xff] %v3399
    %3741 = vst [vmem:[#allocation2 + $0xe8] sm:$0xff] %v3503
    %3742 = vst [vmem:[#allocation2 + $0xf0] sm:$0xff] %v3607
    %3743 = vst [vmem:[#allocation2 + $0xf8] sm:$0xff] %v3711
    // Predicated region
    $region14: #{tpu_custom_call.1} parent=1 // pred_check
      _
    $region15: #{tpu_custom_call.1} parent=1 // pred_check_branch
      %3745 = sbr.rel (0) target = $region17
    $region16: #{tpu_custom_call.1} parent=1 // pred_region
      %s3747 = ssub.s32 4096, 4096
      %3748 = vsyncadd [#allocation3], %s3747
      %s3749 = sshll.u32 [#allocation2], 4
      %s3750 = int_to_ptr.vmem [resolvable:$true] %s3749
      %3755 = dma.vmem_to_hbm [thread:$0]  %s3750, 4096, %s3, [#allocation3], 128, 128, 8
    $region17: #{tpu_custom_call.1} parent=1 // pred_fallthru
      _
    // Predicated region
    $region18: #{tpu_custom_call.1} parent=1 // pred_check
      _
    $region19: #{tpu_custom_call.1} parent=1 // pred_check_branch
      %3757 = sbr.rel (0) target = $region21
    $region20: #{tpu_custom_call.1} parent=1 // pred_region
      %3758 = dma.done [#allocation3], 4096
    $region21: #{tpu_custom_call.1} parent=1 // pred_fallthru
      _
    %3759 = vsyncpa [#allocation3], 1

</llo_original>
